<compile_context>
chip_gen: v6e
topology: v6e:2x2x1
jax: 0.10.0
libtpu: 0.0.40
codegen_flags: <defaults>
</compile_context>

<pallas_src>
import functools

import jax
import jax.numpy as jnp
from jax.experimental import pallas as pl
from jax.experimental.pallas import tpu as pltpu


# Encoder: 784->512->256->128->64->32->16, decoder: 16->32->64->128->256->512->784.
_LAYER_DIMS = [784, 512, 256, 128, 64, 32, 16,   # encoder
               32, 64, 128, 256, 512, 784]       # decoder
# ReLU after every Linear except the encoder tail (layer 5) and the decoder
# tail (layer 11) — exactly matching the PyTorch nn.Sequential definitions.
_RELU_FLAGS = (True, True, True, True, True, False,
               True, True, True, True, True, False)
_N_LAYERS = len(_RELU_FLAGS)
_D_PAD = 896            # 7 * 128: lane-dense padding of the 784 dimension
_BIAS_ROW = _D_PAD      # width of packed bias rows (>= widest layer, 784)


def _round_up(x, m):
    return (x + m - 1) // m * m


def _padded_dims():
    dims = list(_LAYER_DIMS)
    dims[0] = _D_PAD
    dims[-1] = _D_PAD
    return dims


# ----------------------------------------------------------------------------
# Fused kernel: the whole autoencoder forward for one batch tile.
# refs = (x, w0, ..., w11, bias_pack, out).  The Python loop unrolls into 12
# MXU matmuls with fp32 epilogues; activations stay in bf16 vregs between
# layers and never touch HBM.
# ----------------------------------------------------------------------------
def _autoencoder_kernel(*refs, relu_flags, out_dims):
    n_layers = len(relu_flags)
    x_ref = refs[0]
    w_refs = refs[1:1 + n_layers]
    b_ref = refs[1 + n_layers]          # (12, 896) fp32 packed biases
    o_ref = refs[2 + n_layers]

    h = x_ref[...]                                       # (tile_m, 896) bf16
    for li, (w_ref, relu) in enumerate(zip(w_refs, relu_flags)):
        w = w_ref[...]                                   # (in_p, out_p) bf16
        y = jnp.dot(h, w, preferred_element_type=jnp.float32)   # MXU, fp32 acc
        b = b_ref[li:li + 1, 0:out_dims[li]]             # (1, out_p) fp32, static slice
        y = y + b                                        # fp32 epilogue
        if relu:
            y = jnp.maximum(y, 0.0)
        # bf16 activations between layers; final layer stays fp32 for the store.
        h = y.astype(jnp.bfloat16) if li + 1 < n_layers else y
    o_ref[...] = h.astype(o_ref.dtype)


# ----------------------------------------------------------------------------
# Wrapper: pad/pack params, build the batch grid, call the kernel.
# ----------------------------------------------------------------------------
def _pack_params(params):
    """Pad + cast weights to bf16 (in,out); pack all biases into one fp32 array."""
    assert len(params) == _N_LAYERS
    pdims = _padded_dims()
    ws = []
    bias_pack = jnp.zeros((_N_LAYERS, _BIAS_ROW), jnp.float32)
    for li, (w, b) in enumerate(params):
        in_d, out_d = _LAYER_DIMS[li], _LAYER_DIMS[li + 1]
        assert w.shape == (in_d, out_d), (li, w.shape)
        in_p, out_p = pdims[li], pdims[li + 1]
        wp = jnp.zeros((in_p, out_p), jnp.bfloat16)
        wp = wp.at[:in_d, :out_d].set(w.astype(jnp.bfloat16))
        ws.append(wp)
        bias_pack = bias_pack.at[li, :out_d].set(
            jnp.reshape(b, (-1,)).astype(jnp.float32))
    return ws, bias_pack


@functools.partial(jax.jit, static_argnames=("tile_m",))
def autoencoder_forward(x, params, *, tile_m=256):
    """Full AutoEncoder forward in a single batch-tiled Pallas TPU kernel."""
    B, d_in = x.shape
    assert d_in == _LAYER_DIMS[0]
    pdims = _padded_dims()

    ws, bias_pack = _pack_params(params)

    # Batch tiling: tile_m must be a multiple of 8 (sublane); pad B to a tile
    # multiple.  (128 is a good v5e choice, 256 for v6e/v7x; small B collapses
    # to one tile.)
    tile_m = min(tile_m, _round_up(B, 8))
    b_pad = _round_up(B, tile_m)
    grid = (b_pad // tile_m,)

    # x: cast to bf16 and zero-pad batch + feature dims (halves input DMA and
    # makes the first matmul lane-dense).
    xb = jnp.zeros((b_pad, _D_PAD), jnp.bfloat16)
    xb = xb.at[:B, :d_in].set(x.astype(jnp.bfloat16))

    x_spec = pl.BlockSpec((tile_m, _D_PAD), lambda i: (i, 0))
    # Weights / packed biases: constant block index -> DMA'd once, VMEM-resident
    # across all batch tiles.
    w_specs = [pl.BlockSpec(w.shape, lambda i: (0, 0)) for w in ws]
    b_spec = pl.BlockSpec(bias_pack.shape, lambda i: (0, 0))
    o_spec = pl.BlockSpec((tile_m, _D_PAD), lambda i: (i, 0))

    # Explicit VMEM budget: resident weights/biases + double-buffered x/out
    # tiles + activation temporaries, with margin; clamped under v7x physical.
    w_bytes = sum(int(w.size) * w.dtype.itemsize for w in ws)
    bias_bytes = int(bias_pack.size) * 4
    x_tile_bytes = tile_m * _D_PAD * 2
    o_tile_bytes = tile_m * _D_PAD * 4
    act_bytes = 4 * tile_m * max(pdims) * 4
    vmem_budget = int(min(
        2 * (w_bytes + bias_bytes + x_tile_bytes + o_tile_bytes)
        + act_bytes + (8 << 20),
        56 << 20))

    flops = 2 * b_pad * sum(int(w.size) for w in ws)
    bytes_accessed = int(xb.size) * 2 + w_bytes + bias_bytes + b_pad * _D_PAD * 4

    out_padded = pl.pallas_call(
        functools.partial(_autoencoder_kernel,
                          relu_flags=_RELU_FLAGS,
                          out_dims=tuple(pdims[1:])),
        grid=grid,
        in_specs=[x_spec, *w_specs, b_spec],
        out_specs=o_spec,
        out_shape=jax.ShapeDtypeStruct((b_pad, _D_PAD), jnp.float32),
        compiler_params=pltpu.CompilerParams(
            dimension_semantics=("parallel",),
            vmem_limit_bytes=vmem_budget),
        cost_estimate=pl.CostEstimate(
            flops=flops, transcendentals=0, bytes_accessed=int(bytes_accessed)),
    )(xb, *ws, bias_pack)

    return out_padded[:B, :d_in]


# ----------------------------------------------------------------------------
# Parameters & pure-JAX reference (same mixed-precision math as the kernel).
# ----------------------------------------------------------------------------
def init_params(key):
    """Deterministic synthetic parameters (PyTorch-like uniform init), fp32.

    Weights stored (in, out) — transpose of PyTorch's (out, in); a loader of
    real checkpoints must transpose.
    """
    params = []
    for li in range(_N_LAYERS):
        fan_in, fan_out = _LAYER_DIMS[li], _LAYER_DIMS[li + 1]
        key, kw, kb = jax.random.split(key, 3)
        bound = 1.0 / (fan_in ** 0.5)
        w = jax.random.uniform(kw, (fan_in, fan_out), jnp.float32, -bound, bound)
        b = jax.random.uniform(kb, (fan_out,), jnp.float32, -bound, bound)
        params.append((w, b))
    return params


def autoencoder_ref(x, params):
    """Pure-JAX reference with the same bf16-weight / bf16-activation math."""
    h = x.astype(jnp.bfloat16)
    for li, (w, b) in enumerate(params):
        y = jnp.dot(h, w.astype(jnp.bfloat16),
                    preferred_element_type=jnp.float32) + b.astype(jnp.float32)
        if _RELU_FLAGS[li]:
            y = jnp.maximum(y, 0.0)
        h = y.astype(jnp.bfloat16) if li + 1 < _N_LAYERS else y
    return h


if __name__ == "__main__":
    key = jax.random.PRNGKey(0)
    key, kx = jax.random.split(key)

    # Small shapes consistent with the module's (B, 28*28) input.  tile_m=8
    # gives a 2-step batch grid so the tiling / constant-weight index_maps are
    # exercised; production would use tile_m=128 (v5e) or 256 (v6e/v7x) and a
    # large B for MXU-bound throughput.
    B = 16
    x = jax.random.normal(kx, (B, 28 * 28), dtype=jnp.float32)
    params = init_params(key)

    out = jax.block_until_ready(autoencoder_forward(x, params, tile_m=8))
    ref = jax.block_until_ready(autoencoder_ref(x, params))

    assert out.shape == (B, 28 * 28), out.shape
    assert jnp.allclose(out, ref, atol=1e-2, rtol=1e-2), (
        "mismatch vs JAX reference, max abs err = "
        f"{float(jnp.max(jnp.abs(out - ref)))}")

    print("KERNEL_OK")
</pallas_src>

<mosaic_0001>
module attributes {stable_mosaic.version = 11 : i64} {
  func.func @_autoencoder_kernel(%arg0: i32, %arg1: memref<8x896xbf16, #tpu.memory_space<vmem>>, %arg2: memref<896x512xbf16, #tpu.memory_space<vmem>>, %arg3: memref<512x256xbf16, #tpu.memory_space<vmem>>, %arg4: memref<256x128xbf16, #tpu.memory_space<vmem>>, %arg5: memref<128x64xbf16, #tpu.memory_space<vmem>>, %arg6: memref<64x32xbf16, #tpu.memory_space<vmem>>, %arg7: memref<32x16xbf16, #tpu.memory_space<vmem>>, %arg8: memref<16x32xbf16, #tpu.memory_space<vmem>>, %arg9: memref<32x64xbf16, #tpu.memory_space<vmem>>, %arg10: memref<64x128xbf16, #tpu.memory_space<vmem>>, %arg11: memref<128x256xbf16, #tpu.memory_space<vmem>>, %arg12: memref<256x512xbf16, #tpu.memory_space<vmem>>, %arg13: memref<512x896xbf16, #tpu.memory_space<vmem>>, %arg14: memref<12x896xf32, #tpu.memory_space<vmem>>, %arg15: memref<8x896xf32, #tpu.memory_space<vmem>>) attributes {dimension_semantics = [#tpu.dimension_semantics<parallel>], iteration_bounds = array<i64: 2>, scalar_prefetch = 0 : i64, scratch_operands = 0 : i64, tpu.core_type = #tpu.core_type<tc>, window_params = [{transform_indices = @transform_0, window_bounds = array<i64: 8, 896>}, {pipeline_mode = #tpu.pipeline_mode<synchronous>, transform_indices = @transform_1, window_bounds = array<i64: 896, 512>}, {pipeline_mode = #tpu.pipeline_mode<synchronous>, transform_indices = @transform_2, window_bounds = array<i64: 512, 256>}, {pipeline_mode = #tpu.pipeline_mode<synchronous>, transform_indices = @transform_3, window_bounds = array<i64: 256, 128>}, {pipeline_mode = #tpu.pipeline_mode<synchronous>, transform_indices = @transform_4, window_bounds = array<i64: 128, 64>}, {pipeline_mode = #tpu.pipeline_mode<synchronous>, transform_indices = @transform_5, window_bounds = array<i64: 64, 32>}, {pipeline_mode = #tpu.pipeline_mode<synchronous>, transform_indices = @transform_6, window_bounds = array<i64: 32, 16>}, {pipeline_mode = #tpu.pipeline_mode<synchronous>, transform_indices = @transform_7, window_bounds = array<i64: 16, 32>}, {pipeline_mode = #tpu.pipeline_mode<synchronous>, transform_indices = @transform_8, window_bounds = array<i64: 32, 64>}, {pipeline_mode = #tpu.pipeline_mode<synchronous>, transform_indices = @transform_9, window_bounds = array<i64: 64, 128>}, {pipeline_mode = #tpu.pipeline_mode<synchronous>, transform_indices = @transform_10, window_bounds = array<i64: 128, 256>}, {pipeline_mode = #tpu.pipeline_mode<synchronous>, transform_indices = @transform_11, window_bounds = array<i64: 256, 512>}, {pipeline_mode = #tpu.pipeline_mode<synchronous>, transform_indices = @transform_12, window_bounds = array<i64: 512, 896>}, {pipeline_mode = #tpu.pipeline_mode<synchronous>, transform_indices = @transform_13, window_bounds = array<i64: 12, 896>}, {transform_indices = @transform_14, window_bounds = array<i64: 8, 896>}]} {
    %c0 = arith.constant 0 : index
    %c0_0 = arith.constant 0 : index
    %0 = vector.load %arg1[%c0, %c0_0] : memref<8x896xbf16, #tpu.memory_space<vmem>>, vector<8x896xbf16>
    %c0_1 = arith.constant 0 : index
    %c0_2 = arith.constant 0 : index
    %1 = vector.load %arg2[%c0_1, %c0_2] : memref<896x512xbf16, #tpu.memory_space<vmem>>, vector<896x512xbf16>
    %cst = arith.constant dense<0.000000e+00> : vector<8x512xf32>
    %2 = tpu.matmul %0, %1, %cst {dimension_numbers = #tpu.dot_dimension_numbers<[1], [0], [0], [1], [0, 0, 1, 1], [], []>} : vector<8x896xbf16>, vector<896x512xbf16>, vector<8x512xf32> -> vector<8x512xf32>
    %c0_3 = arith.constant 0 : index
    %c0_4 = arith.constant 0 : index
    %3 = vector.load %arg14[%c0_3, %c0_4] : memref<12x896xf32, #tpu.memory_space<vmem>>, vector<1x512xf32>
    %4 = vector.broadcast %3 : vector<1x512xf32> to vector<8x512xf32>
    %5 = arith.addf %2, %4 : vector<8x512xf32>
    %cst_5 = arith.constant 0.000000e+00 : f32
    %6 = vector.broadcast %cst_5 : f32 to vector<8x512xf32>
    %7 = arith.maximumf %5, %6 : vector<8x512xf32>
    %8 = arith.truncf %7 : vector<8x512xf32> to vector<8x512xbf16>
    %c0_6 = arith.constant 0 : index
    %c0_7 = arith.constant 0 : index
    %9 = vector.load %arg3[%c0_6, %c0_7] : memref<512x256xbf16, #tpu.memory_space<vmem>>, vector<512x256xbf16>
    %cst_8 = arith.constant dense<0.000000e+00> : vector<8x256xf32>
    %10 = tpu.matmul %8, %9, %cst_8 {dimension_numbers = #tpu.dot_dimension_numbers<[1], [0], [0], [1], [0, 0, 1, 1], [], []>} : vector<8x512xbf16>, vector<512x256xbf16>, vector<8x256xf32> -> vector<8x256xf32>
    %c1 = arith.constant 1 : index
    %c0_9 = arith.constant 0 : index
    %11 = vector.load %arg14[%c1, %c0_9] : memref<12x896xf32, #tpu.memory_space<vmem>>, vector<1x256xf32>
    %12 = vector.broadcast %11 : vector<1x256xf32> to vector<8x256xf32>
    %13 = arith.addf %10, %12 : vector<8x256xf32>
    %cst_10 = arith.constant 0.000000e+00 : f32
    %14 = vector.broadcast %cst_10 : f32 to vector<8x256xf32>
    %15 = arith.maximumf %13, %14 : vector<8x256xf32>
    %16 = arith.truncf %15 : vector<8x256xf32> to vector<8x256xbf16>
    %c0_11 = arith.constant 0 : index
    %c0_12 = arith.constant 0 : index
    %17 = vector.load %arg4[%c0_11, %c0_12] : memref<256x128xbf16, #tpu.memory_space<vmem>>, vector<256x128xbf16>
    %cst_13 = arith.constant dense<0.000000e+00> : vector<8x128xf32>
    %18 = tpu.matmul %16, %17, %cst_13 {dimension_numbers = #tpu.dot_dimension_numbers<[1], [0], [0], [1], [0, 0, 1, 1], [], []>} : vector<8x256xbf16>, vector<256x128xbf16>, vector<8x128xf32> -> vector<8x128xf32>
    %c2 = arith.constant 2 : index
    %c0_14 = arith.constant 0 : index
    %19 = vector.load %arg14[%c2, %c0_14] : memref<12x896xf32, #tpu.memory_space<vmem>>, vector<1x128xf32>
    %20 = vector.broadcast %19 : vector<1x128xf32> to vector<8x128xf32>
    %21 = arith.addf %18, %20 : vector<8x128xf32>
    %cst_15 = arith.constant 0.000000e+00 : f32
    %22 = vector.broadcast %cst_15 : f32 to vector<8x128xf32>
    %23 = arith.maximumf %21, %22 : vector<8x128xf32>
    %24 = arith.truncf %23 : vector<8x128xf32> to vector<8x128xbf16>
    %c0_16 = arith.constant 0 : index
    %c0_17 = arith.constant 0 : index
    %25 = vector.load %arg5[%c0_16, %c0_17] : memref<128x64xbf16, #tpu.memory_space<vmem>>, vector<128x64xbf16>
    %cst_18 = arith.constant dense<0.000000e+00> : vector<8x64xf32>
    %26 = tpu.matmul %24, %25, %cst_18 {dimension_numbers = #tpu.dot_dimension_numbers<[1], [0], [0], [1], [0, 0, 1, 1], [], []>} : vector<8x128xbf16>, vector<128x64xbf16>, vector<8x64xf32> -> vector<8x64xf32>
    %c3 = arith.constant 3 : index
    %c0_19 = arith.constant 0 : index
    %27 = vector.load %arg14[%c3, %c0_19] : memref<12x896xf32, #tpu.memory_space<vmem>>, vector<1x64xf32>
    %28 = vector.broadcast %27 : vector<1x64xf32> to vector<8x64xf32>
    %29 = arith.addf %26, %28 : vector<8x64xf32>
    %cst_20 = arith.constant 0.000000e+00 : f32
    %30 = vector.broadcast %cst_20 : f32 to vector<8x64xf32>
    %31 = arith.maximumf %29, %30 : vector<8x64xf32>
    %32 = arith.truncf %31 : vector<8x64xf32> to vector<8x64xbf16>
    %c0_21 = arith.constant 0 : index
    %c0_22 = arith.constant 0 : index
    %33 = vector.load %arg6[%c0_21, %c0_22] : memref<64x32xbf16, #tpu.memory_space<vmem>>, vector<64x32xbf16>
    %cst_23 = arith.constant dense<0.000000e+00> : vector<8x32xf32>
    %34 = tpu.matmul %32, %33, %cst_23 {dimension_numbers = #tpu.dot_dimension_numbers<[1], [0], [0], [1], [0, 0, 1, 1], [], []>} : vector<8x64xbf16>, vector<64x32xbf16>, vector<8x32xf32> -> vector<8x32xf32>
    %c4 = arith.constant 4 : index
    %c0_24 = arith.constant 0 : index
    %35 = vector.load %arg14[%c4, %c0_24] : memref<12x896xf32, #tpu.memory_space<vmem>>, vector<1x32xf32>
    %36 = vector.broadcast %35 : vector<1x32xf32> to vector<8x32xf32>
    %37 = arith.addf %34, %36 : vector<8x32xf32>
    %cst_25 = arith.constant 0.000000e+00 : f32
    %38 = vector.broadcast %cst_25 : f32 to vector<8x32xf32>
    %39 = arith.maximumf %37, %38 : vector<8x32xf32>
    %40 = arith.truncf %39 : vector<8x32xf32> to vector<8x32xbf16>
    %c0_26 = arith.constant 0 : index
    %c0_27 = arith.constant 0 : index
    %41 = vector.load %arg7[%c0_26, %c0_27] : memref<32x16xbf16, #tpu.memory_space<vmem>>, vector<32x16xbf16>
    %cst_28 = arith.constant dense<0.000000e+00> : vector<8x16xf32>
    %42 = tpu.matmul %40, %41, %cst_28 {dimension_numbers = #tpu.dot_dimension_numbers<[1], [0], [0], [1], [0, 0, 1, 1], [], []>} : vector<8x32xbf16>, vector<32x16xbf16>, vector<8x16xf32> -> vector<8x16xf32>
    %c5 = arith.constant 5 : index
    %c0_29 = arith.constant 0 : index
    %43 = vector.load %arg14[%c5, %c0_29] : memref<12x896xf32, #tpu.memory_space<vmem>>, vector<1x16xf32>
    %44 = vector.broadcast %43 : vector<1x16xf32> to vector<8x16xf32>
    %45 = arith.addf %42, %44 : vector<8x16xf32>
    %46 = arith.truncf %45 : vector<8x16xf32> to vector<8x16xbf16>
    %c0_30 = arith.constant 0 : index
    %c0_31 = arith.constant 0 : index
    %47 = vector.load %arg8[%c0_30, %c0_31] : memref<16x32xbf16, #tpu.memory_space<vmem>>, vector<16x32xbf16>
    %cst_32 = arith.constant dense<0.000000e+00> : vector<8x32xf32>
    %48 = tpu.matmul %46, %47, %cst_32 {dimension_numbers = #tpu.dot_dimension_numbers<[1], [0], [0], [1], [0, 0, 1, 1], [], []>} : vector<8x16xbf16>, vector<16x32xbf16>, vector<8x32xf32> -> vector<8x32xf32>
    %c6 = arith.constant 6 : index
    %c0_33 = arith.constant 0 : index
    %49 = vector.load %arg14[%c6, %c0_33] : memref<12x896xf32, #tpu.memory_space<vmem>>, vector<1x32xf32>
    %50 = vector.broadcast %49 : vector<1x32xf32> to vector<8x32xf32>
    %51 = arith.addf %48, %50 : vector<8x32xf32>
    %cst_34 = arith.constant 0.000000e+00 : f32
    %52 = vector.broadcast %cst_34 : f32 to vector<8x32xf32>
    %53 = arith.maximumf %51, %52 : vector<8x32xf32>
    %54 = arith.truncf %53 : vector<8x32xf32> to vector<8x32xbf16>
    %c0_35 = arith.constant 0 : index
    %c0_36 = arith.constant 0 : index
    %55 = vector.load %arg9[%c0_35, %c0_36] : memref<32x64xbf16, #tpu.memory_space<vmem>>, vector<32x64xbf16>
    %cst_37 = arith.constant dense<0.000000e+00> : vector<8x64xf32>
    %56 = tpu.matmul %54, %55, %cst_37 {dimension_numbers = #tpu.dot_dimension_numbers<[1], [0], [0], [1], [0, 0, 1, 1], [], []>} : vector<8x32xbf16>, vector<32x64xbf16>, vector<8x64xf32> -> vector<8x64xf32>
    %c7 = arith.constant 7 : index
    %c0_38 = arith.constant 0 : index
    %57 = vector.load %arg14[%c7, %c0_38] : memref<12x896xf32, #tpu.memory_space<vmem>>, vector<1x64xf32>
    %58 = vector.broadcast %57 : vector<1x64xf32> to vector<8x64xf32>
    %59 = arith.addf %56, %58 : vector<8x64xf32>
    %cst_39 = arith.constant 0.000000e+00 : f32
    %60 = vector.broadcast %cst_39 : f32 to vector<8x64xf32>
    %61 = arith.maximumf %59, %60 : vector<8x64xf32>
    %62 = arith.truncf %61 : vector<8x64xf32> to vector<8x64xbf16>
    %c0_40 = arith.constant 0 : index
    %c0_41 = arith.constant 0 : index
    %63 = vector.load %arg10[%c0_40, %c0_41] : memref<64x128xbf16, #tpu.memory_space<vmem>>, vector<64x128xbf16>
    %cst_42 = arith.constant dense<0.000000e+00> : vector<8x128xf32>
    %64 = tpu.matmul %62, %63, %cst_42 {dimension_numbers = #tpu.dot_dimension_numbers<[1], [0], [0], [1], [0, 0, 1, 1], [], []>} : vector<8x64xbf16>, vector<64x128xbf16>, vector<8x128xf32> -> vector<8x128xf32>
    %c8 = arith.constant 8 : index
    %c0_43 = arith.constant 0 : index
    %65 = vector.load %arg14[%c8, %c0_43] : memref<12x896xf32, #tpu.memory_space<vmem>>, vector<1x128xf32>
    %66 = vector.broadcast %65 : vector<1x128xf32> to vector<8x128xf32>
    %67 = arith.addf %64, %66 : vector<8x128xf32>
    %cst_44 = arith.constant 0.000000e+00 : f32
    %68 = vector.broadcast %cst_44 : f32 to vector<8x128xf32>
    %69 = arith.maximumf %67, %68 : vector<8x128xf32>
    %70 = arith.truncf %69 : vector<8x128xf32> to vector<8x128xbf16>
    %c0_45 = arith.constant 0 : index
    %c0_46 = arith.constant 0 : index
    %71 = vector.load %arg11[%c0_45, %c0_46] : memref<128x256xbf16, #tpu.memory_space<vmem>>, vector<128x256xbf16>
    %cst_47 = arith.constant dense<0.000000e+00> : vector<8x256xf32>
    %72 = tpu.matmul %70, %71, %cst_47 {dimension_numbers = #tpu.dot_dimension_numbers<[1], [0], [0], [1], [0, 0, 1, 1], [], []>} : vector<8x128xbf16>, vector<128x256xbf16>, vector<8x256xf32> -> vector<8x256xf32>
    %c9 = arith.constant 9 : index
    %c0_48 = arith.constant 0 : index
    %73 = vector.load %arg14[%c9, %c0_48] : memref<12x896xf32, #tpu.memory_space<vmem>>, vector<1x256xf32>
    %74 = vector.broadcast %73 : vector<1x256xf32> to vector<8x256xf32>
    %75 = arith.addf %72, %74 : vector<8x256xf32>
    %cst_49 = arith.constant 0.000000e+00 : f32
    %76 = vector.broadcast %cst_49 : f32 to vector<8x256xf32>
    %77 = arith.maximumf %75, %76 : vector<8x256xf32>
    %78 = arith.truncf %77 : vector<8x256xf32> to vector<8x256xbf16>
    %c0_50 = arith.constant 0 : index
    %c0_51 = arith.constant 0 : index
    %79 = vector.load %arg12[%c0_50, %c0_51] : memref<256x512xbf16, #tpu.memory_space<vmem>>, vector<256x512xbf16>
    %cst_52 = arith.constant dense<0.000000e+00> : vector<8x512xf32>
    %80 = tpu.matmul %78, %79, %cst_52 {dimension_numbers = #tpu.dot_dimension_numbers<[1], [0], [0], [1], [0, 0, 1, 1], [], []>} : vector<8x256xbf16>, vector<256x512xbf16>, vector<8x512xf32> -> vector<8x512xf32>
    %c10 = arith.constant 10 : index
    %c0_53 = arith.constant 0 : index
    %81 = vector.load %arg14[%c10, %c0_53] : memref<12x896xf32, #tpu.memory_space<vmem>>, vector<1x512xf32>
    %82 = vector.broadcast %81 : vector<1x512xf32> to vector<8x512xf32>
    %83 = arith.addf %80, %82 : vector<8x512xf32>
    %cst_54 = arith.constant 0.000000e+00 : f32
    %84 = vector.broadcast %cst_54 : f32 to vector<8x512xf32>
    %85 = arith.maximumf %83, %84 : vector<8x512xf32>
    %86 = arith.truncf %85 : vector<8x512xf32> to vector<8x512xbf16>
    %c0_55 = arith.constant 0 : index
    %c0_56 = arith.constant 0 : index
    %87 = vector.load %arg13[%c0_55, %c0_56] : memref<512x896xbf16, #tpu.memory_space<vmem>>, vector<512x896xbf16>
    %cst_57 = arith.constant dense<0.000000e+00> : vector<8x896xf32>
    %88 = tpu.matmul %86, %87, %cst_57 {dimension_numbers = #tpu.dot_dimension_numbers<[1], [0], [0], [1], [0, 0, 1, 1], [], []>} : vector<8x512xbf16>, vector<512x896xbf16>, vector<8x896xf32> -> vector<8x896xf32>
    %c11 = arith.constant 11 : index
    %c0_58 = arith.constant 0 : index
    %89 = vector.load %arg14[%c11, %c0_58] : memref<12x896xf32, #tpu.memory_space<vmem>>, vector<1x896xf32>
    %90 = vector.broadcast %89 : vector<1x896xf32> to vector<8x896xf32>
    %91 = arith.addf %88, %90 : vector<8x896xf32>
    %c0_59 = arith.constant 0 : index
    %c0_60 = arith.constant 0 : index
    %92 = vector.load %arg15[%c0_59, %c0_60] : memref<8x896xf32, #tpu.memory_space<vmem>>, vector<8x896xf32>
    tpu.vector_store %arg15[%c0_59, %c0_60], %91 {strides = array<i32>} : memref<8x896xf32, #tpu.memory_space<vmem>>, vector<8x896xf32>,
    return
  }
  func.func @transform_0(%arg0: i32) -> (i32, i32) {
    %c0_i32 = arith.constant 0 : i32
    %c0_i32_0 = arith.constant 0 : i32
    return %arg0, %c0_i32 : i32, i32
  }
  func.func @transform_1(%arg0: i32) -> (i32, i32) {
    %c0_i32 = arith.constant 0 : i32
    %c0_i32_0 = arith.constant 0 : i32
    %c0_i32_1 = arith.constant 0 : i32
    return %c0_i32, %c0_i32_0 : i32, i32
  }
  func.func @transform_2(%arg0: i32) -> (i32, i32) {
    %c0_i32 = arith.constant 0 : i32
    %c0_i32_0 = arith.constant 0 : i32
    %c0_i32_1 = arith.constant 0 : i32
    return %c0_i32, %c0_i32_0 : i32, i32
  }
  func.func @transform_3(%arg0: i32) -> (i32, i32) {
    %c0_i32 = arith.constant 0 : i32
    %c0_i32_0 = arith.constant 0 : i32
    %c0_i32_1 = arith.constant 0 : i32
    return %c0_i32, %c0_i32_0 : i32, i32
  }
  func.func @transform_4(%arg0: i32) -> (i32, i32) {
    %c0_i32 = arith.constant 0 : i32
    %c0_i32_0 = arith.constant 0 : i32
    %c0_i32_1 = arith.constant 0 : i32
    return %c0_i32, %c0_i32_0 : i32, i32
  }
  func.func @transform_5(%arg0: i32) -> (i32, i32) {
    %c0_i32 = arith.constant 0 : i32
    %c0_i32_0 = arith.constant 0 : i32
    %c0_i32_1 = arith.constant 0 : i32
    return %c0_i32, %c0_i32_0 : i32, i32
  }
  func.func @transform_6(%arg0: i32) -> (i32, i32) {
    %c0_i32 = arith.constant 0 : i32
    %c0_i32_0 = arith.constant 0 : i32
    %c0_i32_1 = arith.constant 0 : i32
    return %c0_i32, %c0_i32_0 : i32, i32
  }
  func.func @transform_7(%arg0: i32) -> (i32, i32) {
    %c0_i32 = arith.constant 0 : i32
    %c0_i32_0 = arith.constant 0 : i32
    %c0_i32_1 = arith.constant 0 : i32
    return %c0_i32, %c0_i32_0 : i32, i32
  }
  func.func @transform_8(%arg0: i32) -> (i32, i32) {
    %c0_i32 = arith.constant 0 : i32
    %c0_i32_0 = arith.constant 0 : i32
    %c0_i32_1 = arith.constant 0 : i32
    return %c0_i32, %c0_i32_0 : i32, i32
  }
  func.func @transform_9(%arg0: i32) -> (i32, i32) {
    %c0_i32 = arith.constant 0 : i32
    %c0_i32_0 = arith.constant 0 : i32
    %c0_i32_1 = arith.constant 0 : i32
    return %c0_i32, %c0_i32_0 : i32, i32
  }
  func.func @transform_10(%arg0: i32) -> (i32, i32) {
    %c0_i32 = arith.constant 0 : i32
    %c0_i32_0 = arith.constant 0 : i32
    %c0_i32_1 = arith.constant 0 : i32
    return %c0_i32, %c0_i32_0 : i32, i32
  }
  func.func @transform_11(%arg0: i32) -> (i32, i32) {
    %c0_i32 = arith.constant 0 : i32
    %c0_i32_0 = arith.constant 0 : i32
    %c0_i32_1 = arith.constant 0 : i32
    return %c0_i32, %c0_i32_0 : i32, i32
  }
  func.func @transform_12(%arg0: i32) -> (i32, i32) {
    %c0_i32 = arith.constant 0 : i32
    %c0_i32_0 = arith.constant 0 : i32
    %c0_i32_1 = arith.constant 0 : i32
    return %c0_i32, %c0_i32_0 : i32, i32
  }
  func.func @transform_13(%arg0: i32) -> (i32, i32) {
    %c0_i32 = arith.constant 0 : i32
    %c0_i32_0 = arith.constant 0 : i32
    %c0_i32_1 = arith.constant 0 : i32
    return %c0_i32, %c0_i32_0 : i32, i32
  }
  func.func @transform_14(%arg0: i32) -> (i32, i32) {
    %c0_i32 = arith.constant 0 : i32
    %c0_i32_0 = arith.constant 0 : i32
    return %arg0, %c0_i32 : i32, i32
  }
}

</mosaic_0001>

<llo_original>
// kernel: autoencoder_forward.1
$region0: #{autoencoder_forward.1}
  #allocation0 [shape = 'u32[]', space=smem, size = 0x4, offset = 0x4, fixed_abs, tag = 'smem constant byte address 0x4 - core index']
  #allocation1 [shape = 'u32[144,128]{1,0:T(1,128)}', space=vmem, size = 0x12000, scoped, tag = 'internal scratch']
  %s0 = inlined_call_operand.vmem [shape: bf16[16,896], index: 0, kind: input, shape index: {}]
  %s1 = inlined_call_operand.vmem [shape: bf16[896,512], index: 1, kind: input, shape index: {}]
  %s2 = inlined_call_operand.vmem [shape: bf16[512,256], index: 2, kind: input, shape index: {}]
  %s3 = inlined_call_operand.vmem [shape: bf16[256,128], index: 3, kind: input, shape index: {}]
  %s4 = inlined_call_operand.vmem [shape: bf16[128,64], index: 4, kind: input, shape index: {}]
  %s5 = inlined_call_operand.vmem [shape: bf16[64,32], index: 5, kind: input, shape index: {}]
  %s6 = inlined_call_operand.vmem [shape: bf16[32,16], index: 6, kind: input, shape index: {}]
  %s7 = inlined_call_operand.vmem [shape: bf16[16,32], index: 7, kind: input, shape index: {}]
  %s8 = inlined_call_operand.vmem [shape: bf16[32,64], index: 8, kind: input, shape index: {}]
  %s9 = inlined_call_operand.vmem [shape: bf16[64,128], index: 9, kind: input, shape index: {}]
  %s10 = inlined_call_operand.vmem [shape: bf16[128,256], index: 10, kind: input, shape index: {}]
  %s11 = inlined_call_operand.vmem [shape: bf16[256,512], index: 11, kind: input, shape index: {}]
  %s12 = inlined_call_operand.vmem [shape: bf16[512,896], index: 12, kind: input, shape index: {}]
  %s13 = inlined_call_operand.vmem [shape: f32[12,896], index: 13, kind: input, shape index: {}]
  %s14 = inlined_call_operand.hbm [shape: f32[16,896], index: 14, kind: output, shape index: {}]
  %s15 = sld [smem:[#allocation0]]
  $region89: #{autoencoder_forward.1} parent=0
    _
  %s17 = ssub.s32 1, %s15
  %s18 = scalar_select 0, %s17, %s15
  $region1: #{autoencoder_forward.1} parent=0
    #allocation2 [shape = 'u8[57344]{0}', space=vmem, size = 0xe000, scoped, tag = 'output window, operand 0']
    #allocation3 [shape = 's32[2]{0}', space=sflag, size = 0x8, scoped, tag = 'scoped memory for autoencoder_forward.1']
    %19 = vsyncpa [#allocation3], 0
    %s20 = scalar_lea.sflag [#allocation3], 1
    %21 = vsyncpa %s20, 0
    loop: start=0, step=1, limit=4
    $region2: #{autoencoder_forward.1} parent=1 // loop_pre_header
      _
    $region3: #{autoencoder_forward.1} parent=1 // loop_header
      %s23 = sphi 0, %s27
      %p24 = scmp.ge.s32.totalorder %s23, 4
      %s33 = sphi 0, %s35
      %s36 = sphi 0, %s33
      %s37 = sphi 0, %s36
      %s53 = sphi 0, %s37
      %s57 = sphi 0, %s57
      %s59 = sphi 0, %s57
      %s60 = sphi 0, %s59
      %s74 = sphi 0, %s60
      %s78 = sphi 0, %s78
      %s80 = sphi 0, %s78
      %s81 = sphi 0, %s80
      %s95 = sphi 0, %s81
      %s99 = sphi 0, %s99
      %s101 = sphi 0, %s99
      %s102 = sphi 0, %s101
      %s116 = sphi 0, %s102
      %s120 = sphi 0, %s120
      %s122 = sphi 0, %s120
      %s123 = sphi 0, %s122
      %s137 = sphi 0, %s123
      %s141 = sphi 0, %s141
      %s143 = sphi 0, %s141
      %s144 = sphi 0, %s143
      %s158 = sphi 0, %s144
      %s162 = sphi 0, %s162
      %s164 = sphi 0, %s162
      %s165 = sphi 0, %s164
      %s179 = sphi 0, %s165
      %s183 = sphi 0, %s183
      %s185 = sphi 0, %s183
      %s186 = sphi 0, %s185
      %s200 = sphi 0, %s186
      %s204 = sphi 0, %s204
      %s206 = sphi 0, %s204
      %s207 = sphi 0, %s206
      %s221 = sphi 0, %s207
      %s225 = sphi 0, %s225
      %s227 = sphi 0, %s225
      %s228 = sphi 0, %s227
      %s242 = sphi 0, %s228
      %s246 = sphi 0, %s246
      %s248 = sphi 0, %s246
      %s249 = sphi 0, %s248
      %s263 = sphi 0, %s249
      %s267 = sphi 0, %s267
      %s269 = sphi 0, %s267
      %s270 = sphi 0, %s269
      %s284 = sphi 0, %s270
      %s288 = sphi 0, %s288
      %s290 = sphi 0, %s288
      %s291 = sphi 0, %s290
      %s305 = sphi 0, %s291
      %s309 = sphi 0, %s309
      %s311 = sphi 0, %s309
      %s312 = sphi 0, %s311
      %s326 = sphi 0, %s312
      %s332 = sphi 0, %s334
      %s335 = sphi 0, %s332
      %s336 = sphi 0, %s335
      %s352 = sphi 0, %s336
    $region4: #{autoencoder_forward.1} parent=1 // loop_header_branch
      %26 = sbr.rel (%p24) target = $region8
    $region5: #{autoencoder_forward.1} parent=1 // loop_body
      %s28 = ssub.s32 %s23, 1
      %s29 = ssub.s32 %s23, 2
      %s30 = sadd.s32 %s23, 1
      %s31 = ssub.s32 %s23, %s30
      %p32 = scmp.eq.s32.totalorder %s31, 0
      %s34 = sadd.s32 %s33, 1
      %s35 = scalar_select %p32, %s33, %s34
      %p38 = pneg %p32
      %p39 = scmp.eq.s32.totalorder %s23, 1
      %p40 = por %p38, %p39
      %p41 = scmp.ne.s32.totalorder %s33, %s36
      %p42 = scmp.eq.s32.totalorder %s23, 0
      %p43 = por %p41, %p42
      %p44 = scmp.ne.s32.totalorder %s33, %s36
      %p45 = scmp.eq.s32.totalorder %s28, 1
      %p46 = por %p44, %p45
      %p47 = scmp.ne.s32.totalorder %s36, %s37
      %p48 = scmp.eq.s32.totalorder %s28, 0
      %p49 = por %p47, %p48
      %p50 = scmp.ne.s32.totalorder %s36, %s37
      %p51 = scmp.eq.s32.totalorder %s29, 1
      %p52 = por %p50, %p51
      %p54 = scmp.ne.s32.totalorder %s37, %s53
      %p55 = scmp.eq.s32.totalorder %s29, 0
      %p56 = por %p54, %p55
      %s58 = sadd.s32 %s57, 1
      %p61 = scmp.eq.s32.totalorder %s23, 1
      %p62 = scmp.ne.s32.totalorder %s57, %s59
      %p63 = scmp.eq.s32.totalorder %s23, 0
      %p64 = por %p62, %p63
      %p65 = scmp.ne.s32.totalorder %s57, %s59
      %p66 = scmp.eq.s32.totalorder %s28, 1
      %p67 = por %p65, %p66
      %p68 = scmp.ne.s32.totalorder %s59, %s60
      %p69 = scmp.eq.s32.totalorder %s28, 0
      %p70 = por %p68, %p69
      %p71 = scmp.ne.s32.totalorder %s59, %s60
      %p72 = scmp.eq.s32.totalorder %s29, 1
      %p73 = por %p71, %p72
      %p75 = scmp.ne.s32.totalorder %s60, %s74
      %p76 = scmp.eq.s32.totalorder %s29, 0
      %p77 = por %p75, %p76
      %s79 = sadd.s32 %s78, 1
      %p82 = scmp.eq.s32.totalorder %s23, 1
      %p83 = scmp.ne.s32.totalorder %s78, %s80
      %p84 = scmp.eq.s32.totalorder %s23, 0
      %p85 = por %p83, %p84
      %p86 = scmp.ne.s32.totalorder %s78, %s80
      %p87 = scmp.eq.s32.totalorder %s28, 1
      %p88 = por %p86, %p87
      %p89 = scmp.ne.s32.totalorder %s80, %s81
      %p90 = scmp.eq.s32.totalorder %s28, 0
      %p91 = por %p89, %p90
      %p92 = scmp.ne.s32.totalorder %s80, %s81
      %p93 = scmp.eq.s32.totalorder %s29, 1
      %p94 = por %p92, %p93
      %p96 = scmp.ne.s32.totalorder %s81, %s95
      %p97 = scmp.eq.s32.totalorder %s29, 0
      %p98 = por %p96, %p97
      %s100 = sadd.s32 %s99, 1
      %p103 = scmp.eq.s32.totalorder %s23, 1
      %p104 = scmp.ne.s32.totalorder %s99, %s101
      %p105 = scmp.eq.s32.totalorder %s23, 0
      %p106 = por %p104, %p105
      %p107 = scmp.ne.s32.totalorder %s99, %s101
      %p108 = scmp.eq.s32.totalorder %s28, 1
      %p109 = por %p107, %p108
      %p110 = scmp.ne.s32.totalorder %s101, %s102
      %p111 = scmp.eq.s32.totalorder %s28, 0
      %p112 = por %p110, %p111
      %p113 = scmp.ne.s32.totalorder %s101, %s102
      %p114 = scmp.eq.s32.totalorder %s29, 1
      %p115 = por %p113, %p114
      %p117 = scmp.ne.s32.totalorder %s102, %s116
      %p118 = scmp.eq.s32.totalorder %s29, 0
      %p119 = por %p117, %p118
      %s121 = sadd.s32 %s120, 1
      %p124 = scmp.eq.s32.totalorder %s23, 1
      %p125 = scmp.ne.s32.totalorder %s120, %s122
      %p126 = scmp.eq.s32.totalorder %s23, 0
      %p127 = por %p125, %p126
      %p128 = scmp.ne.s32.totalorder %s120, %s122
      %p129 = scmp.eq.s32.totalorder %s28, 1
      %p130 = por %p128, %p129
      %p131 = scmp.ne.s32.totalorder %s122, %s123
      %p132 = scmp.eq.s32.totalorder %s28, 0
      %p133 = por %p131, %p132
      %p134 = scmp.ne.s32.totalorder %s122, %s123
      %p135 = scmp.eq.s32.totalorder %s29, 1
      %p136 = por %p134, %p135
      %p138 = scmp.ne.s32.totalorder %s123, %s137
      %p139 = scmp.eq.s32.totalorder %s29, 0
      %p140 = por %p138, %p139
      %s142 = sadd.s32 %s141, 1
      %p145 = scmp.eq.s32.totalorder %s23, 1
      %p146 = scmp.ne.s32.totalorder %s141, %s143
      %p147 = scmp.eq.s32.totalorder %s23, 0
      %p148 = por %p146, %p147
      %p149 = scmp.ne.s32.totalorder %s141, %s143
      %p150 = scmp.eq.s32.totalorder %s28, 1
      %p151 = por %p149, %p150
      %p152 = scmp.ne.s32.totalorder %s143, %s144
      %p153 = scmp.eq.s32.totalorder %s28, 0
      %p154 = por %p152, %p153
      %p155 = scmp.ne.s32.totalorder %s143, %s144
      %p156 = scmp.eq.s32.totalorder %s29, 1
      %p157 = por %p155, %p156
      %p159 = scmp.ne.s32.totalorder %s144, %s158
      %p160 = scmp.eq.s32.totalorder %s29, 0
      %p161 = por %p159, %p160
      %s163 = sadd.s32 %s162, 1
      %p166 = scmp.eq.s32.totalorder %s23, 1
      %p167 = scmp.ne.s32.totalorder %s162, %s164
      %p168 = scmp.eq.s32.totalorder %s23, 0
      %p169 = por %p167, %p168
      %p170 = scmp.ne.s32.totalorder %s162, %s164
      %p171 = scmp.eq.s32.totalorder %s28, 1
      %p172 = por %p170, %p171
      %p173 = scmp.ne.s32.totalorder %s164, %s165
      %p174 = scmp.eq.s32.totalorder %s28, 0
      %p175 = por %p173, %p174
      %p176 = scmp.ne.s32.totalorder %s164, %s165
      %p177 = scmp.eq.s32.totalorder %s29, 1
      %p178 = por %p176, %p177
      %p180 = scmp.ne.s32.totalorder %s165, %s179
      %p181 = scmp.eq.s32.totalorder %s29, 0
      %p182 = por %p180, %p181
      %s184 = sadd.s32 %s183, 1
      %p187 = scmp.eq.s32.totalorder %s23, 1
      %p188 = scmp.ne.s32.totalorder %s183, %s185
      %p189 = scmp.eq.s32.totalorder %s23, 0
      %p190 = por %p188, %p189
      %p191 = scmp.ne.s32.totalorder %s183, %s185
      %p192 = scmp.eq.s32.totalorder %s28, 1
      %p193 = por %p191, %p192
      %p194 = scmp.ne.s32.totalorder %s185, %s186
      %p195 = scmp.eq.s32.totalorder %s28, 0
      %p196 = por %p194, %p195
      %p197 = scmp.ne.s32.totalorder %s185, %s186
      %p198 = scmp.eq.s32.totalorder %s29, 1
      %p199 = por %p197, %p198
      %p201 = scmp.ne.s32.totalorder %s186, %s200
      %p202 = scmp.eq.s32.totalorder %s29, 0
      %p203 = por %p201, %p202
      %s205 = sadd.s32 %s204, 1
      %p208 = scmp.eq.s32.totalorder %s23, 1
      %p209 = scmp.ne.s32.totalorder %s204, %s206
      %p210 = scmp.eq.s32.totalorder %s23, 0
      %p211 = por %p209, %p210
      %p212 = scmp.ne.s32.totalorder %s204, %s206
      %p213 = scmp.eq.s32.totalorder %s28, 1
      %p214 = por %p212, %p213
      %p215 = scmp.ne.s32.totalorder %s206, %s207
      %p216 = scmp.eq.s32.totalorder %s28, 0
      %p217 = por %p215, %p216
      %p218 = scmp.ne.s32.totalorder %s206, %s207
      %p219 = scmp.eq.s32.totalorder %s29, 1
      %p220 = por %p218, %p219
      %p222 = scmp.ne.s32.totalorder %s207, %s221
      %p223 = scmp.eq.s32.totalorder %s29, 0
      %p224 = por %p222, %p223
      %s226 = sadd.s32 %s225, 1
      %p229 = scmp.eq.s32.totalorder %s23, 1
      %p230 = scmp.ne.s32.totalorder %s225, %s227
      %p231 = scmp.eq.s32.totalorder %s23, 0
      %p232 = por %p230, %p231
      %p233 = scmp.ne.s32.totalorder %s225, %s227
      %p234 = scmp.eq.s32.totalorder %s28, 1
      %p235 = por %p233, %p234
      %p236 = scmp.ne.s32.totalorder %s227, %s228
      %p237 = scmp.eq.s32.totalorder %s28, 0
      %p238 = por %p236, %p237
      %p239 = scmp.ne.s32.totalorder %s227, %s228
      %p240 = scmp.eq.s32.totalorder %s29, 1
      %p241 = por %p239, %p240
      %p243 = scmp.ne.s32.totalorder %s228, %s242
      %p244 = scmp.eq.s32.totalorder %s29, 0
      %p245 = por %p243, %p244
      %s247 = sadd.s32 %s246, 1
      %p250 = scmp.eq.s32.totalorder %s23, 1
      %p251 = scmp.ne.s32.totalorder %s246, %s248
      %p252 = scmp.eq.s32.totalorder %s23, 0
      %p253 = por %p251, %p252
      %p254 = scmp.ne.s32.totalorder %s246, %s248
      %p255 = scmp.eq.s32.totalorder %s28, 1
      %p256 = por %p254, %p255
      %p257 = scmp.ne.s32.totalorder %s248, %s249
      %p258 = scmp.eq.s32.totalorder %s28, 0
      %p259 = por %p257, %p258
      %p260 = scmp.ne.s32.totalorder %s248, %s249
      %p261 = scmp.eq.s32.totalorder %s29, 1
      %p262 = por %p260, %p261
      %p264 = scmp.ne.s32.totalorder %s249, %s263
      %p265 = scmp.eq.s32.totalorder %s29, 0
      %p266 = por %p264, %p265
      %s268 = sadd.s32 %s267, 1
      %p271 = scmp.eq.s32.totalorder %s23, 1
      %p272 = scmp.ne.s32.totalorder %s267, %s269
      %p273 = scmp.eq.s32.totalorder %s23, 0
      %p274 = por %p272, %p273
      %p275 = scmp.ne.s32.totalorder %s267, %s269
      %p276 = scmp.eq.s32.totalorder %s28, 1
      %p277 = por %p275, %p276
      %p278 = scmp.ne.s32.totalorder %s269, %s270
      %p279 = scmp.eq.s32.totalorder %s28, 0
      %p280 = por %p278, %p279
      %p281 = scmp.ne.s32.totalorder %s269, %s270
      %p282 = scmp.eq.s32.totalorder %s29, 1
      %p283 = por %p281, %p282
      %p285 = scmp.ne.s32.totalorder %s270, %s284
      %p286 = scmp.eq.s32.totalorder %s29, 0
      %p287 = por %p285, %p286
      %s289 = sadd.s32 %s288, 1
      %p292 = scmp.eq.s32.totalorder %s23, 1
      %p293 = scmp.ne.s32.totalorder %s288, %s290
      %p294 = scmp.eq.s32.totalorder %s23, 0
      %p295 = por %p293, %p294
      %p296 = scmp.ne.s32.totalorder %s288, %s290
      %p297 = scmp.eq.s32.totalorder %s28, 1
      %p298 = por %p296, %p297
      %p299 = scmp.ne.s32.totalorder %s290, %s291
      %p300 = scmp.eq.s32.totalorder %s28, 0
      %p301 = por %p299, %p300
      %p302 = scmp.ne.s32.totalorder %s290, %s291
      %p303 = scmp.eq.s32.totalorder %s29, 1
      %p304 = por %p302, %p303
      %p306 = scmp.ne.s32.totalorder %s291, %s305
      %p307 = scmp.eq.s32.totalorder %s29, 0
      %p308 = por %p306, %p307
      %s310 = sadd.s32 %s309, 1
      %p313 = scmp.eq.s32.totalorder %s23, 1
      %p314 = scmp.ne.s32.totalorder %s309, %s311
      %p315 = scmp.eq.s32.totalorder %s23, 0
      %p316 = por %p314, %p315
      %p317 = scmp.ne.s32.totalorder %s309, %s311
      %p318 = scmp.eq.s32.totalorder %s28, 1
      %p319 = por %p317, %p318
      %p320 = scmp.ne.s32.totalorder %s311, %s312
      %p321 = scmp.eq.s32.totalorder %s28, 0
      %p322 = por %p320, %p321
      %p323 = scmp.ne.s32.totalorder %s311, %s312
      %p324 = scmp.eq.s32.totalorder %s29, 1
      %p325 = por %p323, %p324
      %p327 = scmp.ne.s32.totalorder %s312, %s326
      %p328 = scmp.eq.s32.totalorder %s29, 0
      %p329 = por %p327, %p328
      %s330 = ssub.s32 %s23, %s30
      %p331 = scmp.eq.s32.totalorder %s330, 0
      %s333 = sadd.s32 %s332, 1
      %s334 = scalar_select %p331, %s332, %s333
      %p337 = pneg %p331
      %p338 = scmp.eq.s32.totalorder %s23, 1
      %p339 = por %p337, %p338
      %p340 = scmp.ne.s32.totalorder %s332, %s335
      %p341 = scmp.eq.s32.totalorder %s23, 0
      %p342 = por %p340, %p341
      %p343 = scmp.ne.s32.totalorder %s332, %s335
      %p344 = scmp.eq.s32.totalorder %s28, 1
      %p345 = por %p343, %p344
      %p346 = scmp.ne.s32.totalorder %s335, %s336
      %p347 = scmp.eq.s32.totalorder %s28, 0
      %p348 = por %p346, %p347
      %p349 = scmp.ne.s32.totalorder %s335, %s336
      %p350 = scmp.eq.s32.totalorder %s29, 1
      %p351 = por %p349, %p350
      %p353 = scmp.ne.s32.totalorder %s336, %s352
      %p354 = scmp.eq.s32.totalorder %s29, 0
      %p355 = por %p353, %p354
      %p356 = scmp.le.s32.totalorder 1, %s23
      %p357 = scmp.lt.s32.totalorder %s23, 3
      %p358 = pnand %p356, %p357
      %p359 = pneg %p358
      // Predicated region
      $region9: #{autoencoder_forward.1} parent=5 // pred_check
        _
      $region10: #{autoencoder_forward.1} parent=5 // pred_check_branch
        %361 = sbr.rel (%p358) target = $region12
      $region11: #{autoencoder_forward.1} parent=5 // pred_region
        %s362 = ssub.s32 %s23, 1
        // Predicated region
        $region13: #{autoencoder_forward.1} parent=11 // pred_check
          %p363 = pneg %p70
        $region14: #{autoencoder_forward.1} parent=11 // pred_check_branch
          %365 = sbr.rel (%p363) target = $region16
        $region15: #{autoencoder_forward.1} parent=11 // pred_region
          _
        $region16: #{autoencoder_forward.1} parent=11 // pred_fallthru
          _
        // Predicated region
        $region17: #{autoencoder_forward.1} parent=11 // pred_check
          %p366 = pneg %p91
        $region18: #{autoencoder_forward.1} parent=11 // pred_check_branch
          %368 = sbr.rel (%p366) target = $region20
        $region19: #{autoencoder_forward.1} parent=11 // pred_region
          _
        $region20: #{autoencoder_forward.1} parent=11 // pred_fallthru
          _
        // Predicated region
        $region21: #{autoencoder_forward.1} parent=11 // pred_check
          %p369 = pneg %p112
        $region22: #{autoencoder_forward.1} parent=11 // pred_check_branch
          %371 = sbr.rel (%p369) target = $region24
        $region23: #{autoencoder_forward.1} parent=11 // pred_region
          _
        $region24: #{autoencoder_forward.1} parent=11 // pred_fallthru
          _
        // Predicated region
        $region25: #{autoencoder_forward.1} parent=11 // pred_check
          %p372 = pneg %p133
        $region26: #{autoencoder_forward.1} parent=11 // pred_check_branch
          %374 = sbr.rel (%p372) target = $region28
        $region27: #{autoencoder_forward.1} parent=11 // pred_region
          _
        $region28: #{autoencoder_forward.1} parent=11 // pred_fallthru
          _
        // Predicated region
        $region29: #{autoencoder_forward.1} parent=11 // pred_check
          %p375 = pneg %p154
        $region30: #{autoencoder_forward.1} parent=11 // pred_check_branch
          %377 = sbr.rel (%p375) target = $region32
        $region31: #{autoencoder_forward.1} parent=11 // pred_region
          _
        $region32: #{autoencoder_forward.1} parent=11 // pred_fallthru
          _
        // Predicated region
        $region33: #{autoencoder_forward.1} parent=11 // pred_check
          %p378 = pneg %p175
        $region34: #{autoencoder_forward.1} parent=11 // pred_check_branch
          %380 = sbr.rel (%p378) target = $region36
        $region35: #{autoencoder_forward.1} parent=11 // pred_region
          _
        $region36: #{autoencoder_forward.1} parent=11 // pred_fallthru
          _
        // Predicated region
        $region37: #{autoencoder_forward.1} parent=11 // pred_check
          %p381 = pneg %p196
        $region38: #{autoencoder_forward.1} parent=11 // pred_check_branch
          %383 = sbr.rel (%p381) target = $region40
        $region39: #{autoencoder_forward.1} parent=11 // pred_region
          _
        $region40: #{autoencoder_forward.1} parent=11 // pred_fallthru
          _
        // Predicated region
        $region41: #{autoencoder_forward.1} parent=11 // pred_check
          %p384 = pneg %p217
        $region42: #{autoencoder_forward.1} parent=11 // pred_check_branch
          %386 = sbr.rel (%p384) target = $region44
        $region43: #{autoencoder_forward.1} parent=11 // pred_region
          _
        $region44: #{autoencoder_forward.1} parent=11 // pred_fallthru
          _
        // Predicated region
        $region45: #{autoencoder_forward.1} parent=11 // pred_check
          %p387 = pneg %p238
        $region46: #{autoencoder_forward.1} parent=11 // pred_check_branch
          %389 = sbr.rel (%p387) target = $region48
        $region47: #{autoencoder_forward.1} parent=11 // pred_region
          _
        $region48: #{autoencoder_forward.1} parent=11 // pred_fallthru
          _
        // Predicated region
        $region49: #{autoencoder_forward.1} parent=11 // pred_check
          %p390 = pneg %p259
        $region50: #{autoencoder_forward.1} parent=11 // pred_check_branch
          %392 = sbr.rel (%p390) target = $region52
        $region51: #{autoencoder_forward.1} parent=11 // pred_region
          _
        $region52: #{autoencoder_forward.1} parent=11 // pred_fallthru
          _
        // Predicated region
        $region53: #{autoencoder_forward.1} parent=11 // pred_check
          %p393 = pneg %p280
        $region54: #{autoencoder_forward.1} parent=11 // pred_check_branch
          %395 = sbr.rel (%p393) target = $region56
        $region55: #{autoencoder_forward.1} parent=11 // pred_region
          _
        $region56: #{autoencoder_forward.1} parent=11 // pred_fallthru
          _
        // Predicated region
        $region57: #{autoencoder_forward.1} parent=11 // pred_check
          %p396 = pneg %p301
        $region58: #{autoencoder_forward.1} parent=11 // pred_check_branch
          %398 = sbr.rel (%p396) target = $region60
        $region59: #{autoencoder_forward.1} parent=11 // pred_region
          _
        $region60: #{autoencoder_forward.1} parent=11 // pred_fallthru
          _
        // Predicated region
        $region61: #{autoencoder_forward.1} parent=11 // pred_check
          %p399 = pneg %p322
        $region62: #{autoencoder_forward.1} parent=11 // pred_check_branch
          %401 = sbr.rel (%p399) target = $region64
        $region63: #{autoencoder_forward.1} parent=11 // pred_region
          _
        $region64: #{autoencoder_forward.1} parent=11 // pred_fallthru
          _
      $region12: #{autoencoder_forward.1} parent=5 // pred_fallthru
        _
      %p402 = scmp.lt.s32.totalorder %s23, 2
      // Predicated region
      $region65: #{autoencoder_forward.1} parent=5 // pred_check
        %p403 = pneg %p402
      $region66: #{autoencoder_forward.1} parent=5 // pred_check_branch
        %405 = sbr.rel (%p403) target = $region68
      $region67: #{autoencoder_forward.1} parent=5 // pred_region
        // Predicated region
        $region69: #{autoencoder_forward.1} parent=67 // pred_check
          %p406 = pneg %p43
        $region70: #{autoencoder_forward.1} parent=67 // pred_check_branch
          %408 = sbr.rel (%p406) target = $region72
        $region71: #{autoencoder_forward.1} parent=67 // pred_region
          %p409 = scmp.lt.s32.totalorder %s23, 1
          %s410 = scalar_select %p409, %s23, 1
          %s411 = smul.addr %s410, 7
          %s412 = smul.addr %s411, 4
          %s413 = scalar_lea.vmem %s0, %s412
        $region72: #{autoencoder_forward.1} parent=67 // pred_fallthru
          _
      $region68: #{autoencoder_forward.1} parent=5 // pred_fallthru
        _
      %p414 = scmp.le.s32.totalorder 1, %s23
      %p415 = scmp.lt.s32.totalorder %s23, 3
      %p416 = pnand %p414, %p415
      %p417 = pneg %p416
      // Predicated region
      $region73: #{autoencoder_forward.1} parent=5 // pred_check
        _
      $region74: #{autoencoder_forward.1} parent=5 // pred_check_branch
        %419 = sbr.rel (%p416) target = $region76
      $region75: #{autoencoder_forward.1} parent=5 // pred_region
        %s420 = ssub.s32 %s23, 1
        %p421 = scmp.lt.s32.totalorder %s28, 1
        %s422 = scalar_select %p421, %s28, 1
        %s423 = smul.addr %s422, 7
        %s424 = smul.addr %s423, 4
        %s425 = scalar_lea.vmem %s0, %s424
        %p426 = pneg %p49
        %p427 = pneg %p46
        %p428 = pneg %p70
        %p429 = pneg %p67
        %p430 = pneg %p91
        %p431 = pneg %p88
        %p432 = pneg %p112
        %p433 = pneg %p109
        %p434 = pneg %p133
        %p435 = pneg %p130
        %p436 = pneg %p154
        %p437 = pneg %p151
        %p438 = pneg %p175
        %p439 = pneg %p172
        %p440 = pneg %p196
        %p441 = pneg %p193
        %p442 = pneg %p217
        %p443 = pneg %p214
        %p444 = pneg %p238
        %p445 = pneg %p235
        %p446 = pneg %p259
        %p447 = pneg %p256
        %p448 = pneg %p280
        %p449 = pneg %p277
        %p450 = pneg %p301
        %p451 = pneg %p298
        %p452 = pneg %p322
        %p453 = pneg %p319
        %p454 = pneg %p348
        %p455 = pneg %p345
        %s456 = sand.u32 %s335, 1
        %s457 = scalar_lea.sflag [#allocation3], %s456
        %s458 = sand.u32 %s335, 1
        %s459 = smul.addr %s458, 56
        %s460 = scalar_lea.vmem [#allocation2], %s459
        %p461 = scmp.lt.s32.totalorder %s28, 1
        %s462 = scalar_select %p461, %s28, 1
        %s463 = smul.addr %s462, 7
        %s464 = smul.addr %s463, 4
        %s465 = scalar_lea.vmem %s0, %s464
        %v467 = vld [vmem:[%s465] sm:$0xff]
        %v468 = vld [vmem:[%s465 + $0x8] sm:$0xff]
        %v469 = vld [vmem:[%s465 + $0x10] sm:$0xff]
        %v470 = vld [vmem:[%s465 + $0x18] sm:$0xf]
        %v471 = vld [vmem:[%s1] sm:$0xff]
        %v472 = vld [vmem:[%s1 + $0x8] sm:$0xff]
        %v473 = vld [vmem:[%s1 + $0x10] sm:$0xff]
        %v474 = vld [vmem:[%s1 + $0x18] sm:$0xff]
        %v475 = vld [vmem:[%s1 + $0x20] sm:$0xff]
        %v476 = vld [vmem:[%s1 + $0x28] sm:$0xff]
        %v477 = vld [vmem:[%s1 + $0x30] sm:$0xff]
        %v478 = vld [vmem:[%s1 + $0x38] sm:$0xff]
        %v479 = vld [vmem:[%s1 + $0x40] sm:$0xff]
        %v480 = vld [vmem:[%s1 + $0x48] sm:$0xff]
        %v481 = vld [vmem:[%s1 + $0x50] sm:$0xff]
        %v482 = vld [vmem:[%s1 + $0x58] sm:$0xff]
        %v483 = vld [vmem:[%s1 + $0x60] sm:$0xff]
        %v484 = vld [vmem:[%s1 + $0x68] sm:$0xff]
        %v485 = vld [vmem:[%s1 + $0x70] sm:$0xff]
        %v486 = vld [vmem:[%s1 + $0x78] sm:$0xff]
        %v487 = vld [vmem:[%s1 + $0x80] sm:$0xff]
        %v488 = vld [vmem:[%s1 + $0x88] sm:$0xff]
        %v489 = vld [vmem:[%s1 + $0x90] sm:$0xff]
        %v490 = vld [vmem:[%s1 + $0x98] sm:$0xff]
        %v491 = vld [vmem:[%s1 + $0xa0] sm:$0xff]
        %v492 = vld [vmem:[%s1 + $0xa8] sm:$0xff]
        %v493 = vld [vmem:[%s1 + $0xb0] sm:$0xff]
        %v494 = vld [vmem:[%s1 + $0xb8] sm:$0xff]
        %v495 = vld [vmem:[%s1 + $0xc0] sm:$0xff]
        %v496 = vld [vmem:[%s1 + $0xc8] sm:$0xff]
        %v497 = vld [vmem:[%s1 + $0xd0] sm:$0xff]
        %v498 = vld [vmem:[%s1 + $0xd8] sm:$0xff]
        %v499 = vld [vmem:[%s1 + $0xe0] sm:$0xff]
        %v500 = vld [vmem:[%s1 + $0xe8] sm:$0xff]
        %v501 = vld [vmem:[%s1 + $0xf0] sm:$0xff]
        %v502 = vld [vmem:[%s1 + $0xf8] sm:$0xff]
        %v503 = vld [vmem:[%s1 + $0x100] sm:$0xff]
        %v504 = vld [vmem:[%s1 + $0x108] sm:$0xff]
        %v505 = vld [vmem:[%s1 + $0x110] sm:$0xff]
        %v506 = vld [vmem:[%s1 + $0x118] sm:$0xff]
        %v507 = vld [vmem:[%s1 + $0x120] sm:$0xff]
        %v508 = vld [vmem:[%s1 + $0x128] sm:$0xff]
        %v509 = vld [vmem:[%s1 + $0x130] sm:$0xff]
        %v510 = vld [vmem:[%s1 + $0x138] sm:$0xff]
        %v511 = vld [vmem:[%s1 + $0x140] sm:$0xff]
        %v512 = vld [vmem:[%s1 + $0x148] sm:$0xff]
        %v513 = vld [vmem:[%s1 + $0x150] sm:$0xff]
        %v514 = vld [vmem:[%s1 + $0x158] sm:$0xff]
        %v515 = vld [vmem:[%s1 + $0x160] sm:$0xff]
        %v516 = vld [vmem:[%s1 + $0x168] sm:$0xff]
        %v517 = vld [vmem:[%s1 + $0x170] sm:$0xff]
        %v518 = vld [vmem:[%s1 + $0x178] sm:$0xff]
        %v519 = vld [vmem:[%s1 + $0x180] sm:$0xff]
        %v520 = vld [vmem:[%s1 + $0x188] sm:$0xff]
        %v521 = vld [vmem:[%s1 + $0x190] sm:$0xff]
        %v522 = vld [vmem:[%s1 + $0x198] sm:$0xff]
        %v523 = vld [vmem:[%s1 + $0x1a0] sm:$0xff]
        %v524 = vld [vmem:[%s1 + $0x1a8] sm:$0xff]
        %v525 = vld [vmem:[%s1 + $0x1b0] sm:$0xff]
        %v526 = vld [vmem:[%s1 + $0x1b8] sm:$0xff]
        %v527 = vld [vmem:[%s1 + $0x1c0] sm:$0xff]
        %v528 = vld [vmem:[%s1 + $0x1c8] sm:$0xff]
        %v529 = vld [vmem:[%s1 + $0x1d0] sm:$0xff]
        %v530 = vld [vmem:[%s1 + $0x1d8] sm:$0xff]
        %v531 = vld [vmem:[%s1 + $0x1e0] sm:$0xff]
        %v532 = vld [vmem:[%s1 + $0x1e8] sm:$0xff]
        %v533 = vld [vmem:[%s1 + $0x1f0] sm:$0xff]
        %v534 = vld [vmem:[%s1 + $0x1f8] sm:$0xff]
        %v535 = vld [vmem:[%s1 + $0x200] sm:$0xff]
        %v536 = vld [vmem:[%s1 + $0x208] sm:$0xff]
        %v537 = vld [vmem:[%s1 + $0x210] sm:$0xff]
        %v538 = vld [vmem:[%s1 + $0x218] sm:$0xff]
        %v539 = vld [vmem:[%s1 + $0x220] sm:$0xff]
        %v540 = vld [vmem:[%s1 + $0x228] sm:$0xff]
        %v541 = vld [vmem:[%s1 + $0x230] sm:$0xff]
        %v542 = vld [vmem:[%s1 + $0x238] sm:$0xff]
        %v543 = vld [vmem:[%s1 + $0x240] sm:$0xff]
        %v544 = vld [vmem:[%s1 + $0x248] sm:$0xff]
        %v545 = vld [vmem:[%s1 + $0x250] sm:$0xff]
        %v546 = vld [vmem:[%s1 + $0x258] sm:$0xff]
        %v547 = vld [vmem:[%s1 + $0x260] sm:$0xff]
        %v548 = vld [vmem:[%s1 + $0x268] sm:$0xff]
        %v549 = vld [vmem:[%s1 + $0x270] sm:$0xff]
        %v550 = vld [vmem:[%s1 + $0x278] sm:$0xff]
        %v551 = vld [vmem:[%s1 + $0x280] sm:$0xff]
        %v552 = vld [vmem:[%s1 + $0x288] sm:$0xff]
        %v553 = vld [vmem:[%s1 + $0x290] sm:$0xff]
        %v554 = vld [vmem:[%s1 + $0x298] sm:$0xff]
        %v555 = vld [vmem:[%s1 + $0x2a0] sm:$0xff]
        %v556 = vld [vmem:[%s1 + $0x2a8] sm:$0xff]
        %v557 = vld [vmem:[%s1 + $0x2b0] sm:$0xff]
        %v558 = vld [vmem:[%s1 + $0x2b8] sm:$0xff]
        %v559 = vld [vmem:[%s1 + $0x2c0] sm:$0xff]
        %v560 = vld [vmem:[%s1 + $0x2c8] sm:$0xff]
        %v561 = vld [vmem:[%s1 + $0x2d0] sm:$0xff]
        %v562 = vld [vmem:[%s1 + $0x2d8] sm:$0xff]
        %v563 = vld [vmem:[%s1 + $0x2e0] sm:$0xff]
        %v564 = vld [vmem:[%s1 + $0x2e8] sm:$0xff]
        %v565 = vld [vmem:[%s1 + $0x2f0] sm:$0xff]
        %v566 = vld [vmem:[%s1 + $0x2f8] sm:$0xff]
        %v567 = vld [vmem:[%s1 + $0x300] sm:$0xff]
        %v568 = vld [vmem:[%s1 + $0x308] sm:$0xff]
        %v569 = vld [vmem:[%s1 + $0x310] sm:$0xff]
        %v570 = vld [vmem:[%s1 + $0x318] sm:$0xff]
        %v571 = vld [vmem:[%s1 + $0x320] sm:$0xff]
        %v572 = vld [vmem:[%s1 + $0x328] sm:$0xff]
        %v573 = vld [vmem:[%s1 + $0x330] sm:$0xff]
        %v574 = vld [vmem:[%s1 + $0x338] sm:$0xff]
        %v575 = vld [vmem:[%s1 + $0x340] sm:$0xff]
        %v576 = vld [vmem:[%s1 + $0x348] sm:$0xff]
        %v577 = vld [vmem:[%s1 + $0x350] sm:$0xff]
        %v578 = vld [vmem:[%s1 + $0x358] sm:$0xff]
        %v579 = vld [vmem:[%s1 + $0x360] sm:$0xff]
        %v580 = vld [vmem:[%s1 + $0x368] sm:$0xff]
        %v581 = vld [vmem:[%s1 + $0x370] sm:$0xff]
        %v582 = vld [vmem:[%s1 + $0x378] sm:$0xff]
        %v583 = vld [vmem:[%s1 + $0x380] sm:$0xff]
        %v584 = vld [vmem:[%s1 + $0x388] sm:$0xff]
        %v585 = vld [vmem:[%s1 + $0x390] sm:$0xff]
        %v586 = vld [vmem:[%s1 + $0x398] sm:$0xff]
        %v587 = vld [vmem:[%s1 + $0x3a0] sm:$0xff]
        %v588 = vld [vmem:[%s1 + $0x3a8] sm:$0xff]
        %v589 = vld [vmem:[%s1 + $0x3b0] sm:$0xff]
        %v590 = vld [vmem:[%s1 + $0x3b8] sm:$0xff]
        %v591 = vld [vmem:[%s1 + $0x3c0] sm:$0xff]
        %v592 = vld [vmem:[%s1 + $0x3c8] sm:$0xff]
        %v593 = vld [vmem:[%s1 + $0x3d0] sm:$0xff]
        %v594 = vld [vmem:[%s1 + $0x3d8] sm:$0xff]
        %v595 = vld [vmem:[%s1 + $0x3e0] sm:$0xff]
        %v596 = vld [vmem:[%s1 + $0x3e8] sm:$0xff]
        %v597 = vld [vmem:[%s1 + $0x3f0] sm:$0xff]
        %v598 = vld [vmem:[%s1 + $0x3f8] sm:$0xff]
        %v599 = vld [vmem:[%s1 + $0x400] sm:$0xff]
        %v600 = vld [vmem:[%s1 + $0x408] sm:$0xff]
        %v601 = vld [vmem:[%s1 + $0x410] sm:$0xff]
        %v602 = vld [vmem:[%s1 + $0x418] sm:$0xff]
        %v603 = vld [vmem:[%s1 + $0x420] sm:$0xff]
        %v604 = vld [vmem:[%s1 + $0x428] sm:$0xff]
        %v605 = vld [vmem:[%s1 + $0x430] sm:$0xff]
        %v606 = vld [vmem:[%s1 + $0x438] sm:$0xff]
        %v607 = vld [vmem:[%s1 + $0x440] sm:$0xff]
        %v608 = vld [vmem:[%s1 + $0x448] sm:$0xff]
        %v609 = vld [vmem:[%s1 + $0x450] sm:$0xff]
        %v610 = vld [vmem:[%s1 + $0x458] sm:$0xff]
        %v611 = vld [vmem:[%s1 + $0x460] sm:$0xff]
        %v612 = vld [vmem:[%s1 + $0x468] sm:$0xff]
        %v613 = vld [vmem:[%s1 + $0x470] sm:$0xff]
        %v614 = vld [vmem:[%s1 + $0x478] sm:$0xff]
        %v615 = vld [vmem:[%s1 + $0x480] sm:$0xff]
        %v616 = vld [vmem:[%s1 + $0x488] sm:$0xff]
        %v617 = vld [vmem:[%s1 + $0x490] sm:$0xff]
        %v618 = vld [vmem:[%s1 + $0x498] sm:$0xff]
        %v619 = vld [vmem:[%s1 + $0x4a0] sm:$0xff]
        %v620 = vld [vmem:[%s1 + $0x4a8] sm:$0xff]
        %v621 = vld [vmem:[%s1 + $0x4b0] sm:$0xff]
        %v622 = vld [vmem:[%s1 + $0x4b8] sm:$0xff]
        %v623 = vld [vmem:[%s1 + $0x4c0] sm:$0xff]
        %v624 = vld [vmem:[%s1 + $0x4c8] sm:$0xff]
        %v625 = vld [vmem:[%s1 + $0x4d0] sm:$0xff]
        %v626 = vld [vmem:[%s1 + $0x4d8] sm:$0xff]
        %v627 = vld [vmem:[%s1 + $0x4e0] sm:$0xff]
        %v628 = vld [vmem:[%s1 + $0x4e8] sm:$0xff]
        %v629 = vld [vmem:[%s1 + $0x4f0] sm:$0xff]
        %v630 = vld [vmem:[%s1 + $0x4f8] sm:$0xff]
        %v631 = vld [vmem:[%s1 + $0x500] sm:$0xff]
        %v632 = vld [vmem:[%s1 + $0x508] sm:$0xff]
        %v633 = vld [vmem:[%s1 + $0x510] sm:$0xff]
        %v634 = vld [vmem:[%s1 + $0x518] sm:$0xff]
        %v635 = vld [vmem:[%s1 + $0x520] sm:$0xff]
        %v636 = vld [vmem:[%s1 + $0x528] sm:$0xff]
        %v637 = vld [vmem:[%s1 + $0x530] sm:$0xff]
        %v638 = vld [vmem:[%s1 + $0x538] sm:$0xff]
        %v639 = vld [vmem:[%s1 + $0x540] sm:$0xff]
        %v640 = vld [vmem:[%s1 + $0x548] sm:$0xff]
        %v641 = vld [vmem:[%s1 + $0x550] sm:$0xff]
        %v642 = vld [vmem:[%s1 + $0x558] sm:$0xff]
        %v643 = vld [vmem:[%s1 + $0x560] sm:$0xff]
        %v644 = vld [vmem:[%s1 + $0x568] sm:$0xff]
        %v645 = vld [vmem:[%s1 + $0x570] sm:$0xff]
        %v646 = vld [vmem:[%s1 + $0x578] sm:$0xff]
        %v647 = vld [vmem:[%s1 + $0x580] sm:$0xff]
        %v648 = vld [vmem:[%s1 + $0x588] sm:$0xff]
        %v649 = vld [vmem:[%s1 + $0x590] sm:$0xff]
        %v650 = vld [vmem:[%s1 + $0x598] sm:$0xff]
        %v651 = vld [vmem:[%s1 + $0x5a0] sm:$0xff]
        %v652 = vld [vmem:[%s1 + $0x5a8] sm:$0xff]
        %v653 = vld [vmem:[%s1 + $0x5b0] sm:$0xff]
        %v654 = vld [vmem:[%s1 + $0x5b8] sm:$0xff]
        %v655 = vld [vmem:[%s1 + $0x5c0] sm:$0xff]
        %v656 = vld [vmem:[%s1 + $0x5c8] sm:$0xff]
        %v657 = vld [vmem:[%s1 + $0x5d0] sm:$0xff]
        %v658 = vld [vmem:[%s1 + $0x5d8] sm:$0xff]
        %v659 = vld [vmem:[%s1 + $0x5e0] sm:$0xff]
        %v660 = vld [vmem:[%s1 + $0x5e8] sm:$0xff]
        %v661 = vld [vmem:[%s1 + $0x5f0] sm:$0xff]
        %v662 = vld [vmem:[%s1 + $0x5f8] sm:$0xff]
        %v663 = vld [vmem:[%s1 + $0x600] sm:$0xff]
        %v664 = vld [vmem:[%s1 + $0x608] sm:$0xff]
        %v665 = vld [vmem:[%s1 + $0x610] sm:$0xff]
        %v666 = vld [vmem:[%s1 + $0x618] sm:$0xff]
        %v667 = vld [vmem:[%s1 + $0x620] sm:$0xff]
        %v668 = vld [vmem:[%s1 + $0x628] sm:$0xff]
        %v669 = vld [vmem:[%s1 + $0x630] sm:$0xff]
        %v670 = vld [vmem:[%s1 + $0x638] sm:$0xff]
        %v671 = vld [vmem:[%s1 + $0x640] sm:$0xff]
        %v672 = vld [vmem:[%s1 + $0x648] sm:$0xff]
        %v673 = vld [vmem:[%s1 + $0x650] sm:$0xff]
        %v674 = vld [vmem:[%s1 + $0x658] sm:$0xff]
        %v675 = vld [vmem:[%s1 + $0x660] sm:$0xff]
        %v676 = vld [vmem:[%s1 + $0x668] sm:$0xff]
        %v677 = vld [vmem:[%s1 + $0x670] sm:$0xff]
        %v678 = vld [vmem:[%s1 + $0x678] sm:$0xff]
        %v679 = vld [vmem:[%s1 + $0x680] sm:$0xff]
        %v680 = vld [vmem:[%s1 + $0x688] sm:$0xff]
        %v681 = vld [vmem:[%s1 + $0x690] sm:$0xff]
        %v682 = vld [vmem:[%s1 + $0x698] sm:$0xff]
        %v683 = vld [vmem:[%s1 + $0x6a0] sm:$0xff]
        %v684 = vld [vmem:[%s1 + $0x6a8] sm:$0xff]
        %v685 = vld [vmem:[%s1 + $0x6b0] sm:$0xff]
        %v686 = vld [vmem:[%s1 + $0x6b8] sm:$0xff]
        %v687 = vld [vmem:[%s1 + $0x6c0] sm:$0xff]
        %v688 = vld [vmem:[%s1 + $0x6c8] sm:$0xff]
        %v689 = vld [vmem:[%s1 + $0x6d0] sm:$0xff]
        %v690 = vld [vmem:[%s1 + $0x6d8] sm:$0xff]
        %v691 = vld [vmem:[%s1 + $0x6e0] sm:$0xff]
        %v692 = vld [vmem:[%s1 + $0x6e8] sm:$0xff]
        %v693 = vld [vmem:[%s1 + $0x6f0] sm:$0xff]
        %v694 = vld [vmem:[%s1 + $0x6f8] sm:$0xff]
        %v695 = vld [vmem:[%s13] ss:$8 sm:$0xf]
        %v697 = vlaneseq
        %v698 = vshrl.u32 %v697, 7
        %v699 = vsub.s32 0, %v698
        %v700 = vrot.slane %v695, %v699
        %v701 = vlaneseq
        %v702 = vshrl.u32 %v701, 7
        %v703 = vsub.s32 1, %v702
        %v704 = vrot.slane %v695, %v703
        %v705 = vlaneseq
        %v706 = vshrl.u32 %v705, 7
        %v707 = vsub.s32 2, %v706
        %v708 = vrot.slane %v695, %v707
        %v709 = vlaneseq
        %v710 = vshrl.u32 %v709, 7
        %v711 = vsub.s32 3, %v710
        %v712 = vrot.slane %v695, %v711
        %v721 = vunpack.c.l.b16 %v467
        %v722 = vunpack.c.h.b16 %v467
        %v723 = vunpack.c.l.b16 %v468
        %v724 = vunpack.c.h.b16 %v468
        %v725 = vunpack.c.l.b16 %v469
        %v726 = vunpack.c.h.b16 %v469
        %v727 = vunpack.c.l.b16 %v470
        %v728 = vpack.c.b16 %v721, %v721
        %v729 = vpack.c.b16 %v722, %v722
        %v730 = vpack.c.b16 %v723, %v723
        %v731 = vpack.c.b16 %v724, %v724
        %v732 = vpack.c.b16 %v725, %v725
        %v733 = vpack.c.b16 %v726, %v726
        %v734 = vpack.c.b16 %v727, %v727
        %v966 = vunpack.c.l.b16 %v471
        %v967 = vunpack.c.h.b16 %v471
        %v968 = vunpack.c.l.b16 %v472
        %v969 = vunpack.c.h.b16 %v472
        %v970 = vunpack.c.l.b16 %v473
        %v971 = vunpack.c.h.b16 %v473
        %v972 = vunpack.c.l.b16 %v474
        %v973 = vunpack.c.h.b16 %v474
        %v974 = vunpack.c.l.b16 %v475
        %v975 = vunpack.c.h.b16 %v475
        %v976 = vunpack.c.l.b16 %v476
        %v977 = vunpack.c.h.b16 %v476
        %v978 = vunpack.c.l.b16 %v477
        %v979 = vunpack.c.h.b16 %v477
        %v980 = vunpack.c.l.b16 %v478
        %v981 = vunpack.c.h.b16 %v478
        %v982 = vunpack.c.l.b16 %v479
        %v983 = vunpack.c.h.b16 %v479
        %v984 = vunpack.c.l.b16 %v480
        %v985 = vunpack.c.h.b16 %v480
        %v986 = vunpack.c.l.b16 %v481
        %v987 = vunpack.c.h.b16 %v481
        %v988 = vunpack.c.l.b16 %v482
        %v989 = vunpack.c.h.b16 %v482
        %v990 = vunpack.c.l.b16 %v483
        %v991 = vunpack.c.h.b16 %v483
        %v992 = vunpack.c.l.b16 %v484
        %v993 = vunpack.c.h.b16 %v484
        %v994 = vunpack.c.l.b16 %v485
        %v995 = vunpack.c.h.b16 %v485
        %v996 = vunpack.c.l.b16 %v486
        %v997 = vunpack.c.h.b16 %v486
        %v998 = vunpack.c.l.b16 %v487
        %v999 = vunpack.c.h.b16 %v487
        %v1000 = vunpack.c.l.b16 %v488
        %v1001 = vunpack.c.h.b16 %v488
        %v1002 = vunpack.c.l.b16 %v489
        %v1003 = vunpack.c.h.b16 %v489
        %v1004 = vunpack.c.l.b16 %v490
        %v1005 = vunpack.c.h.b16 %v490
        %v1006 = vunpack.c.l.b16 %v491
        %v1007 = vunpack.c.h.b16 %v491
        %v1008 = vunpack.c.l.b16 %v492
        %v1009 = vunpack.c.h.b16 %v492
        %v1010 = vunpack.c.l.b16 %v493
        %v1011 = vunpack.c.h.b16 %v493
        %v1012 = vunpack.c.l.b16 %v494
        %v1013 = vunpack.c.h.b16 %v494
        %v1014 = vunpack.c.l.b16 %v495
        %v1015 = vunpack.c.h.b16 %v495
        %v1016 = vunpack.c.l.b16 %v496
        %v1017 = vunpack.c.h.b16 %v496
        %v1018 = vunpack.c.l.b16 %v497
        %v1019 = vunpack.c.h.b16 %v497
        %v1020 = vunpack.c.l.b16 %v498
        %v1021 = vunpack.c.h.b16 %v498
        %v1022 = vunpack.c.l.b16 %v499
        %v1023 = vunpack.c.h.b16 %v499
        %v1024 = vunpack.c.l.b16 %v500
        %v1025 = vunpack.c.h.b16 %v500
        %v1026 = vunpack.c.l.b16 %v501
        %v1027 = vunpack.c.h.b16 %v501
        %v1028 = vunpack.c.l.b16 %v502
        %v1029 = vunpack.c.h.b16 %v502
        %v1030 = vunpack.c.l.b16 %v503
        %v1031 = vunpack.c.h.b16 %v503
        %v1032 = vunpack.c.l.b16 %v504
        %v1033 = vunpack.c.h.b16 %v504
        %v1034 = vunpack.c.l.b16 %v505
        %v1035 = vunpack.c.h.b16 %v505
        %v1036 = vunpack.c.l.b16 %v506
        %v1037 = vunpack.c.h.b16 %v506
        %v1038 = vunpack.c.l.b16 %v507
        %v1039 = vunpack.c.h.b16 %v507
        %v1040 = vunpack.c.l.b16 %v508
        %v1041 = vunpack.c.h.b16 %v508
        %v1042 = vunpack.c.l.b16 %v509
        %v1043 = vunpack.c.h.b16 %v509
        %v1044 = vunpack.c.l.b16 %v510
        %v1045 = vunpack.c.h.b16 %v510
        %v1046 = vunpack.c.l.b16 %v511
        %v1047 = vunpack.c.h.b16 %v511
        %v1048 = vunpack.c.l.b16 %v512
        %v1049 = vunpack.c.h.b16 %v512
        %v1050 = vunpack.c.l.b16 %v513
        %v1051 = vunpack.c.h.b16 %v513
        %v1052 = vunpack.c.l.b16 %v514
        %v1053 = vunpack.c.h.b16 %v514
        %v1054 = vunpack.c.l.b16 %v515
        %v1055 = vunpack.c.h.b16 %v515
        %v1056 = vunpack.c.l.b16 %v516
        %v1057 = vunpack.c.h.b16 %v516
        %v1058 = vunpack.c.l.b16 %v517
        %v1059 = vunpack.c.h.b16 %v517
        %v1060 = vunpack.c.l.b16 %v518
        %v1061 = vunpack.c.h.b16 %v518
        %v1062 = vunpack.c.l.b16 %v519
        %v1063 = vunpack.c.h.b16 %v519
        %v1064 = vunpack.c.l.b16 %v520
        %v1065 = vunpack.c.h.b16 %v520
        %v1066 = vunpack.c.l.b16 %v521
        %v1067 = vunpack.c.h.b16 %v521
        %v1068 = vunpack.c.l.b16 %v522
        %v1069 = vunpack.c.h.b16 %v522
        %v1070 = vunpack.c.l.b16 %v523
        %v1071 = vunpack.c.h.b16 %v523
        %v1072 = vunpack.c.l.b16 %v524
        %v1073 = vunpack.c.h.b16 %v524
        %v1074 = vunpack.c.l.b16 %v525
        %v1075 = vunpack.c.h.b16 %v525
        %v1076 = vunpack.c.l.b16 %v526
        %v1077 = vunpack.c.h.b16 %v526
        %v1078 = vunpack.c.l.b16 %v527
        %v1079 = vunpack.c.h.b16 %v527
        %v1080 = vunpack.c.l.b16 %v528
        %v1081 = vunpack.c.h.b16 %v528
        %v1082 = vunpack.c.l.b16 %v529
        %v1083 = vunpack.c.h.b16 %v529
        %v1084 = vunpack.c.l.b16 %v530
        %v1085 = vunpack.c.h.b16 %v530
        %v1086 = vunpack.c.l.b16 %v531
        %v1087 = vunpack.c.h.b16 %v531
        %v1088 = vunpack.c.l.b16 %v532
        %v1089 = vunpack.c.h.b16 %v532
        %v1090 = vunpack.c.l.b16 %v533
        %v1091 = vunpack.c.h.b16 %v533
        %v1092 = vunpack.c.l.b16 %v534
        %v1093 = vunpack.c.h.b16 %v534
        %v1094 = vunpack.c.l.b16 %v535
        %v1095 = vunpack.c.h.b16 %v535
        %v1096 = vunpack.c.l.b16 %v536
        %v1097 = vunpack.c.h.b16 %v536
        %v1098 = vunpack.c.l.b16 %v537
        %v1099 = vunpack.c.h.b16 %v537
        %v1100 = vunpack.c.l.b16 %v538
        %v1101 = vunpack.c.h.b16 %v538
        %v1102 = vunpack.c.l.b16 %v539
        %v1103 = vunpack.c.h.b16 %v539
        %v1104 = vunpack.c.l.b16 %v540
        %v1105 = vunpack.c.h.b16 %v540
        %v1106 = vunpack.c.l.b16 %v541
        %v1107 = vunpack.c.h.b16 %v541
        %v1108 = vunpack.c.l.b16 %v542
        %v1109 = vunpack.c.h.b16 %v542
        %v1110 = vunpack.c.l.b16 %v543
        %v1111 = vunpack.c.h.b16 %v543
        %v1112 = vunpack.c.l.b16 %v544
        %v1113 = vunpack.c.h.b16 %v544
        %v1114 = vunpack.c.l.b16 %v545
        %v1115 = vunpack.c.h.b16 %v545
        %v1116 = vunpack.c.l.b16 %v546
        %v1117 = vunpack.c.h.b16 %v546
        %v1118 = vunpack.c.l.b16 %v547
        %v1119 = vunpack.c.h.b16 %v547
        %v1120 = vunpack.c.l.b16 %v548
        %v1121 = vunpack.c.h.b16 %v548
        %v1122 = vunpack.c.l.b16 %v549
        %v1123 = vunpack.c.h.b16 %v549
        %v1124 = vunpack.c.l.b16 %v550
        %v1125 = vunpack.c.h.b16 %v550
        %v1126 = vunpack.c.l.b16 %v551
        %v1127 = vunpack.c.h.b16 %v551
        %v1128 = vunpack.c.l.b16 %v552
        %v1129 = vunpack.c.h.b16 %v552
        %v1130 = vunpack.c.l.b16 %v553
        %v1131 = vunpack.c.h.b16 %v553
        %v1132 = vunpack.c.l.b16 %v554
        %v1133 = vunpack.c.h.b16 %v554
        %v1134 = vunpack.c.l.b16 %v555
        %v1135 = vunpack.c.h.b16 %v555
        %v1136 = vunpack.c.l.b16 %v556
        %v1137 = vunpack.c.h.b16 %v556
        %v1138 = vunpack.c.l.b16 %v557
        %v1139 = vunpack.c.h.b16 %v557
        %v1140 = vunpack.c.l.b16 %v558
        %v1141 = vunpack.c.h.b16 %v558
        %v1142 = vunpack.c.l.b16 %v559
        %v1143 = vunpack.c.h.b16 %v559
        %v1144 = vunpack.c.l.b16 %v560
        %v1145 = vunpack.c.h.b16 %v560
        %v1146 = vunpack.c.l.b16 %v561
        %v1147 = vunpack.c.h.b16 %v561
        %v1148 = vunpack.c.l.b16 %v562
        %v1149 = vunpack.c.h.b16 %v562
        %v1150 = vunpack.c.l.b16 %v563
        %v1151 = vunpack.c.h.b16 %v563
        %v1152 = vunpack.c.l.b16 %v564
        %v1153 = vunpack.c.h.b16 %v564
        %v1154 = vunpack.c.l.b16 %v565
        %v1155 = vunpack.c.h.b16 %v565
        %v1156 = vunpack.c.l.b16 %v566
        %v1157 = vunpack.c.h.b16 %v566
        %v1158 = vunpack.c.l.b16 %v567
        %v1159 = vunpack.c.h.b16 %v567
        %v1160 = vunpack.c.l.b16 %v568
        %v1161 = vunpack.c.h.b16 %v568
        %v1162 = vunpack.c.l.b16 %v569
        %v1163 = vunpack.c.h.b16 %v569
        %v1164 = vunpack.c.l.b16 %v570
        %v1165 = vunpack.c.h.b16 %v570
        %v1166 = vunpack.c.l.b16 %v571
        %v1167 = vunpack.c.h.b16 %v571
        %v1168 = vunpack.c.l.b16 %v572
        %v1169 = vunpack.c.h.b16 %v572
        %v1170 = vunpack.c.l.b16 %v573
        %v1171 = vunpack.c.h.b16 %v573
        %v1172 = vunpack.c.l.b16 %v574
        %v1173 = vunpack.c.h.b16 %v574
        %v1174 = vunpack.c.l.b16 %v575
        %v1175 = vunpack.c.h.b16 %v575
        %v1176 = vunpack.c.l.b16 %v576
        %v1177 = vunpack.c.h.b16 %v576
        %v1178 = vunpack.c.l.b16 %v577
        %v1179 = vunpack.c.h.b16 %v577
        %v1180 = vunpack.c.l.b16 %v578
        %v1181 = vunpack.c.h.b16 %v578
        %v1182 = vunpack.c.l.b16 %v579
        %v1183 = vunpack.c.h.b16 %v579
        %v1184 = vunpack.c.l.b16 %v580
        %v1185 = vunpack.c.h.b16 %v580
        %v1186 = vunpack.c.l.b16 %v581
        %v1187 = vunpack.c.h.b16 %v581
        %v1188 = vunpack.c.l.b16 %v582
        %v1189 = vunpack.c.h.b16 %v582
        %v1190 = vunpack.c.l.b16 %v583
        %v1191 = vunpack.c.h.b16 %v583
        %v1192 = vunpack.c.l.b16 %v584
        %v1193 = vunpack.c.h.b16 %v584
        %v1194 = vunpack.c.l.b16 %v585
        %v1195 = vunpack.c.h.b16 %v585
        %v1196 = vunpack.c.l.b16 %v586
        %v1197 = vunpack.c.h.b16 %v586
        %v1198 = vunpack.c.l.b16 %v587
        %v1199 = vunpack.c.h.b16 %v587
        %v1200 = vunpack.c.l.b16 %v588
        %v1201 = vunpack.c.h.b16 %v588
        %v1202 = vunpack.c.l.b16 %v589
        %v1203 = vunpack.c.h.b16 %v589
        %v1204 = vunpack.c.l.b16 %v590
        %v1205 = vunpack.c.h.b16 %v590
        %v1206 = vunpack.c.l.b16 %v591
        %v1207 = vunpack.c.h.b16 %v591
        %v1208 = vunpack.c.l.b16 %v592
        %v1209 = vunpack.c.h.b16 %v592
        %v1210 = vunpack.c.l.b16 %v593
        %v1211 = vunpack.c.h.b16 %v593
        %v1212 = vunpack.c.l.b16 %v594
        %v1213 = vunpack.c.h.b16 %v594
        %v1214 = vunpack.c.l.b16 %v595
        %v1215 = vunpack.c.h.b16 %v595
        %v1216 = vunpack.c.l.b16 %v596
        %v1217 = vunpack.c.h.b16 %v596
        %v1218 = vunpack.c.l.b16 %v597
        %v1219 = vunpack.c.h.b16 %v597
        %v1220 = vunpack.c.l.b16 %v598
        %v1221 = vunpack.c.h.b16 %v598
        %v1222 = vunpack.c.l.b16 %v599
        %v1223 = vunpack.c.h.b16 %v599
        %v1224 = vunpack.c.l.b16 %v600
        %v1225 = vunpack.c.h.b16 %v600
        %v1226 = vunpack.c.l.b16 %v601
        %v1227 = vunpack.c.h.b16 %v601
        %v1228 = vunpack.c.l.b16 %v602
        %v1229 = vunpack.c.h.b16 %v602
        %v1230 = vunpack.c.l.b16 %v603
        %v1231 = vunpack.c.h.b16 %v603
        %v1232 = vunpack.c.l.b16 %v604
        %v1233 = vunpack.c.h.b16 %v604
        %v1234 = vunpack.c.l.b16 %v605
        %v1235 = vunpack.c.h.b16 %v605
        %v1236 = vunpack.c.l.b16 %v606
        %v1237 = vunpack.c.h.b16 %v606
        %v1238 = vunpack.c.l.b16 %v607
        %v1239 = vunpack.c.h.b16 %v607
        %v1240 = vunpack.c.l.b16 %v608
        %v1241 = vunpack.c.h.b16 %v608
        %v1242 = vunpack.c.l.b16 %v609
        %v1243 = vunpack.c.h.b16 %v609
        %v1244 = vunpack.c.l.b16 %v610
        %v1245 = vunpack.c.h.b16 %v610
        %v1246 = vunpack.c.l.b16 %v611
        %v1247 = vunpack.c.h.b16 %v611
        %v1248 = vunpack.c.l.b16 %v612
        %v1249 = vunpack.c.h.b16 %v612
        %v1250 = vunpack.c.l.b16 %v613
        %v1251 = vunpack.c.h.b16 %v613
        %v1252 = vunpack.c.l.b16 %v614
        %v1253 = vunpack.c.h.b16 %v614
        %v1254 = vunpack.c.l.b16 %v615
        %v1255 = vunpack.c.h.b16 %v615
        %v1256 = vunpack.c.l.b16 %v616
        %v1257 = vunpack.c.h.b16 %v616
        %v1258 = vunpack.c.l.b16 %v617
        %v1259 = vunpack.c.h.b16 %v617
        %v1260 = vunpack.c.l.b16 %v618
        %v1261 = vunpack.c.h.b16 %v618
        %v1262 = vunpack.c.l.b16 %v619
        %v1263 = vunpack.c.h.b16 %v619
        %v1264 = vunpack.c.l.b16 %v620
        %v1265 = vunpack.c.h.b16 %v620
        %v1266 = vunpack.c.l.b16 %v621
        %v1267 = vunpack.c.h.b16 %v621
        %v1268 = vunpack.c.l.b16 %v622
        %v1269 = vunpack.c.h.b16 %v622
        %v1270 = vunpack.c.l.b16 %v623
        %v1271 = vunpack.c.h.b16 %v623
        %v1272 = vunpack.c.l.b16 %v624
        %v1273 = vunpack.c.h.b16 %v624
        %v1274 = vunpack.c.l.b16 %v625
        %v1275 = vunpack.c.h.b16 %v625
        %v1276 = vunpack.c.l.b16 %v626
        %v1277 = vunpack.c.h.b16 %v626
        %v1278 = vunpack.c.l.b16 %v627
        %v1279 = vunpack.c.h.b16 %v627
        %v1280 = vunpack.c.l.b16 %v628
        %v1281 = vunpack.c.h.b16 %v628
        %v1282 = vunpack.c.l.b16 %v629
        %v1283 = vunpack.c.h.b16 %v629
        %v1284 = vunpack.c.l.b16 %v630
        %v1285 = vunpack.c.h.b16 %v630
        %v1286 = vunpack.c.l.b16 %v631
        %v1287 = vunpack.c.h.b16 %v631
        %v1288 = vunpack.c.l.b16 %v632
        %v1289 = vunpack.c.h.b16 %v632
        %v1290 = vunpack.c.l.b16 %v633
        %v1291 = vunpack.c.h.b16 %v633
        %v1292 = vunpack.c.l.b16 %v634
        %v1293 = vunpack.c.h.b16 %v634
        %v1294 = vunpack.c.l.b16 %v635
        %v1295 = vunpack.c.h.b16 %v635
        %v1296 = vunpack.c.l.b16 %v636
        %v1297 = vunpack.c.h.b16 %v636
        %v1298 = vunpack.c.l.b16 %v637
        %v1299 = vunpack.c.h.b16 %v637
        %v1300 = vunpack.c.l.b16 %v638
        %v1301 = vunpack.c.h.b16 %v638
        %v1302 = vunpack.c.l.b16 %v639
        %v1303 = vunpack.c.h.b16 %v639
        %v1304 = vunpack.c.l.b16 %v640
        %v1305 = vunpack.c.h.b16 %v640
        %v1306 = vunpack.c.l.b16 %v641
        %v1307 = vunpack.c.h.b16 %v641
        %v1308 = vunpack.c.l.b16 %v642
        %v1309 = vunpack.c.h.b16 %v642
        %v1310 = vunpack.c.l.b16 %v643
        %v1311 = vunpack.c.h.b16 %v643
        %v1312 = vunpack.c.l.b16 %v644
        %v1313 = vunpack.c.h.b16 %v644
        %v1314 = vunpack.c.l.b16 %v645
        %v1315 = vunpack.c.h.b16 %v645
        %v1316 = vunpack.c.l.b16 %v646
        %v1317 = vunpack.c.h.b16 %v646
        %v1318 = vunpack.c.l.b16 %v647
        %v1319 = vunpack.c.h.b16 %v647
        %v1320 = vunpack.c.l.b16 %v648
        %v1321 = vunpack.c.h.b16 %v648
        %v1322 = vunpack.c.l.b16 %v649
        %v1323 = vunpack.c.h.b16 %v649
        %v1324 = vunpack.c.l.b16 %v650
        %v1325 = vunpack.c.h.b16 %v650
        %v1326 = vunpack.c.l.b16 %v651
        %v1327 = vunpack.c.h.b16 %v651
        %v1328 = vunpack.c.l.b16 %v652
        %v1329 = vunpack.c.h.b16 %v652
        %v1330 = vunpack.c.l.b16 %v653
        %v1331 = vunpack.c.h.b16 %v653
        %v1332 = vunpack.c.l.b16 %v654
        %v1333 = vunpack.c.h.b16 %v654
        %v1334 = vunpack.c.l.b16 %v655
        %v1335 = vunpack.c.h.b16 %v655
        %v1336 = vunpack.c.l.b16 %v656
        %v1337 = vunpack.c.h.b16 %v656
        %v1338 = vunpack.c.l.b16 %v657
        %v1339 = vunpack.c.h.b16 %v657
        %v1340 = vunpack.c.l.b16 %v658
        %v1341 = vunpack.c.h.b16 %v658
        %v1342 = vunpack.c.l.b16 %v659
        %v1343 = vunpack.c.h.b16 %v659
        %v1344 = vunpack.c.l.b16 %v660
        %v1345 = vunpack.c.h.b16 %v660
        %v1346 = vunpack.c.l.b16 %v661
        %v1347 = vunpack.c.h.b16 %v661
        %v1348 = vunpack.c.l.b16 %v662
        %v1349 = vunpack.c.h.b16 %v662
        %v1350 = vunpack.c.l.b16 %v663
        %v1351 = vunpack.c.h.b16 %v663
        %v1352 = vunpack.c.l.b16 %v664
        %v1353 = vunpack.c.h.b16 %v664
        %v1354 = vunpack.c.l.b16 %v665
        %v1355 = vunpack.c.h.b16 %v665
        %v1356 = vunpack.c.l.b16 %v666
        %v1357 = vunpack.c.h.b16 %v666
        %v1358 = vunpack.c.l.b16 %v667
        %v1359 = vunpack.c.h.b16 %v667
        %v1360 = vunpack.c.l.b16 %v668
        %v1361 = vunpack.c.h.b16 %v668
        %v1362 = vunpack.c.l.b16 %v669
        %v1363 = vunpack.c.h.b16 %v669
        %v1364 = vunpack.c.l.b16 %v670
        %v1365 = vunpack.c.h.b16 %v670
        %v1366 = vunpack.c.l.b16 %v671
        %v1367 = vunpack.c.h.b16 %v671
        %v1368 = vunpack.c.l.b16 %v672
        %v1369 = vunpack.c.h.b16 %v672
        %v1370 = vunpack.c.l.b16 %v673
        %v1371 = vunpack.c.h.b16 %v673
        %v1372 = vunpack.c.l.b16 %v674
        %v1373 = vunpack.c.h.b16 %v674
        %v1374 = vunpack.c.l.b16 %v675
        %v1375 = vunpack.c.h.b16 %v675
        %v1376 = vunpack.c.l.b16 %v676
        %v1377 = vunpack.c.h.b16 %v676
        %v1378 = vunpack.c.l.b16 %v677
        %v1379 = vunpack.c.h.b16 %v677
        %v1380 = vunpack.c.l.b16 %v678
        %v1381 = vunpack.c.h.b16 %v678
        %v1382 = vunpack.c.l.b16 %v679
        %v1383 = vunpack.c.h.b16 %v679
        %v1384 = vunpack.c.l.b16 %v680
        %v1385 = vunpack.c.h.b16 %v680
        %v1386 = vunpack.c.l.b16 %v681
        %v1387 = vunpack.c.h.b16 %v681
        %v1388 = vunpack.c.l.b16 %v682
        %v1389 = vunpack.c.h.b16 %v682
        %v1390 = vunpack.c.l.b16 %v683
        %v1391 = vunpack.c.h.b16 %v683
        %v1392 = vunpack.c.l.b16 %v684
        %v1393 = vunpack.c.h.b16 %v684
        %v1394 = vunpack.c.l.b16 %v685
        %v1395 = vunpack.c.h.b16 %v685
        %v1396 = vunpack.c.l.b16 %v686
        %v1397 = vunpack.c.h.b16 %v686
        %v1398 = vunpack.c.l.b16 %v687
        %v1399 = vunpack.c.h.b16 %v687
        %v1400 = vunpack.c.l.b16 %v688
        %v1401 = vunpack.c.h.b16 %v688
        %v1402 = vunpack.c.l.b16 %v689
        %v1403 = vunpack.c.h.b16 %v689
        %v1404 = vunpack.c.l.b16 %v690
        %v1405 = vunpack.c.h.b16 %v690
        %v1406 = vunpack.c.l.b16 %v691
        %v1407 = vunpack.c.h.b16 %v691
        %v1408 = vunpack.c.l.b16 %v692
        %v1409 = vunpack.c.h.b16 %v692
        %v1410 = vunpack.c.l.b16 %v693
        %v1411 = vunpack.c.h.b16 %v693
        %v1412 = vunpack.c.l.b16 %v694
        %v1413 = vunpack.c.h.b16 %v694
        %v1414 = vpack.c.b16 %v970, %v966
        %v1415 = vpack.c.b16 %v971, %v967
        %v1416 = vpack.c.b16 %v972, %v968
        %v1417 = vpack.c.b16 %v973, %v969
        %v1418 = vpack.c.b16 %v978, %v974
        %v1419 = vpack.c.b16 %v979, %v975
        %v1420 = vpack.c.b16 %v980, %v976
        %v1421 = vpack.c.b16 %v981, %v977
        %v1422 = vpack.c.b16 %v986, %v982
        %v1423 = vpack.c.b16 %v987, %v983
        %v1424 = vpack.c.b16 %v988, %v984
        %v1425 = vpack.c.b16 %v989, %v985
        %v1426 = vpack.c.b16 %v994, %v990
        %v1427 = vpack.c.b16 %v995, %v991
        %v1428 = vpack.c.b16 %v996, %v992
        %v1429 = vpack.c.b16 %v997, %v993
        %v1430 = vpack.c.b16 %v1002, %v998
        %v1431 = vpack.c.b16 %v1003, %v999
        %v1432 = vpack.c.b16 %v1004, %v1000
        %v1433 = vpack.c.b16 %v1005, %v1001
        %v1434 = vpack.c.b16 %v1010, %v1006
        %v1435 = vpack.c.b16 %v1011, %v1007
        %v1436 = vpack.c.b16 %v1012, %v1008
        %v1437 = vpack.c.b16 %v1013, %v1009
        %v1438 = vpack.c.b16 %v1018, %v1014
        %v1439 = vpack.c.b16 %v1019, %v1015
        %v1440 = vpack.c.b16 %v1020, %v1016
        %v1441 = vpack.c.b16 %v1021, %v1017
        %v1442 = vpack.c.b16 %v1026, %v1022
        %v1443 = vpack.c.b16 %v1027, %v1023
        %v1444 = vpack.c.b16 %v1028, %v1024
        %v1445 = vpack.c.b16 %v1029, %v1025
        %v1446 = vpack.c.b16 %v1034, %v1030
        %v1447 = vpack.c.b16 %v1035, %v1031
        %v1448 = vpack.c.b16 %v1036, %v1032
        %v1449 = vpack.c.b16 %v1037, %v1033
        %v1450 = vpack.c.b16 %v1042, %v1038
        %v1451 = vpack.c.b16 %v1043, %v1039
        %v1452 = vpack.c.b16 %v1044, %v1040
        %v1453 = vpack.c.b16 %v1045, %v1041
        %v1454 = vpack.c.b16 %v1050, %v1046
        %v1455 = vpack.c.b16 %v1051, %v1047
        %v1456 = vpack.c.b16 %v1052, %v1048
        %v1457 = vpack.c.b16 %v1053, %v1049
        %v1458 = vpack.c.b16 %v1058, %v1054
        %v1459 = vpack.c.b16 %v1059, %v1055
        %v1460 = vpack.c.b16 %v1060, %v1056
        %v1461 = vpack.c.b16 %v1061, %v1057
        %v1462 = vpack.c.b16 %v1066, %v1062
        %v1463 = vpack.c.b16 %v1067, %v1063
        %v1464 = vpack.c.b16 %v1068, %v1064
        %v1465 = vpack.c.b16 %v1069, %v1065
        %v1466 = vpack.c.b16 %v1074, %v1070
        %v1467 = vpack.c.b16 %v1075, %v1071
        %v1468 = vpack.c.b16 %v1076, %v1072
        %v1469 = vpack.c.b16 %v1077, %v1073
        %v1470 = vpack.c.b16 %v1082, %v1078
        %v1471 = vpack.c.b16 %v1083, %v1079
        %v1472 = vpack.c.b16 %v1084, %v1080
        %v1473 = vpack.c.b16 %v1085, %v1081
        %v1474 = vpack.c.b16 %v1090, %v1086
        %v1475 = vpack.c.b16 %v1091, %v1087
        %v1476 = vpack.c.b16 %v1092, %v1088
        %v1477 = vpack.c.b16 %v1093, %v1089
        %v1478 = vpack.c.b16 %v1098, %v1094
        %v1479 = vpack.c.b16 %v1099, %v1095
        %v1480 = vpack.c.b16 %v1100, %v1096
        %v1481 = vpack.c.b16 %v1101, %v1097
        %v1482 = vpack.c.b16 %v1106, %v1102
        %v1483 = vpack.c.b16 %v1107, %v1103
        %v1484 = vpack.c.b16 %v1108, %v1104
        %v1485 = vpack.c.b16 %v1109, %v1105
        %v1486 = vpack.c.b16 %v1114, %v1110
        %v1487 = vpack.c.b16 %v1115, %v1111
        %v1488 = vpack.c.b16 %v1116, %v1112
        %v1489 = vpack.c.b16 %v1117, %v1113
        %v1490 = vpack.c.b16 %v1122, %v1118
        %v1491 = vpack.c.b16 %v1123, %v1119
        %v1492 = vpack.c.b16 %v1124, %v1120
        %v1493 = vpack.c.b16 %v1125, %v1121
        %v1494 = vpack.c.b16 %v1130, %v1126
        %v1495 = vpack.c.b16 %v1131, %v1127
        %v1496 = vpack.c.b16 %v1132, %v1128
        %v1497 = vpack.c.b16 %v1133, %v1129
        %v1498 = vpack.c.b16 %v1138, %v1134
        %v1499 = vpack.c.b16 %v1139, %v1135
        %v1500 = vpack.c.b16 %v1140, %v1136
        %v1501 = vpack.c.b16 %v1141, %v1137
        %v1502 = vpack.c.b16 %v1146, %v1142
        %v1503 = vpack.c.b16 %v1147, %v1143
        %v1504 = vpack.c.b16 %v1148, %v1144
        %v1505 = vpack.c.b16 %v1149, %v1145
        %v1506 = vpack.c.b16 %v1154, %v1150
        %v1507 = vpack.c.b16 %v1155, %v1151
        %v1508 = vpack.c.b16 %v1156, %v1152
        %v1509 = vpack.c.b16 %v1157, %v1153
        %v1510 = vpack.c.b16 %v1162, %v1158
        %v1511 = vpack.c.b16 %v1163, %v1159
        %v1512 = vpack.c.b16 %v1164, %v1160
        %v1513 = vpack.c.b16 %v1165, %v1161
        %v1514 = vpack.c.b16 %v1170, %v1166
        %v1515 = vpack.c.b16 %v1171, %v1167
        %v1516 = vpack.c.b16 %v1172, %v1168
        %v1517 = vpack.c.b16 %v1173, %v1169
        %v1518 = vpack.c.b16 %v1178, %v1174
        %v1519 = vpack.c.b16 %v1179, %v1175
        %v1520 = vpack.c.b16 %v1180, %v1176
        %v1521 = vpack.c.b16 %v1181, %v1177
        %v1522 = vpack.c.b16 %v1186, %v1182
        %v1523 = vpack.c.b16 %v1187, %v1183
        %v1524 = vpack.c.b16 %v1188, %v1184
        %v1525 = vpack.c.b16 %v1189, %v1185
        %v1526 = vpack.c.b16 %v1194, %v1190
        %v1527 = vpack.c.b16 %v1195, %v1191
        %v1528 = vpack.c.b16 %v1196, %v1192
        %v1529 = vpack.c.b16 %v1197, %v1193
        %v1530 = vpack.c.b16 %v1202, %v1198
        %v1531 = vpack.c.b16 %v1203, %v1199
        %v1532 = vpack.c.b16 %v1204, %v1200
        %v1533 = vpack.c.b16 %v1205, %v1201
        %v1534 = vpack.c.b16 %v1210, %v1206
        %v1535 = vpack.c.b16 %v1211, %v1207
        %v1536 = vpack.c.b16 %v1212, %v1208
        %v1537 = vpack.c.b16 %v1213, %v1209
        %v1538 = vpack.c.b16 %v1218, %v1214
        %v1539 = vpack.c.b16 %v1219, %v1215
        %v1540 = vpack.c.b16 %v1220, %v1216
        %v1541 = vpack.c.b16 %v1221, %v1217
        %v1542 = vpack.c.b16 %v1226, %v1222
        %v1543 = vpack.c.b16 %v1227, %v1223
        %v1544 = vpack.c.b16 %v1228, %v1224
        %v1545 = vpack.c.b16 %v1229, %v1225
        %v1546 = vpack.c.b16 %v1234, %v1230
        %v1547 = vpack.c.b16 %v1235, %v1231
        %v1548 = vpack.c.b16 %v1236, %v1232
        %v1549 = vpack.c.b16 %v1237, %v1233
        %v1550 = vpack.c.b16 %v1242, %v1238
        %v1551 = vpack.c.b16 %v1243, %v1239
        %v1552 = vpack.c.b16 %v1244, %v1240
        %v1553 = vpack.c.b16 %v1245, %v1241
        %v1554 = vpack.c.b16 %v1250, %v1246
        %v1555 = vpack.c.b16 %v1251, %v1247
        %v1556 = vpack.c.b16 %v1252, %v1248
        %v1557 = vpack.c.b16 %v1253, %v1249
        %v1558 = vpack.c.b16 %v1258, %v1254
        %v1559 = vpack.c.b16 %v1259, %v1255
        %v1560 = vpack.c.b16 %v1260, %v1256
        %v1561 = vpack.c.b16 %v1261, %v1257
        %v1562 = vpack.c.b16 %v1266, %v1262
        %v1563 = vpack.c.b16 %v1267, %v1263
        %v1564 = vpack.c.b16 %v1268, %v1264
        %v1565 = vpack.c.b16 %v1269, %v1265
        %v1566 = vpack.c.b16 %v1274, %v1270
        %v1567 = vpack.c.b16 %v1275, %v1271
        %v1568 = vpack.c.b16 %v1276, %v1272
        %v1569 = vpack.c.b16 %v1277, %v1273
        %v1570 = vpack.c.b16 %v1282, %v1278
        %v1571 = vpack.c.b16 %v1283, %v1279
        %v1572 = vpack.c.b16 %v1284, %v1280
        %v1573 = vpack.c.b16 %v1285, %v1281
        %v1574 = vpack.c.b16 %v1290, %v1286
        %v1575 = vpack.c.b16 %v1291, %v1287
        %v1576 = vpack.c.b16 %v1292, %v1288
        %v1577 = vpack.c.b16 %v1293, %v1289
        %v1578 = vpack.c.b16 %v1298, %v1294
        %v1579 = vpack.c.b16 %v1299, %v1295
        %v1580 = vpack.c.b16 %v1300, %v1296
        %v1581 = vpack.c.b16 %v1301, %v1297
        %v1582 = vpack.c.b16 %v1306, %v1302
        %v1583 = vpack.c.b16 %v1307, %v1303
        %v1584 = vpack.c.b16 %v1308, %v1304
        %v1585 = vpack.c.b16 %v1309, %v1305
        %v1586 = vpack.c.b16 %v1314, %v1310
        %v1587 = vpack.c.b16 %v1315, %v1311
        %v1588 = vpack.c.b16 %v1316, %v1312
        %v1589 = vpack.c.b16 %v1317, %v1313
        %v1590 = vpack.c.b16 %v1322, %v1318
        %v1591 = vpack.c.b16 %v1323, %v1319
        %v1592 = vpack.c.b16 %v1324, %v1320
        %v1593 = vpack.c.b16 %v1325, %v1321
        %v1594 = vpack.c.b16 %v1330, %v1326
        %v1595 = vpack.c.b16 %v1331, %v1327
        %v1596 = vpack.c.b16 %v1332, %v1328
        %v1597 = vpack.c.b16 %v1333, %v1329
        %v1598 = vpack.c.b16 %v1338, %v1334
        %v1599 = vpack.c.b16 %v1339, %v1335
        %v1600 = vpack.c.b16 %v1340, %v1336
        %v1601 = vpack.c.b16 %v1341, %v1337
        %v1602 = vpack.c.b16 %v1346, %v1342
        %v1603 = vpack.c.b16 %v1347, %v1343
        %v1604 = vpack.c.b16 %v1348, %v1344
        %v1605 = vpack.c.b16 %v1349, %v1345
        %v1606 = vpack.c.b16 %v1354, %v1350
        %v1607 = vpack.c.b16 %v1355, %v1351
        %v1608 = vpack.c.b16 %v1356, %v1352
        %v1609 = vpack.c.b16 %v1357, %v1353
        %v1610 = vpack.c.b16 %v1362, %v1358
        %v1611 = vpack.c.b16 %v1363, %v1359
        %v1612 = vpack.c.b16 %v1364, %v1360
        %v1613 = vpack.c.b16 %v1365, %v1361
        %v1614 = vpack.c.b16 %v1370, %v1366
        %v1615 = vpack.c.b16 %v1371, %v1367
        %v1616 = vpack.c.b16 %v1372, %v1368
        %v1617 = vpack.c.b16 %v1373, %v1369
        %v1618 = vpack.c.b16 %v1378, %v1374
        %v1619 = vpack.c.b16 %v1379, %v1375
        %v1620 = vpack.c.b16 %v1380, %v1376
        %v1621 = vpack.c.b16 %v1381, %v1377
        %v1622 = vpack.c.b16 %v1386, %v1382
        %v1623 = vpack.c.b16 %v1387, %v1383
        %v1624 = vpack.c.b16 %v1388, %v1384
        %v1625 = vpack.c.b16 %v1389, %v1385
        %v1626 = vpack.c.b16 %v1394, %v1390
        %v1627 = vpack.c.b16 %v1395, %v1391
        %v1628 = vpack.c.b16 %v1396, %v1392
        %v1629 = vpack.c.b16 %v1397, %v1393
        %v1630 = vpack.c.b16 %v1402, %v1398
        %v1631 = vpack.c.b16 %v1403, %v1399
        %v1632 = vpack.c.b16 %v1404, %v1400
        %v1633 = vpack.c.b16 %v1405, %v1401
        %v1634 = vpack.c.b16 %v1410, %v1406
        %v1635 = vpack.c.b16 %v1411, %v1407
        %v1636 = vpack.c.b16 %v1412, %v1408
        %v1637 = vpack.c.b16 %v1413, %v1409
        %1862 = vmatprep.subr.bf16.mxu0 %v1443
        %1863 = vmatpush1.bf16.msra.mxu0 %v1442
        %1864 = vmatprep.subr.bf16.mxu0 %v1439
        %1865 = vmatpush1.bf16.msra.mxu0 %v1438
        %1866 = vmatprep.subr.bf16.mxu0 %v1435
        %1867 = vmatpush1.bf16.msra.mxu0 %v1434
        %1868 = vmatprep.subr.bf16.mxu0 %v1431
        %1869 = vmatpush1.bf16.msra.mxu0 %v1430
        %1870 = vmatprep.subr.bf16.mxu0 %v1427
        %1871 = vmatpush1.bf16.msra.mxu0 %v1426
        %1872 = vmatprep.subr.bf16.mxu0 %v1423
        %1873 = vmatpush1.bf16.msra.mxu0 %v1422
        %1874 = vmatprep.subr.bf16.mxu0 %v1419
        %1875 = vmatpush1.bf16.msra.mxu0 %v1418
        %1876 = vmatprep.subr.bf16.mxu0 %v1415
        %1877 = vmatpush1.bf16.msra.mxu0 %v1414
        %1878 = vmatprep.subr.bf16.mxu0 %v1475
        %1879 = vmatpush2.bf16.msra.mxu0 %v1474
        %1880 = vmatprep.subr.bf16.mxu0 %v1471
        %1881 = vmatpush2.bf16.msra.mxu0 %v1470
        %1882 = vmatprep.subr.bf16.mxu0 %v1467
        %1883 = vmatpush2.bf16.msra.mxu0 %v1466
        %1884 = vmatprep.subr.bf16.mxu0 %v1463
        %1885 = vmatpush2.bf16.msra.mxu0 %v1462
        %1886 = vmatprep.subr.bf16.mxu0 %v1459
        %1887 = vmatpush2.bf16.msra.mxu0 %v1458
        %1888 = vmatprep.subr.bf16.mxu0 %v1455
        %1889 = vmatpush2.bf16.msra.mxu0 %v1454
        %1890 = vmatprep.subr.bf16.mxu0 %v1451
        %1891 = vmatpush2.bf16.msra.mxu0 %v1450
        %1892 = vmatprep.subr.bf16.mxu0 %v1447
        %1893 = vmatpush2.bf16.msra.mxu0 %v1446
        %1894 = vmatprep.mubr.bf16.mxu0 %v729
        %1895 = vmatmul.mubr.bf16.gmra.mxu0 %v728
        %v1896 = vpop.f32.mrf.mxu0
        %v1897 = vadd.f32 %v700, %v1896
        %v1898 = vpop.f32.mrf.mxu0
        %v1899 = vadd.f32 %v704, %v1898
        %v1900 = vpop.f32.mrf.mxu0
        %v1901 = vpop.f32.mrf.mxu0
        %1902 = vdwg.mxu0
        %1903 = vmatprep.subr.bf16.mxu0 %v1507
        %1904 = vmatpush1.bf16.msra.mxu0 %v1506
        %1905 = vmatprep.subr.bf16.mxu0 %v1503
        %1906 = vmatpush1.bf16.msra.mxu0 %v1502
        %1907 = vmatprep.subr.bf16.mxu0 %v1499
        %1908 = vmatpush1.bf16.msra.mxu0 %v1498
        %1909 = vmatprep.subr.bf16.mxu0 %v1495
        %1910 = vmatpush1.bf16.msra.mxu0 %v1494
        %1911 = vmatprep.subr.bf16.mxu0 %v1491
        %1912 = vmatpush1.bf16.msra.mxu0 %v1490
        %1913 = vmatprep.subr.bf16.mxu0 %v1487
        %1914 = vmatpush1.bf16.msra.mxu0 %v1486
        %1915 = vmatprep.subr.bf16.mxu0 %v1483
        %1916 = vmatpush1.bf16.msra.mxu0 %v1482
        %1917 = vmatprep.subr.bf16.mxu0 %v1479
        %1918 = vmatpush1.bf16.msra.mxu0 %v1478
        %1919 = vmatprep.subr.bf16.mxu0 %v1539
        %1920 = vmatpush2.bf16.msra.mxu0 %v1538
        %1921 = vmatprep.subr.bf16.mxu0 %v1535
        %1922 = vmatpush2.bf16.msra.mxu0 %v1534
        %1923 = vmatprep.subr.bf16.mxu0 %v1531
        %1924 = vmatpush2.bf16.msra.mxu0 %v1530
        %1925 = vmatprep.subr.bf16.mxu0 %v1527
        %1926 = vmatpush2.bf16.msra.mxu0 %v1526
        %1927 = vmatprep.subr.bf16.mxu0 %v1523
        %1928 = vmatpush2.bf16.msra.mxu0 %v1522
        %1929 = vmatprep.subr.bf16.mxu0 %v1519
        %1930 = vmatpush2.bf16.msra.mxu0 %v1518
        %1931 = vmatprep.subr.bf16.mxu0 %v1515
        %1932 = vmatpush2.bf16.msra.mxu0 %v1514
        %1933 = vmatprep.subr.bf16.mxu0 %v1511
        %1934 = vmatpush2.bf16.msra.mxu0 %v1510
        %1935 = vmatprep.mubr.bf16.mxu0 %v731
        %1936 = vmatmul.mubr.bf16.gmra.mxu0 %v730
        %v1937 = vpop.f32.mrf.mxu0
        %v1938 = vadd.f32 %v1897, %v1937
        %v1939 = vpop.f32.mrf.mxu0
        %v1940 = vadd.f32 %v1899, %v1939
        %v1941 = vpop.f32.mrf.mxu0
        %v1942 = vpop.f32.mrf.mxu0
        %1943 = vdwg.mxu0
        %1944 = vmatprep.subr.bf16.mxu0 %v1571
        %1945 = vmatpush1.bf16.msra.mxu0 %v1570
        %1946 = vmatprep.subr.bf16.mxu0 %v1567
        %1947 = vmatpush1.bf16.msra.mxu0 %v1566
        %1948 = vmatprep.subr.bf16.mxu0 %v1563
        %1949 = vmatpush1.bf16.msra.mxu0 %v1562
        %1950 = vmatprep.subr.bf16.mxu0 %v1559
        %1951 = vmatpush1.bf16.msra.mxu0 %v1558
        %1952 = vmatprep.subr.bf16.mxu0 %v1555
        %1953 = vmatpush1.bf16.msra.mxu0 %v1554
        %1954 = vmatprep.subr.bf16.mxu0 %v1551
        %1955 = vmatpush1.bf16.msra.mxu0 %v1550
        %1956 = vmatprep.subr.bf16.mxu0 %v1547
        %1957 = vmatpush1.bf16.msra.mxu0 %v1546
        %1958 = vmatprep.subr.bf16.mxu0 %v1543
        %1959 = vmatpush1.bf16.msra.mxu0 %v1542
        %1960 = vmatprep.subr.bf16.mxu0 %v1603
        %1961 = vmatpush2.bf16.msra.mxu0 %v1602
        %1962 = vmatprep.subr.bf16.mxu0 %v1599
        %1963 = vmatpush2.bf16.msra.mxu0 %v1598
        %1964 = vmatprep.subr.bf16.mxu0 %v1595
        %1965 = vmatpush2.bf16.msra.mxu0 %v1594
        %1966 = vmatprep.subr.bf16.mxu0 %v1591
        %1967 = vmatpush2.bf16.msra.mxu0 %v1590
        %1968 = vmatprep.subr.bf16.mxu0 %v1587
        %1969 = vmatpush2.bf16.msra.mxu0 %v1586
        %1970 = vmatprep.subr.bf16.mxu0 %v1583
        %1971 = vmatpush2.bf16.msra.mxu0 %v1582
        %1972 = vmatprep.subr.bf16.mxu0 %v1579
        %1973 = vmatpush2.bf16.msra.mxu0 %v1578
        %1974 = vmatprep.subr.bf16.mxu0 %v1575
        %1975 = vmatpush2.bf16.msra.mxu0 %v1574
        %1976 = vmatprep.mubr.bf16.mxu0 %v733
        %1977 = vmatmul.mubr.bf16.gmra.mxu0 %v732
        %v1978 = vpop.f32.mrf.mxu0
        %v1979 = vadd.f32 %v1938, %v1978
        %v1980 = vpop.f32.mrf.mxu0
        %v1981 = vadd.f32 %v1940, %v1980
        %v1982 = vpop.f32.mrf.mxu0
        %v1983 = vpop.f32.mrf.mxu0
        %1984 = vdwg.mxu0
        %1985 = vmatprep.subr.bf16.mxu0 %v1635
        %1986 = vmatpush1.bf16.msra.mxu0 %v1634
        %1987 = vmatprep.subr.bf16.mxu0 %v1631
        %1988 = vmatpush1.bf16.msra.mxu0 %v1630
        %1989 = vmatprep.subr.bf16.mxu0 %v1627
        %1990 = vmatpush1.bf16.msra.mxu0 %v1626
        %1991 = vmatprep.subr.bf16.mxu0 %v1623
        %1992 = vmatpush1.bf16.msra.mxu0 %v1622
        %1993 = vmatprep.subr.bf16.mxu0 %v1619
        %1994 = vmatpush1.bf16.msra.mxu0 %v1618
        %1995 = vmatprep.subr.bf16.mxu0 %v1615
        %1996 = vmatpush1.bf16.msra.mxu0 %v1614
        %1997 = vmatprep.subr.bf16.mxu0 %v1611
        %1998 = vmatpush1.bf16.msra.mxu0 %v1610
        %1999 = vmatprep.subr.bf16.mxu0 %v1607
        %2000 = vmatpush1.bf16.msra.mxu0 %v1606
        %2001 = vmatprep.subr.bf16.mxu0 0
        %2002 = vmatpush2.bf16.msra.mxu0 0
        %2003 = vmatprep.subr.bf16.mxu0 0
        %2004 = vmatpush2.bf16.msra.mxu0 0
        %2005 = vmatprep.subr.bf16.mxu0 0
        %2006 = vmatpush2.bf16.msra.mxu0 0
        %2007 = vmatprep.subr.bf16.mxu0 0
        %2008 = vmatpush2.bf16.msra.mxu0 0
        %2009 = vmatprep.subr.bf16.mxu0 0
        %2010 = vmatpush2.bf16.msra.mxu0 0
        %2011 = vmatprep.subr.bf16.mxu0 0
        %2012 = vmatpush2.bf16.msra.mxu0 0
        %2013 = vmatprep.subr.bf16.mxu0 0
        %2014 = vmatpush2.bf16.msra.mxu0 0
        %2015 = vmatprep.subr.bf16.mxu0 0
        %2016 = vmatpush2.bf16.msra.mxu0 0
        %2017 = vmatprep.mubr.bf16.mxu0 0
        %2018 = vmatmul.mubr.bf16.gmra.mxu0 %v734
        %v2019 = vpop.f32.mrf.mxu0
        %v2020 = vadd.f32 %v1979, %v2019
        %v2021 = vpop.f32.mrf.mxu0
        %v2022 = vadd.f32 %v1981, %v2021
        %v2023 = vpop.f32.mrf.mxu0
        %v2024 = vpop.f32.mrf.mxu0
        %2025 = vdwg.mxu0
        %2026 = vmatprep.subr.bf16.mxu0 %v1445
        %2027 = vmatpush1.bf16.msra.mxu0 %v1444
        %2028 = vmatprep.subr.bf16.mxu0 %v1441
        %2029 = vmatpush1.bf16.msra.mxu0 %v1440
        %2030 = vmatprep.subr.bf16.mxu0 %v1437
        %2031 = vmatpush1.bf16.msra.mxu0 %v1436
        %2032 = vmatprep.subr.bf16.mxu0 %v1433
        %2033 = vmatpush1.bf16.msra.mxu0 %v1432
        %2034 = vmatprep.subr.bf16.mxu0 %v1429
        %2035 = vmatpush1.bf16.msra.mxu0 %v1428
        %2036 = vmatprep.subr.bf16.mxu0 %v1425
        %2037 = vmatpush1.bf16.msra.mxu0 %v1424
        %2038 = vmatprep.subr.bf16.mxu0 %v1421
        %2039 = vmatpush1.bf16.msra.mxu0 %v1420
        %2040 = vmatprep.subr.bf16.mxu0 %v1417
        %2041 = vmatpush1.bf16.msra.mxu0 %v1416
        %2042 = vmatprep.subr.bf16.mxu0 %v1477
        %2043 = vmatpush2.bf16.msra.mxu0 %v1476
        %2044 = vmatprep.subr.bf16.mxu0 %v1473
        %2045 = vmatpush2.bf16.msra.mxu0 %v1472
        %2046 = vmatprep.subr.bf16.mxu0 %v1469
        %2047 = vmatpush2.bf16.msra.mxu0 %v1468
        %2048 = vmatprep.subr.bf16.mxu0 %v1465
        %2049 = vmatpush2.bf16.msra.mxu0 %v1464
        %2050 = vmatprep.subr.bf16.mxu0 %v1461
        %2051 = vmatpush2.bf16.msra.mxu0 %v1460
        %2052 = vmatprep.subr.bf16.mxu0 %v1457
        %2053 = vmatpush2.bf16.msra.mxu0 %v1456
        %2054 = vmatprep.subr.bf16.mxu0 %v1453
        %2055 = vmatpush2.bf16.msra.mxu0 %v1452
        %2056 = vmatprep.subr.bf16.mxu0 %v1449
        %2057 = vmatpush2.bf16.msra.mxu0 %v1448
        %2058 = vmatprep.mubr.bf16.mxu0 %v729
        %2059 = vmatmul.mubr.bf16.gmra.mxu0 %v728
        %v2060 = vpop.f32.mrf.mxu0
        %v2061 = vadd.f32 %v708, %v2060
        %v2062 = vpop.f32.mrf.mxu0
        %v2063 = vadd.f32 %v712, %v2062
        %v2064 = vpop.f32.mrf.mxu0
        %v2065 = vpop.f32.mrf.mxu0
        %2066 = vdwg.mxu0
        %2067 = vmatprep.subr.bf16.mxu0 %v1509
        %2068 = vmatpush1.bf16.msra.mxu0 %v1508
        %2069 = vmatprep.subr.bf16.mxu0 %v1505
        %2070 = vmatpush1.bf16.msra.mxu0 %v1504
        %2071 = vmatprep.subr.bf16.mxu0 %v1501
        %2072 = vmatpush1.bf16.msra.mxu0 %v1500
        %2073 = vmatprep.subr.bf16.mxu0 %v1497
        %2074 = vmatpush1.bf16.msra.mxu0 %v1496
        %2075 = vmatprep.subr.bf16.mxu0 %v1493
        %2076 = vmatpush1.bf16.msra.mxu0 %v1492
        %2077 = vmatprep.subr.bf16.mxu0 %v1489
        %2078 = vmatpush1.bf16.msra.mxu0 %v1488
        %2079 = vmatprep.subr.bf16.mxu0 %v1485
        %2080 = vmatpush1.bf16.msra.mxu0 %v1484
        %2081 = vmatprep.subr.bf16.mxu0 %v1481
        %2082 = vmatpush1.bf16.msra.mxu0 %v1480
        %2083 = vmatprep.subr.bf16.mxu0 %v1541
        %2084 = vmatpush2.bf16.msra.mxu0 %v1540
        %2085 = vmatprep.subr.bf16.mxu0 %v1537
        %2086 = vmatpush2.bf16.msra.mxu0 %v1536
        %2087 = vmatprep.subr.bf16.mxu0 %v1533
        %2088 = vmatpush2.bf16.msra.mxu0 %v1532
        %2089 = vmatprep.subr.bf16.mxu0 %v1529
        %2090 = vmatpush2.bf16.msra.mxu0 %v1528
        %2091 = vmatprep.subr.bf16.mxu0 %v1525
        %2092 = vmatpush2.bf16.msra.mxu0 %v1524
        %2093 = vmatprep.subr.bf16.mxu0 %v1521
        %2094 = vmatpush2.bf16.msra.mxu0 %v1520
        %2095 = vmatprep.subr.bf16.mxu0 %v1517
        %2096 = vmatpush2.bf16.msra.mxu0 %v1516
        %2097 = vmatprep.subr.bf16.mxu0 %v1513
        %2098 = vmatpush2.bf16.msra.mxu0 %v1512
        %2099 = vmatprep.mubr.bf16.mxu0 %v731
        %2100 = vmatmul.mubr.bf16.gmra.mxu0 %v730
        %v2101 = vpop.f32.mrf.mxu0
        %v2102 = vadd.f32 %v2061, %v2101
        %v2103 = vpop.f32.mrf.mxu0
        %v2104 = vadd.f32 %v2063, %v2103
        %v2105 = vpop.f32.mrf.mxu0
        %v2106 = vpop.f32.mrf.mxu0
        %2107 = vdwg.mxu0
        %2108 = vmatprep.subr.bf16.mxu0 %v1573
        %2109 = vmatpush1.bf16.msra.mxu0 %v1572
        %2110 = vmatprep.subr.bf16.mxu0 %v1569
        %2111 = vmatpush1.bf16.msra.mxu0 %v1568
        %2112 = vmatprep.subr.bf16.mxu0 %v1565
        %2113 = vmatpush1.bf16.msra.mxu0 %v1564
        %2114 = vmatprep.subr.bf16.mxu0 %v1561
        %2115 = vmatpush1.bf16.msra.mxu0 %v1560
        %2116 = vmatprep.subr.bf16.mxu0 %v1557
        %2117 = vmatpush1.bf16.msra.mxu0 %v1556
        %2118 = vmatprep.subr.bf16.mxu0 %v1553
        %2119 = vmatpush1.bf16.msra.mxu0 %v1552
        %2120 = vmatprep.subr.bf16.mxu0 %v1549
        %2121 = vmatpush1.bf16.msra.mxu0 %v1548
        %2122 = vmatprep.subr.bf16.mxu0 %v1545
        %2123 = vmatpush1.bf16.msra.mxu0 %v1544
        %2124 = vmatprep.subr.bf16.mxu0 %v1605
        %2125 = vmatpush2.bf16.msra.mxu0 %v1604
        %2126 = vmatprep.subr.bf16.mxu0 %v1601
        %2127 = vmatpush2.bf16.msra.mxu0 %v1600
        %2128 = vmatprep.subr.bf16.mxu0 %v1597
        %2129 = vmatpush2.bf16.msra.mxu0 %v1596
        %2130 = vmatprep.subr.bf16.mxu0 %v1593
        %2131 = vmatpush2.bf16.msra.mxu0 %v1592
        %2132 = vmatprep.subr.bf16.mxu0 %v1589
        %2133 = vmatpush2.bf16.msra.mxu0 %v1588
        %2134 = vmatprep.subr.bf16.mxu0 %v1585
        %2135 = vmatpush2.bf16.msra.mxu0 %v1584
        %2136 = vmatprep.subr.bf16.mxu0 %v1581
        %2137 = vmatpush2.bf16.msra.mxu0 %v1580
        %2138 = vmatprep.subr.bf16.mxu0 %v1577
        %2139 = vmatpush2.bf16.msra.mxu0 %v1576
        %2140 = vmatprep.mubr.bf16.mxu0 %v733
        %2141 = vmatmul.mubr.bf16.gmra.mxu0 %v732
        %v2142 = vpop.f32.mrf.mxu0
        %v2143 = vadd.f32 %v2102, %v2142
        %v2144 = vpop.f32.mrf.mxu0
        %v2145 = vadd.f32 %v2104, %v2144
        %v2146 = vpop.f32.mrf.mxu0
        %v2147 = vpop.f32.mrf.mxu0
        %2148 = vdwg.mxu0
        %2149 = vmatprep.subr.bf16.mxu0 %v1637
        %2150 = vmatpush1.bf16.msra.mxu0 %v1636
        %2151 = vmatprep.subr.bf16.mxu0 %v1633
        %2152 = vmatpush1.bf16.msra.mxu0 %v1632
        %2153 = vmatprep.subr.bf16.mxu0 %v1629
        %2154 = vmatpush1.bf16.msra.mxu0 %v1628
        %2155 = vmatprep.subr.bf16.mxu0 %v1625
        %2156 = vmatpush1.bf16.msra.mxu0 %v1624
        %2157 = vmatprep.subr.bf16.mxu0 %v1621
        %2158 = vmatpush1.bf16.msra.mxu0 %v1620
        %2159 = vmatprep.subr.bf16.mxu0 %v1617
        %2160 = vmatpush1.bf16.msra.mxu0 %v1616
        %2161 = vmatprep.subr.bf16.mxu0 %v1613
        %2162 = vmatpush1.bf16.msra.mxu0 %v1612
        %2163 = vmatprep.subr.bf16.mxu0 %v1609
        %2164 = vmatpush1.bf16.msra.mxu0 %v1608
        %2165 = vmatprep.subr.bf16.mxu0 0
        %2166 = vmatpush2.bf16.msra.mxu0 0
        %2167 = vmatprep.subr.bf16.mxu0 0
        %2168 = vmatpush2.bf16.msra.mxu0 0
        %2169 = vmatprep.subr.bf16.mxu0 0
        %2170 = vmatpush2.bf16.msra.mxu0 0
        %2171 = vmatprep.subr.bf16.mxu0 0
        %2172 = vmatpush2.bf16.msra.mxu0 0
        %2173 = vmatprep.subr.bf16.mxu0 0
        %2174 = vmatpush2.bf16.msra.mxu0 0
        %2175 = vmatprep.subr.bf16.mxu0 0
        %2176 = vmatpush2.bf16.msra.mxu0 0
        %2177 = vmatprep.subr.bf16.mxu0 0
        %2178 = vmatpush2.bf16.msra.mxu0 0
        %2179 = vmatprep.subr.bf16.mxu0 0
        %2180 = vmatpush2.bf16.msra.mxu0 0
        %2181 = vmatprep.mubr.bf16.mxu0 0
        %2182 = vmatmul.mubr.bf16.gmra.mxu0 %v734
        %v2183 = vpop.f32.mrf.mxu0
        %v2184 = vadd.f32 %v2143, %v2183
        %v2185 = vpop.f32.mrf.mxu0
        %v2186 = vadd.f32 %v2145, %v2185
        %v2187 = vpop.f32.mrf.mxu0
        %v2188 = vpop.f32.mrf.mxu0
        %2189 = vdwg.mxu0
        %v2190 = vmax.f32 %v2020, 0.0
        %v2191 = vmax.f32 %v2022, 0.0
        %v2192 = vmax.f32 %v2184, 0.0
        %v2193 = vmax.f32 %v2186, 0.0
        %v2194 = vpack.c.bf16 %v2190, %v2190
        %v2195 = vpack.c.bf16 %v2191, %v2191
        %v2196 = vpack.c.bf16 %v2192, %v2192
        %v2197 = vpack.c.bf16 %v2193, %v2193
        %v2198 = vld [vmem:[%s2] sm:$0xff]
        %v2199 = vld [vmem:[%s2 + $0x8] sm:$0xff]
        %v2200 = vld [vmem:[%s2 + $0x10] sm:$0xff]
        %v2201 = vld [vmem:[%s2 + $0x18] sm:$0xff]
        %v2202 = vld [vmem:[%s2 + $0x20] sm:$0xff]
        %v2203 = vld [vmem:[%s2 + $0x28] sm:$0xff]
        %v2204 = vld [vmem:[%s2 + $0x30] sm:$0xff]
        %v2205 = vld [vmem:[%s2 + $0x38] sm:$0xff]
        %v2206 = vld [vmem:[%s2 + $0x40] sm:$0xff]
        %v2207 = vld [vmem:[%s2 + $0x48] sm:$0xff]
        %v2208 = vld [vmem:[%s2 + $0x50] sm:$0xff]
        %v2209 = vld [vmem:[%s2 + $0x58] sm:$0xff]
        %v2210 = vld [vmem:[%s2 + $0x60] sm:$0xff]
        %v2211 = vld [vmem:[%s2 + $0x68] sm:$0xff]
        %v2212 = vld [vmem:[%s2 + $0x70] sm:$0xff]
        %v2213 = vld [vmem:[%s2 + $0x78] sm:$0xff]
        %v2214 = vld [vmem:[%s2 + $0x80] sm:$0xff]
        %v2215 = vld [vmem:[%s2 + $0x88] sm:$0xff]
        %v2216 = vld [vmem:[%s2 + $0x90] sm:$0xff]
        %v2217 = vld [vmem:[%s2 + $0x98] sm:$0xff]
        %v2218 = vld [vmem:[%s2 + $0xa0] sm:$0xff]
        %v2219 = vld [vmem:[%s2 + $0xa8] sm:$0xff]
        %v2220 = vld [vmem:[%s2 + $0xb0] sm:$0xff]
        %v2221 = vld [vmem:[%s2 + $0xb8] sm:$0xff]
        %v2222 = vld [vmem:[%s2 + $0xc0] sm:$0xff]
        %v2223 = vld [vmem:[%s2 + $0xc8] sm:$0xff]
        %v2224 = vld [vmem:[%s2 + $0xd0] sm:$0xff]
        %v2225 = vld [vmem:[%s2 + $0xd8] sm:$0xff]
        %v2226 = vld [vmem:[%s2 + $0xe0] sm:$0xff]
        %v2227 = vld [vmem:[%s2 + $0xe8] sm:$0xff]
        %v2228 = vld [vmem:[%s2 + $0xf0] sm:$0xff]
        %v2229 = vld [vmem:[%s2 + $0xf8] sm:$0xff]
        %v2230 = vld [vmem:[%s2 + $0x100] sm:$0xff]
        %v2231 = vld [vmem:[%s2 + $0x108] sm:$0xff]
        %v2232 = vld [vmem:[%s2 + $0x110] sm:$0xff]
        %v2233 = vld [vmem:[%s2 + $0x118] sm:$0xff]
        %v2234 = vld [vmem:[%s2 + $0x120] sm:$0xff]
        %v2235 = vld [vmem:[%s2 + $0x128] sm:$0xff]
        %v2236 = vld [vmem:[%s2 + $0x130] sm:$0xff]
        %v2237 = vld [vmem:[%s2 + $0x138] sm:$0xff]
        %v2238 = vld [vmem:[%s2 + $0x140] sm:$0xff]
        %v2239 = vld [vmem:[%s2 + $0x148] sm:$0xff]
        %v2240 = vld [vmem:[%s2 + $0x150] sm:$0xff]
        %v2241 = vld [vmem:[%s2 + $0x158] sm:$0xff]
        %v2242 = vld [vmem:[%s2 + $0x160] sm:$0xff]
        %v2243 = vld [vmem:[%s2 + $0x168] sm:$0xff]
        %v2244 = vld [vmem:[%s2 + $0x170] sm:$0xff]
        %v2245 = vld [vmem:[%s2 + $0x178] sm:$0xff]
        %v2246 = vld [vmem:[%s2 + $0x180] sm:$0xff]
        %v2247 = vld [vmem:[%s2 + $0x188] sm:$0xff]
        %v2248 = vld [vmem:[%s2 + $0x190] sm:$0xff]
        %v2249 = vld [vmem:[%s2 + $0x198] sm:$0xff]
        %v2250 = vld [vmem:[%s2 + $0x1a0] sm:$0xff]
        %v2251 = vld [vmem:[%s2 + $0x1a8] sm:$0xff]
        %v2252 = vld [vmem:[%s2 + $0x1b0] sm:$0xff]
        %v2253 = vld [vmem:[%s2 + $0x1b8] sm:$0xff]
        %v2254 = vld [vmem:[%s2 + $0x1c0] sm:$0xff]
        %v2255 = vld [vmem:[%s2 + $0x1c8] sm:$0xff]
        %v2256 = vld [vmem:[%s2 + $0x1d0] sm:$0xff]
        %v2257 = vld [vmem:[%s2 + $0x1d8] sm:$0xff]
        %v2258 = vld [vmem:[%s2 + $0x1e0] sm:$0xff]
        %v2259 = vld [vmem:[%s2 + $0x1e8] sm:$0xff]
        %v2260 = vld [vmem:[%s2 + $0x1f0] sm:$0xff]
        %v2261 = vld [vmem:[%s2 + $0x1f8] sm:$0xff]
        %s2262 = scalar_lea.vmem %s13, 1
        %v2263 = vld [vmem:[%s2262] ss:$8 sm:$0x3]
        %v2265 = vlaneseq
        %v2266 = vshrl.u32 %v2265, 7
        %v2267 = vsub.s32 0, %v2266
        %v2268 = vrot.slane %v2263, %v2267
        %v2269 = vlaneseq
        %v2270 = vshrl.u32 %v2269, 7
        %v2271 = vsub.s32 1, %v2270
        %v2272 = vrot.slane %v2263, %v2271
        %v2339 = vunpack.c.l.b16 %v2198
        %v2340 = vunpack.c.h.b16 %v2198
        %v2341 = vunpack.c.l.b16 %v2199
        %v2342 = vunpack.c.h.b16 %v2199
        %v2343 = vunpack.c.l.b16 %v2200
        %v2344 = vunpack.c.h.b16 %v2200
        %v2345 = vunpack.c.l.b16 %v2201
        %v2346 = vunpack.c.h.b16 %v2201
        %v2347 = vunpack.c.l.b16 %v2202
        %v2348 = vunpack.c.h.b16 %v2202
        %v2349 = vunpack.c.l.b16 %v2203
        %v2350 = vunpack.c.h.b16 %v2203
        %v2351 = vunpack.c.l.b16 %v2204
        %v2352 = vunpack.c.h.b16 %v2204
        %v2353 = vunpack.c.l.b16 %v2205
        %v2354 = vunpack.c.h.b16 %v2205
        %v2355 = vunpack.c.l.b16 %v2206
        %v2356 = vunpack.c.h.b16 %v2206
        %v2357 = vunpack.c.l.b16 %v2207
        %v2358 = vunpack.c.h.b16 %v2207
        %v2359 = vunpack.c.l.b16 %v2208
        %v2360 = vunpack.c.h.b16 %v2208
        %v2361 = vunpack.c.l.b16 %v2209
        %v2362 = vunpack.c.h.b16 %v2209
        %v2363 = vunpack.c.l.b16 %v2210
        %v2364 = vunpack.c.h.b16 %v2210
        %v2365 = vunpack.c.l.b16 %v2211
        %v2366 = vunpack.c.h.b16 %v2211
        %v2367 = vunpack.c.l.b16 %v2212
        %v2368 = vunpack.c.h.b16 %v2212
        %v2369 = vunpack.c.l.b16 %v2213
        %v2370 = vunpack.c.h.b16 %v2213
        %v2371 = vunpack.c.l.b16 %v2214
        %v2372 = vunpack.c.h.b16 %v2214
        %v2373 = vunpack.c.l.b16 %v2215
        %v2374 = vunpack.c.h.b16 %v2215
        %v2375 = vunpack.c.l.b16 %v2216
        %v2376 = vunpack.c.h.b16 %v2216
        %v2377 = vunpack.c.l.b16 %v2217
        %v2378 = vunpack.c.h.b16 %v2217
        %v2379 = vunpack.c.l.b16 %v2218
        %v2380 = vunpack.c.h.b16 %v2218
        %v2381 = vunpack.c.l.b16 %v2219
        %v2382 = vunpack.c.h.b16 %v2219
        %v2383 = vunpack.c.l.b16 %v2220
        %v2384 = vunpack.c.h.b16 %v2220
        %v2385 = vunpack.c.l.b16 %v2221
        %v2386 = vunpack.c.h.b16 %v2221
        %v2387 = vunpack.c.l.b16 %v2222
        %v2388 = vunpack.c.h.b16 %v2222
        %v2389 = vunpack.c.l.b16 %v2223
        %v2390 = vunpack.c.h.b16 %v2223
        %v2391 = vunpack.c.l.b16 %v2224
        %v2392 = vunpack.c.h.b16 %v2224
        %v2393 = vunpack.c.l.b16 %v2225
        %v2394 = vunpack.c.h.b16 %v2225
        %v2395 = vunpack.c.l.b16 %v2226
        %v2396 = vunpack.c.h.b16 %v2226
        %v2397 = vunpack.c.l.b16 %v2227
        %v2398 = vunpack.c.h.b16 %v2227
        %v2399 = vunpack.c.l.b16 %v2228
        %v2400 = vunpack.c.h.b16 %v2228
        %v2401 = vunpack.c.l.b16 %v2229
        %v2402 = vunpack.c.h.b16 %v2229
        %v2403 = vunpack.c.l.b16 %v2230
        %v2404 = vunpack.c.h.b16 %v2230
        %v2405 = vunpack.c.l.b16 %v2231
        %v2406 = vunpack.c.h.b16 %v2231
        %v2407 = vunpack.c.l.b16 %v2232
        %v2408 = vunpack.c.h.b16 %v2232
        %v2409 = vunpack.c.l.b16 %v2233
        %v2410 = vunpack.c.h.b16 %v2233
        %v2411 = vunpack.c.l.b16 %v2234
        %v2412 = vunpack.c.h.b16 %v2234
        %v2413 = vunpack.c.l.b16 %v2235
        %v2414 = vunpack.c.h.b16 %v2235
        %v2415 = vunpack.c.l.b16 %v2236
        %v2416 = vunpack.c.h.b16 %v2236
        %v2417 = vunpack.c.l.b16 %v2237
        %v2418 = vunpack.c.h.b16 %v2237
        %v2419 = vunpack.c.l.b16 %v2238
        %v2420 = vunpack.c.h.b16 %v2238
        %v2421 = vunpack.c.l.b16 %v2239
        %v2422 = vunpack.c.h.b16 %v2239
        %v2423 = vunpack.c.l.b16 %v2240
        %v2424 = vunpack.c.h.b16 %v2240
        %v2425 = vunpack.c.l.b16 %v2241
        %v2426 = vunpack.c.h.b16 %v2241
        %v2427 = vunpack.c.l.b16 %v2242
        %v2428 = vunpack.c.h.b16 %v2242
        %v2429 = vunpack.c.l.b16 %v2243
        %v2430 = vunpack.c.h.b16 %v2243
        %v2431 = vunpack.c.l.b16 %v2244
        %v2432 = vunpack.c.h.b16 %v2244
        %v2433 = vunpack.c.l.b16 %v2245
        %v2434 = vunpack.c.h.b16 %v2245
        %v2435 = vunpack.c.l.b16 %v2246
        %v2436 = vunpack.c.h.b16 %v2246
        %v2437 = vunpack.c.l.b16 %v2247
        %v2438 = vunpack.c.h.b16 %v2247
        %v2439 = vunpack.c.l.b16 %v2248
        %v2440 = vunpack.c.h.b16 %v2248
        %v2441 = vunpack.c.l.b16 %v2249
        %v2442 = vunpack.c.h.b16 %v2249
        %v2443 = vunpack.c.l.b16 %v2250
        %v2444 = vunpack.c.h.b16 %v2250
        %v2445 = vunpack.c.l.b16 %v2251
        %v2446 = vunpack.c.h.b16 %v2251
        %v2447 = vunpack.c.l.b16 %v2252
        %v2448 = vunpack.c.h.b16 %v2252
        %v2449 = vunpack.c.l.b16 %v2253
        %v2450 = vunpack.c.h.b16 %v2253
        %v2451 = vunpack.c.l.b16 %v2254
        %v2452 = vunpack.c.h.b16 %v2254
        %v2453 = vunpack.c.l.b16 %v2255
        %v2454 = vunpack.c.h.b16 %v2255
        %v2455 = vunpack.c.l.b16 %v2256
        %v2456 = vunpack.c.h.b16 %v2256
        %v2457 = vunpack.c.l.b16 %v2257
        %v2458 = vunpack.c.h.b16 %v2257
        %v2459 = vunpack.c.l.b16 %v2258
        %v2460 = vunpack.c.h.b16 %v2258
        %v2461 = vunpack.c.l.b16 %v2259
        %v2462 = vunpack.c.h.b16 %v2259
        %v2463 = vunpack.c.l.b16 %v2260
        %v2464 = vunpack.c.h.b16 %v2260
        %v2465 = vunpack.c.l.b16 %v2261
        %v2466 = vunpack.c.h.b16 %v2261
        %v2467 = vpack.c.b16 %v2341, %v2339
        %v2468 = vpack.c.b16 %v2342, %v2340
        %v2469 = vpack.c.b16 %v2345, %v2343
        %v2470 = vpack.c.b16 %v2346, %v2344
        %v2471 = vpack.c.b16 %v2349, %v2347
        %v2472 = vpack.c.b16 %v2350, %v2348
        %v2473 = vpack.c.b16 %v2353, %v2351
        %v2474 = vpack.c.b16 %v2354, %v2352
        %v2475 = vpack.c.b16 %v2357, %v2355
        %v2476 = vpack.c.b16 %v2358, %v2356
        %v2477 = vpack.c.b16 %v2361, %v2359
        %v2478 = vpack.c.b16 %v2362, %v2360
        %v2479 = vpack.c.b16 %v2365, %v2363
        %v2480 = vpack.c.b16 %v2366, %v2364
        %v2481 = vpack.c.b16 %v2369, %v2367
        %v2482 = vpack.c.b16 %v2370, %v2368
        %v2483 = vpack.c.b16 %v2373, %v2371
        %v2484 = vpack.c.b16 %v2374, %v2372
        %v2485 = vpack.c.b16 %v2377, %v2375
        %v2486 = vpack.c.b16 %v2378, %v2376
        %v2487 = vpack.c.b16 %v2381, %v2379
        %v2488 = vpack.c.b16 %v2382, %v2380
        %v2489 = vpack.c.b16 %v2385, %v2383
        %v2490 = vpack.c.b16 %v2386, %v2384
        %v2491 = vpack.c.b16 %v2389, %v2387
        %v2492 = vpack.c.b16 %v2390, %v2388
        %v2493 = vpack.c.b16 %v2393, %v2391
        %v2494 = vpack.c.b16 %v2394, %v2392
        %v2495 = vpack.c.b16 %v2397, %v2395
        %v2496 = vpack.c.b16 %v2398, %v2396
        %v2497 = vpack.c.b16 %v2401, %v2399
        %v2498 = vpack.c.b16 %v2402, %v2400
        %v2499 = vpack.c.b16 %v2405, %v2403
        %v2500 = vpack.c.b16 %v2406, %v2404
        %v2501 = vpack.c.b16 %v2409, %v2407
        %v2502 = vpack.c.b16 %v2410, %v2408
        %v2503 = vpack.c.b16 %v2413, %v2411
        %v2504 = vpack.c.b16 %v2414, %v2412
        %v2505 = vpack.c.b16 %v2417, %v2415
        %v2506 = vpack.c.b16 %v2418, %v2416
        %v2507 = vpack.c.b16 %v2421, %v2419
        %v2508 = vpack.c.b16 %v2422, %v2420
        %v2509 = vpack.c.b16 %v2425, %v2423
        %v2510 = vpack.c.b16 %v2426, %v2424
        %v2511 = vpack.c.b16 %v2429, %v2427
        %v2512 = vpack.c.b16 %v2430, %v2428
        %v2513 = vpack.c.b16 %v2433, %v2431
        %v2514 = vpack.c.b16 %v2434, %v2432
        %v2515 = vpack.c.b16 %v2437, %v2435
        %v2516 = vpack.c.b16 %v2438, %v2436
        %v2517 = vpack.c.b16 %v2441, %v2439
        %v2518 = vpack.c.b16 %v2442, %v2440
        %v2519 = vpack.c.b16 %v2445, %v2443
        %v2520 = vpack.c.b16 %v2446, %v2444
        %v2521 = vpack.c.b16 %v2449, %v2447
        %v2522 = vpack.c.b16 %v2450, %v2448
        %v2523 = vpack.c.b16 %v2453, %v2451
        %v2524 = vpack.c.b16 %v2454, %v2452
        %v2525 = vpack.c.b16 %v2457, %v2455
        %v2526 = vpack.c.b16 %v2458, %v2456
        %v2527 = vpack.c.b16 %v2461, %v2459
        %v2528 = vpack.c.b16 %v2462, %v2460
        %v2529 = vpack.c.b16 %v2465, %v2463
        %v2530 = vpack.c.b16 %v2466, %v2464
        %2595 = vmatprep.subr.bf16.mxu0 %v2482
        %2596 = vmatpush1.bf16.msra.mxu0 %v2481
        %2597 = vmatprep.subr.bf16.mxu0 %v2480
        %2598 = vmatpush1.bf16.msra.mxu0 %v2479
        %2599 = vmatprep.subr.bf16.mxu0 %v2478
        %2600 = vmatpush1.bf16.msra.mxu0 %v2477
        %2601 = vmatprep.subr.bf16.mxu0 %v2476
        %2602 = vmatpush1.bf16.msra.mxu0 %v2475
        %2603 = vmatprep.subr.bf16.mxu0 %v2474
        %2604 = vmatpush1.bf16.msra.mxu0 %v2473
        %2605 = vmatprep.subr.bf16.mxu0 %v2472
        %2606 = vmatpush1.bf16.msra.mxu0 %v2471
        %2607 = vmatprep.subr.bf16.mxu0 %v2470
        %2608 = vmatpush1.bf16.msra.mxu0 %v2469
        %2609 = vmatprep.subr.bf16.mxu0 %v2468
        %2610 = vmatpush1.bf16.msra.mxu0 %v2467
        %2611 = vmatprep.subr.bf16.mxu0 %v2498
        %2612 = vmatpush2.bf16.msra.mxu0 %v2497
        %2613 = vmatprep.subr.bf16.mxu0 %v2496
        %2614 = vmatpush2.bf16.msra.mxu0 %v2495
        %2615 = vmatprep.subr.bf16.mxu0 %v2494
        %2616 = vmatpush2.bf16.msra.mxu0 %v2493
        %2617 = vmatprep.subr.bf16.mxu0 %v2492
        %2618 = vmatpush2.bf16.msra.mxu0 %v2491
        %2619 = vmatprep.subr.bf16.mxu0 %v2490
        %2620 = vmatpush2.bf16.msra.mxu0 %v2489
        %2621 = vmatprep.subr.bf16.mxu0 %v2488
        %2622 = vmatpush2.bf16.msra.mxu0 %v2487
        %2623 = vmatprep.subr.bf16.mxu0 %v2486
        %2624 = vmatpush2.bf16.msra.mxu0 %v2485
        %2625 = vmatprep.subr.bf16.mxu0 %v2484
        %2626 = vmatpush2.bf16.msra.mxu0 %v2483
        %2627 = vmatprep.mubr.bf16.mxu0 %v2195
        %2628 = vmatmul.mubr.bf16.gmra.mxu0 %v2194
        %v2629 = vpop.f32.mrf.mxu0
        %v2630 = vadd.f32 %v2268, %v2629
        %v2631 = vpop.f32.mrf.mxu0
        %v2632 = vadd.f32 %v2272, %v2631
        %v2633 = vpop.f32.mrf.mxu0
        %v2634 = vpop.f32.mrf.mxu0
        %2635 = vdwg.mxu0
        %2636 = vmatprep.subr.bf16.mxu0 %v2514
        %2637 = vmatpush1.bf16.msra.mxu0 %v2513
        %2638 = vmatprep.subr.bf16.mxu0 %v2512
        %2639 = vmatpush1.bf16.msra.mxu0 %v2511
        %2640 = vmatprep.subr.bf16.mxu0 %v2510
        %2641 = vmatpush1.bf16.msra.mxu0 %v2509
        %2642 = vmatprep.subr.bf16.mxu0 %v2508
        %2643 = vmatpush1.bf16.msra.mxu0 %v2507
        %2644 = vmatprep.subr.bf16.mxu0 %v2506
        %2645 = vmatpush1.bf16.msra.mxu0 %v2505
        %2646 = vmatprep.subr.bf16.mxu0 %v2504
        %2647 = vmatpush1.bf16.msra.mxu0 %v2503
        %2648 = vmatprep.subr.bf16.mxu0 %v2502
        %2649 = vmatpush1.bf16.msra.mxu0 %v2501
        %2650 = vmatprep.subr.bf16.mxu0 %v2500
        %2651 = vmatpush1.bf16.msra.mxu0 %v2499
        %2652 = vmatprep.subr.bf16.mxu0 %v2530
        %2653 = vmatpush2.bf16.msra.mxu0 %v2529
        %2654 = vmatprep.subr.bf16.mxu0 %v2528
        %2655 = vmatpush2.bf16.msra.mxu0 %v2527
        %2656 = vmatprep.subr.bf16.mxu0 %v2526
        %2657 = vmatpush2.bf16.msra.mxu0 %v2525
        %2658 = vmatprep.subr.bf16.mxu0 %v2524
        %2659 = vmatpush2.bf16.msra.mxu0 %v2523
        %2660 = vmatprep.subr.bf16.mxu0 %v2522
        %2661 = vmatpush2.bf16.msra.mxu0 %v2521
        %2662 = vmatprep.subr.bf16.mxu0 %v2520
        %2663 = vmatpush2.bf16.msra.mxu0 %v2519
        %2664 = vmatprep.subr.bf16.mxu0 %v2518
        %2665 = vmatpush2.bf16.msra.mxu0 %v2517
        %2666 = vmatprep.subr.bf16.mxu0 %v2516
        %2667 = vmatpush2.bf16.msra.mxu0 %v2515
        %2668 = vmatprep.mubr.bf16.mxu0 %v2197
        %2669 = vmatmul.mubr.bf16.gmra.mxu0 %v2196
        %v2670 = vpop.f32.mrf.mxu0
        %v2671 = vadd.f32 %v2630, %v2670
        %v2672 = vpop.f32.mrf.mxu0
        %v2673 = vadd.f32 %v2632, %v2672
        %v2674 = vpop.f32.mrf.mxu0
        %v2675 = vpop.f32.mrf.mxu0
        %2676 = vdwg.mxu0
        %v2677 = vmax.f32 %v2671, 0.0
        %v2678 = vmax.f32 %v2673, 0.0
        %v2679 = vpack.c.bf16 %v2677, %v2677
        %v2680 = vpack.c.bf16 %v2678, %v2678
        %v2681 = vld [vmem:[%s3] sm:$0xf]
        %v2682 = vld [vmem:[%s3 + $0x4] sm:$0xf]
        %v2683 = vld [vmem:[%s3 + $0x8] sm:$0xf]
        %v2684 = vld [vmem:[%s3 + $0xc] sm:$0xf]
        %v2685 = vld [vmem:[%s3 + $0x10] sm:$0xf]
        %v2686 = vld [vmem:[%s3 + $0x14] sm:$0xf]
        %v2687 = vld [vmem:[%s3 + $0x18] sm:$0xf]
        %v2688 = vld [vmem:[%s3 + $0x1c] sm:$0xf]
        %v2689 = vld [vmem:[%s3 + $0x20] sm:$0xf]
        %v2690 = vld [vmem:[%s3 + $0x24] sm:$0xf]
        %v2691 = vld [vmem:[%s3 + $0x28] sm:$0xf]
        %v2692 = vld [vmem:[%s3 + $0x2c] sm:$0xf]
        %v2693 = vld [vmem:[%s3 + $0x30] sm:$0xf]
        %v2694 = vld [vmem:[%s3 + $0x34] sm:$0xf]
        %v2695 = vld [vmem:[%s3 + $0x38] sm:$0xf]
        %v2696 = vld [vmem:[%s3 + $0x3c] sm:$0xf]
        %v2697 = vld [vmem:[%s3 + $0x40] sm:$0xf]
        %v2698 = vld [vmem:[%s3 + $0x44] sm:$0xf]
        %v2699 = vld [vmem:[%s3 + $0x48] sm:$0xf]
        %v2700 = vld [vmem:[%s3 + $0x4c] sm:$0xf]
        %v2701 = vld [vmem:[%s3 + $0x50] sm:$0xf]
        %v2702 = vld [vmem:[%s3 + $0x54] sm:$0xf]
        %v2703 = vld [vmem:[%s3 + $0x58] sm:$0xf]
        %v2704 = vld [vmem:[%s3 + $0x5c] sm:$0xf]
        %v2705 = vld [vmem:[%s3 + $0x60] sm:$0xf]
        %v2706 = vld [vmem:[%s3 + $0x64] sm:$0xf]
        %v2707 = vld [vmem:[%s3 + $0x68] sm:$0xf]
        %v2708 = vld [vmem:[%s3 + $0x6c] sm:$0xf]
        %v2709 = vld [vmem:[%s3 + $0x70] sm:$0xf]
        %v2710 = vld [vmem:[%s3 + $0x74] sm:$0xf]
        %v2711 = vld [vmem:[%s3 + $0x78] sm:$0xf]
        %v2712 = vld [vmem:[%s3 + $0x7c] sm:$0xf]
        %v2713 = vld [vmem:[%s13 + $0x2] ss:$0 sm:$0xff]
        %v2746 = vunpack.c.l.b16 %v2681
        %v2747 = vunpack.c.l.b16 %v2682
        %v2748 = vunpack.c.l.b16 %v2683
        %v2749 = vunpack.c.l.b16 %v2684
        %v2750 = vunpack.c.l.b16 %v2685
        %v2751 = vunpack.c.l.b16 %v2686
        %v2752 = vunpack.c.l.b16 %v2687
        %v2753 = vunpack.c.l.b16 %v2688
        %v2754 = vunpack.c.l.b16 %v2689
        %v2755 = vunpack.c.l.b16 %v2690
        %v2756 = vunpack.c.l.b16 %v2691
        %v2757 = vunpack.c.l.b16 %v2692
        %v2758 = vunpack.c.l.b16 %v2693
        %v2759 = vunpack.c.l.b16 %v2694
        %v2760 = vunpack.c.l.b16 %v2695
        %v2761 = vunpack.c.l.b16 %v2696
        %v2762 = vunpack.c.l.b16 %v2697
        %v2763 = vunpack.c.l.b16 %v2698
        %v2764 = vunpack.c.l.b16 %v2699
        %v2765 = vunpack.c.l.b16 %v2700
        %v2766 = vunpack.c.l.b16 %v2701
        %v2767 = vunpack.c.l.b16 %v2702
        %v2768 = vunpack.c.l.b16 %v2703
        %v2769 = vunpack.c.l.b16 %v2704
        %v2770 = vunpack.c.l.b16 %v2705
        %v2771 = vunpack.c.l.b16 %v2706
        %v2772 = vunpack.c.l.b16 %v2707
        %v2773 = vunpack.c.l.b16 %v2708
        %v2774 = vunpack.c.l.b16 %v2709
        %v2775 = vunpack.c.l.b16 %v2710
        %v2776 = vunpack.c.l.b16 %v2711
        %v2777 = vunpack.c.l.b16 %v2712
        %v2778 = vpack.c.b16 %v2747, %v2746
        %v2779 = vpack.c.b16 %v2749, %v2748
        %v2780 = vpack.c.b16 %v2751, %v2750
        %v2781 = vpack.c.b16 %v2753, %v2752
        %v2782 = vpack.c.b16 %v2755, %v2754
        %v2783 = vpack.c.b16 %v2757, %v2756
        %v2784 = vpack.c.b16 %v2759, %v2758
        %v2785 = vpack.c.b16 %v2761, %v2760
        %v2786 = vpack.c.b16 %v2763, %v2762
        %v2787 = vpack.c.b16 %v2765, %v2764
        %v2788 = vpack.c.b16 %v2767, %v2766
        %v2789 = vpack.c.b16 %v2769, %v2768
        %v2790 = vpack.c.b16 %v2771, %v2770
        %v2791 = vpack.c.b16 %v2773, %v2772
        %v2792 = vpack.c.b16 %v2775, %v2774
        %v2793 = vpack.c.b16 %v2777, %v2776
        %2810 = vmatprep.subr.bf16.mxu0 0
        %2811 = vmatpush1.bf16.msra.mxu0 %v2785
        %2812 = vmatprep.subr.bf16.mxu0 0
        %2813 = vmatpush1.bf16.msra.mxu0 %v2784
        %2814 = vmatprep.subr.bf16.mxu0 0
        %2815 = vmatpush1.bf16.msra.mxu0 %v2783
        %2816 = vmatprep.subr.bf16.mxu0 0
        %2817 = vmatpush1.bf16.msra.mxu0 %v2782
        %2818 = vmatprep.subr.bf16.mxu0 0
        %2819 = vmatpush1.bf16.msra.mxu0 %v2781
        %2820 = vmatprep.subr.bf16.mxu0 0
        %2821 = vmatpush1.bf16.msra.mxu0 %v2780
        %2822 = vmatprep.subr.bf16.mxu0 0
        %2823 = vmatpush1.bf16.msra.mxu0 %v2779
        %2824 = vmatprep.subr.bf16.mxu0 0
        %2825 = vmatpush1.bf16.msra.mxu0 %v2778
        %2826 = vmatprep.subr.bf16.mxu0 0
        %2827 = vmatpush2.bf16.msra.mxu0 %v2793
        %2828 = vmatprep.subr.bf16.mxu0 0
        %2829 = vmatpush2.bf16.msra.mxu0 %v2792
        %2830 = vmatprep.subr.bf16.mxu0 0
        %2831 = vmatpush2.bf16.msra.mxu0 %v2791
        %2832 = vmatprep.subr.bf16.mxu0 0
        %2833 = vmatpush2.bf16.msra.mxu0 %v2790
        %2834 = vmatprep.subr.bf16.mxu0 0
        %2835 = vmatpush2.bf16.msra.mxu0 %v2789
        %2836 = vmatprep.subr.bf16.mxu0 0
        %2837 = vmatpush2.bf16.msra.mxu0 %v2788
        %2838 = vmatprep.subr.bf16.mxu0 0
        %2839 = vmatpush2.bf16.msra.mxu0 %v2787
        %2840 = vmatprep.subr.bf16.mxu0 0
        %2841 = vmatpush2.bf16.msra.mxu0 %v2786
        %2842 = vmatprep.mubr.bf16.mxu0 %v2680
        %2843 = vmatmul.mubr.bf16.gmra.mxu0 %v2679
        %v2844 = vpop.f32.mrf.mxu0
        %v2845 = vadd.f32 %v2713, %v2844
        %v2846 = vpop.f32.mrf.mxu0
        %v2847 = vpop.f32.mrf.mxu0
        %v2848 = vpop.f32.mrf.mxu0
        %2849 = vdwg.mxu0
        %v2850 = vmax.f32 %v2845, 0.0
        %v2851 = vpack.c.bf16 %v2850, %v2850
        %v2852 = vld [vmem:[%s4] sm:$0xf]
        %v2853 = vld [vmem:[%s4 + $0x4] sm:$0xf]
        %v2854 = vld [vmem:[%s4 + $0x8] sm:$0xf]
        %v2855 = vld [vmem:[%s4 + $0xc] sm:$0xf]
        %v2856 = vld [vmem:[%s4 + $0x10] sm:$0xf]
        %v2857 = vld [vmem:[%s4 + $0x14] sm:$0xf]
        %v2858 = vld [vmem:[%s4 + $0x18] sm:$0xf]
        %v2859 = vld [vmem:[%s4 + $0x1c] sm:$0xf]
        %v2860 = vld [vmem:[%s4 + $0x20] sm:$0xf]
        %v2861 = vld [vmem:[%s4 + $0x24] sm:$0xf]
        %v2862 = vld [vmem:[%s4 + $0x28] sm:$0xf]
        %v2863 = vld [vmem:[%s4 + $0x2c] sm:$0xf]
        %v2864 = vld [vmem:[%s4 + $0x30] sm:$0xf]
        %v2865 = vld [vmem:[%s4 + $0x34] sm:$0xf]
        %v2866 = vld [vmem:[%s4 + $0x38] sm:$0xf]
        %v2867 = vld [vmem:[%s4 + $0x3c] sm:$0xf]
        %v2868 = vld [vmem:[%s13 + $0x3] ss:$0 sm:$0xff]
        %v2885 = vunpack.c.l.b16 %v2852
        %v2886 = vunpack.c.l.b16 %v2853
        %v2887 = vunpack.c.l.b16 %v2854
        %v2888 = vunpack.c.l.b16 %v2855
        %v2889 = vunpack.c.l.b16 %v2856
        %v2890 = vunpack.c.l.b16 %v2857
        %v2891 = vunpack.c.l.b16 %v2858
        %v2892 = vunpack.c.l.b16 %v2859
        %v2893 = vunpack.c.l.b16 %v2860
        %v2894 = vunpack.c.l.b16 %v2861
        %v2895 = vunpack.c.l.b16 %v2862
        %v2896 = vunpack.c.l.b16 %v2863
        %v2897 = vunpack.c.l.b16 %v2864
        %v2898 = vunpack.c.l.b16 %v2865
        %v2899 = vunpack.c.l.b16 %v2866
        %v2900 = vunpack.c.l.b16 %v2867
        %v2901 = vpack.c.b16 %v2886, %v2885
        %v2902 = vpack.c.b16 %v2888, %v2887
        %v2903 = vpack.c.b16 %v2890, %v2889
        %v2904 = vpack.c.b16 %v2892, %v2891
        %v2905 = vpack.c.b16 %v2894, %v2893
        %v2906 = vpack.c.b16 %v2896, %v2895
        %v2907 = vpack.c.b16 %v2898, %v2897
        %v2908 = vpack.c.b16 %v2900, %v2899
        %2917 = vmatprep.subr.bf16.mxu0 0
        %2918 = vmatpush1.bf16.msra.mxu0 %v2908
        %2919 = vmatprep.subr.bf16.mxu0 0
        %2920 = vmatpush1.bf16.msra.mxu0 %v2907
        %2921 = vmatprep.subr.bf16.mxu0 0
        %2922 = vmatpush1.bf16.msra.mxu0 %v2906
        %2923 = vmatprep.subr.bf16.mxu0 0
        %2924 = vmatpush1.bf16.msra.mxu0 %v2905
        %2925 = vmatprep.subr.bf16.mxu0 0
        %2926 = vmatpush1.bf16.msra.mxu0 %v2904
        %2927 = vmatprep.subr.bf16.mxu0 0
        %2928 = vmatpush1.bf16.msra.mxu0 %v2903
        %2929 = vmatprep.subr.bf16.mxu0 0
        %2930 = vmatpush1.bf16.msra.mxu0 %v2902
        %2931 = vmatprep.subr.bf16.mxu0 0
        %2932 = vmatpush1.bf16.msra.mxu0 %v2901
        %2933 = vmatprep.subr.bf16.mxu0 0
        %2934 = vmatpush2.bf16.msra.mxu0 0
        %2935 = vmatprep.subr.bf16.mxu0 0
        %2936 = vmatpush2.bf16.msra.mxu0 0
        %2937 = vmatprep.subr.bf16.mxu0 0
        %2938 = vmatpush2.bf16.msra.mxu0 0
        %2939 = vmatprep.subr.bf16.mxu0 0
        %2940 = vmatpush2.bf16.msra.mxu0 0
        %2941 = vmatprep.subr.bf16.mxu0 0
        %2942 = vmatpush2.bf16.msra.mxu0 0
        %2943 = vmatprep.subr.bf16.mxu0 0
        %2944 = vmatpush2.bf16.msra.mxu0 0
        %2945 = vmatprep.subr.bf16.mxu0 0
        %2946 = vmatpush2.bf16.msra.mxu0 0
        %2947 = vmatprep.subr.bf16.mxu0 0
        %2948 = vmatpush2.bf16.msra.mxu0 0
        %2949 = vmatprep.mubr.bf16.mxu0 0
        %2950 = vmatmul.mubr.bf16.gmra.mxu0 %v2851
        %v2951 = vpop.f32.mrf.mxu0
        %v2952 = vadd.f32 %v2868, %v2951
        %v2953 = vpop.f32.mrf.mxu0
        %v2954 = vpop.f32.mrf.mxu0
        %v2955 = vpop.f32.mrf.mxu0
        %2956 = vdwg.mxu0
        %v2957 = vmax.f32 %v2952, 0.0
        %v2958 = vpack.c.bf16 %v2957, %v2957
        %v2959 = vld [vmem:[%s5] sm:$0xf]
        %v2960 = vld [vmem:[%s5 + $0x4] sm:$0xf]
        %v2961 = vld [vmem:[%s5 + $0x8] sm:$0xf]
        %v2962 = vld [vmem:[%s5 + $0xc] sm:$0xf]
        %v2963 = vld [vmem:[%s5 + $0x10] sm:$0xf]
        %v2964 = vld [vmem:[%s5 + $0x14] sm:$0xf]
        %v2965 = vld [vmem:[%s5 + $0x18] sm:$0xf]
        %v2966 = vld [vmem:[%s5 + $0x1c] sm:$0xf]
        %v2967 = vld [vmem:[%s13 + $0x4] ss:$0 sm:$0xff]
        %v2976 = vunpack.c.l.b16 %v2959
        %v2977 = vunpack.c.l.b16 %v2960
        %v2978 = vunpack.c.l.b16 %v2961
        %v2979 = vunpack.c.l.b16 %v2962
        %v2980 = vunpack.c.l.b16 %v2963
        %v2981 = vunpack.c.l.b16 %v2964
        %v2982 = vunpack.c.l.b16 %v2965
        %v2983 = vunpack.c.l.b16 %v2966
        %v2984 = vpack.c.b16 %v2977, %v2976
        %v2985 = vpack.c.b16 %v2979, %v2978
        %v2986 = vpack.c.b16 %v2981, %v2980
        %v2987 = vpack.c.b16 %v2983, %v2982
        %vm2992 = vcmask 523264
        %v2994 = vsel %vm2992, %v2958, 0
        %2996 = vmatprep.subr.bf16.mxu0 0
        %2997 = vmatpush1.bf16.msra.mxu0 0
        %2998 = vmatprep.subr.bf16.mxu0 0
        %2999 = vmatpush1.bf16.msra.mxu0 0
        %3000 = vmatprep.subr.bf16.mxu0 0
        %3001 = vmatpush1.bf16.msra.mxu0 0
        %3002 = vmatprep.subr.bf16.mxu0 0
        %3003 = vmatpush1.bf16.msra.mxu0 0
        %3004 = vmatprep.subr.bf16.mxu0 0
        %3005 = vmatpush1.bf16.msra.mxu0 %v2987
        %3006 = vmatprep.subr.bf16.mxu0 0
        %3007 = vmatpush1.bf16.msra.mxu0 %v2986
        %3008 = vmatprep.subr.bf16.mxu0 0
        %3009 = vmatpush1.bf16.msra.mxu0 %v2985
        %3010 = vmatprep.subr.bf16.mxu0 0
        %3011 = vmatpush1.bf16.msra.mxu0 %v2984
        %3012 = vmatprep.subr.bf16.mxu0 0
        %3013 = vmatpush2.bf16.msra.mxu0 0
        %3014 = vmatprep.subr.bf16.mxu0 0
        %3015 = vmatpush2.bf16.msra.mxu0 0
        %3016 = vmatprep.subr.bf16.mxu0 0
        %3017 = vmatpush2.bf16.msra.mxu0 0
        %3018 = vmatprep.subr.bf16.mxu0 0
        %3019 = vmatpush2.bf16.msra.mxu0 0
        %3020 = vmatprep.subr.bf16.mxu0 0
        %3021 = vmatpush2.bf16.msra.mxu0 0
        %3022 = vmatprep.subr.bf16.mxu0 0
        %3023 = vmatpush2.bf16.msra.mxu0 0
        %3024 = vmatprep.subr.bf16.mxu0 0
        %3025 = vmatpush2.bf16.msra.mxu0 0
        %3026 = vmatprep.subr.bf16.mxu0 0
        %3027 = vmatpush2.bf16.msra.mxu0 0
        %3028 = vmatprep.mubr.bf16.mxu0 0
        %3029 = vmatmul.mubr.bf16.gmra.mxu0 %v2994
        %v3030 = vpop.f32.mrf.mxu0
        %v3031 = vadd.f32 %v2967, %v3030
        %v3032 = vpop.f32.mrf.mxu0
        %v3033 = vpop.f32.mrf.mxu0
        %v3034 = vpop.f32.mrf.mxu0
        %3035 = vdwg.mxu0
        %v3036 = vmax.f32 %v3031, 0.0
        %v3037 = vpack.c.bf16 %v3036, %v3036
        %v3038 = vld [vmem:[%s6] sm:$0xf]
        %v3039 = vld [vmem:[%s6 + $0x4] sm:$0xf]
        %v3040 = vld [vmem:[%s6 + $0x8] sm:$0xf]
        %v3041 = vld [vmem:[%s6 + $0xc] sm:$0xf]
        %v3042 = vld [vmem:[%s13 + $0x5] ss:$0 sm:$0xff]
        %v3047 = vunpack.c.l.b16 %v3038
        %v3048 = vunpack.c.l.b16 %v3039
        %v3049 = vunpack.c.l.b16 %v3040
        %v3050 = vunpack.c.l.b16 %v3041
        %v3051 = vpack.c.b16 %v3048, %v3047
        %v3052 = vpack.c.b16 %v3050, %v3049
        %vm3055 = vcmask 261120
        %v3057 = vsel %vm3055, %v3037, 0
        %3059 = vmatprep.subr.bf16.mxu0 0
        %3060 = vmatpush1.bf16.msra.mxu0 0
        %3061 = vmatprep.subr.bf16.mxu0 0
        %3062 = vmatpush1.bf16.msra.mxu0 0
        %3063 = vmatprep.subr.bf16.mxu0 0
        %3064 = vmatpush1.bf16.msra.mxu0 0
        %3065 = vmatprep.subr.bf16.mxu0 0
        %3066 = vmatpush1.bf16.msra.mxu0 0
        %3067 = vmatprep.subr.bf16.mxu0 0
        %3068 = vmatpush1.bf16.msra.mxu0 0
        %3069 = vmatprep.subr.bf16.mxu0 0
        %3070 = vmatpush1.bf16.msra.mxu0 0
        %3071 = vmatprep.subr.bf16.mxu0 0
        %3072 = vmatpush1.bf16.msra.mxu0 %v3052
        %3073 = vmatprep.subr.bf16.mxu0 0
        %3074 = vmatpush1.bf16.msra.mxu0 %v3051
        %3075 = vmatprep.subr.bf16.mxu0 0
        %3076 = vmatpush2.bf16.msra.mxu0 0
        %3077 = vmatprep.subr.bf16.mxu0 0
        %3078 = vmatpush2.bf16.msra.mxu0 0
        %3079 = vmatprep.subr.bf16.mxu0 0
        %3080 = vmatpush2.bf16.msra.mxu0 0
        %3081 = vmatprep.subr.bf16.mxu0 0
        %3082 = vmatpush2.bf16.msra.mxu0 0
        %3083 = vmatprep.subr.bf16.mxu0 0
        %3084 = vmatpush2.bf16.msra.mxu0 0
        %3085 = vmatprep.subr.bf16.mxu0 0
        %3086 = vmatpush2.bf16.msra.mxu0 0
        %3087 = vmatprep.subr.bf16.mxu0 0
        %3088 = vmatpush2.bf16.msra.mxu0 0
        %3089 = vmatprep.subr.bf16.mxu0 0
        %3090 = vmatpush2.bf16.msra.mxu0 0
        %3091 = vmatprep.mubr.bf16.mxu0 0
        %3092 = vmatmul.mubr.bf16.gmra.mxu0 %v3057
        %v3093 = vpop.f32.mrf.mxu0
        %v3094 = vadd.f32 %v3042, %v3093
        %v3095 = vpop.f32.mrf.mxu0
        %v3096 = vpop.f32.mrf.mxu0
        %v3097 = vpop.f32.mrf.mxu0
        %3098 = vdwg.mxu0
        %v3099 = vpack.c.bf16 %v3094, %v3094
        %v3100 = vld [vmem:[%s7] sm:$0xf]
        %v3101 = vld [vmem:[%s7 + $0x4] sm:$0xf]
        %v3102 = vld [vmem:[%s13 + $0x6] ss:$0 sm:$0xff]
        %v3105 = vunpack.c.l.b16 %v3100
        %v3106 = vunpack.c.l.b16 %v3101
        %v3107 = vpack.c.b16 %v3106, %v3105
        %vm3109 = vcmask 130048
        %v3111 = vsel %vm3109, %v3099, 0
        %3113 = vmatprep.subr.bf16.mxu0 0
        %3114 = vmatpush1.bf16.msra.mxu0 0
        %3115 = vmatprep.subr.bf16.mxu0 0
        %3116 = vmatpush1.bf16.msra.mxu0 0
        %3117 = vmatprep.subr.bf16.mxu0 0
        %3118 = vmatpush1.bf16.msra.mxu0 0
        %3119 = vmatprep.subr.bf16.mxu0 0
        %3120 = vmatpush1.bf16.msra.mxu0 0
        %3121 = vmatprep.subr.bf16.mxu0 0
        %3122 = vmatpush1.bf16.msra.mxu0 0
        %3123 = vmatprep.subr.bf16.mxu0 0
        %3124 = vmatpush1.bf16.msra.mxu0 0
        %3125 = vmatprep.subr.bf16.mxu0 0
        %3126 = vmatpush1.bf16.msra.mxu0 0
        %3127 = vmatprep.subr.bf16.mxu0 0
        %3128 = vmatpush1.bf16.msra.mxu0 %v3107
        %3129 = vmatprep.subr.bf16.mxu0 0
        %3130 = vmatpush2.bf16.msra.mxu0 0
        %3131 = vmatprep.subr.bf16.mxu0 0
        %3132 = vmatpush2.bf16.msra.mxu0 0
        %3133 = vmatprep.subr.bf16.mxu0 0
        %3134 = vmatpush2.bf16.msra.mxu0 0
        %3135 = vmatprep.subr.bf16.mxu0 0
        %3136 = vmatpush2.bf16.msra.mxu0 0
        %3137 = vmatprep.subr.bf16.mxu0 0
        %3138 = vmatpush2.bf16.msra.mxu0 0
        %3139 = vmatprep.subr.bf16.mxu0 0
        %3140 = vmatpush2.bf16.msra.mxu0 0
        %3141 = vmatprep.subr.bf16.mxu0 0
        %3142 = vmatpush2.bf16.msra.mxu0 0
        %3143 = vmatprep.subr.bf16.mxu0 0
        %3144 = vmatpush2.bf16.msra.mxu0 0
        %3145 = vmatprep.mubr.bf16.mxu0 0
        %3146 = vmatmul.mubr.bf16.gmra.mxu0 %v3111
        %v3147 = vpop.f32.mrf.mxu0
        %v3148 = vadd.f32 %v3102, %v3147
        %v3149 = vpop.f32.mrf.mxu0
        %v3150 = vpop.f32.mrf.mxu0
        %v3151 = vpop.f32.mrf.mxu0
        %3152 = vdwg.mxu0
        %v3153 = vmax.f32 %v3148, 0.0
        %v3154 = vpack.c.bf16 %v3153, %v3153
        %v3155 = vld [vmem:[%s8] sm:$0xf]
        %v3156 = vld [vmem:[%s8 + $0x4] sm:$0xf]
        %v3157 = vld [vmem:[%s8 + $0x8] sm:$0xf]
        %v3158 = vld [vmem:[%s8 + $0xc] sm:$0xf]
        %v3159 = vld [vmem:[%s13 + $0x7] ss:$0 sm:$0xff]
        %v3164 = vunpack.c.l.b16 %v3155
        %v3165 = vunpack.c.l.b16 %v3156
        %v3166 = vunpack.c.l.b16 %v3157
        %v3167 = vunpack.c.l.b16 %v3158
        %v3168 = vpack.c.b16 %v3165, %v3164
        %v3169 = vpack.c.b16 %v3167, %v3166
        %v3173 = vsel %vm3055, %v3154, 0
        %3175 = vmatprep.subr.bf16.mxu0 0
        %3176 = vmatpush1.bf16.msra.mxu0 0
        %3177 = vmatprep.subr.bf16.mxu0 0
        %3178 = vmatpush1.bf16.msra.mxu0 0
        %3179 = vmatprep.subr.bf16.mxu0 0
        %3180 = vmatpush1.bf16.msra.mxu0 0
        %3181 = vmatprep.subr.bf16.mxu0 0
        %3182 = vmatpush1.bf16.msra.mxu0 0
        %3183 = vmatprep.subr.bf16.mxu0 0
        %3184 = vmatpush1.bf16.msra.mxu0 0
        %3185 = vmatprep.subr.bf16.mxu0 0
        %3186 = vmatpush1.bf16.msra.mxu0 0
        %3187 = vmatprep.subr.bf16.mxu0 0
        %3188 = vmatpush1.bf16.msra.mxu0 %v3169
        %3189 = vmatprep.subr.bf16.mxu0 0
        %3190 = vmatpush1.bf16.msra.mxu0 %v3168
        %3191 = vmatprep.subr.bf16.mxu0 0
        %3192 = vmatpush2.bf16.msra.mxu0 0
        %3193 = vmatprep.subr.bf16.mxu0 0
        %3194 = vmatpush2.bf16.msra.mxu0 0
        %3195 = vmatprep.subr.bf16.mxu0 0
        %3196 = vmatpush2.bf16.msra.mxu0 0
        %3197 = vmatprep.subr.bf16.mxu0 0
        %3198 = vmatpush2.bf16.msra.mxu0 0
        %3199 = vmatprep.subr.bf16.mxu0 0
        %3200 = vmatpush2.bf16.msra.mxu0 0
        %3201 = vmatprep.subr.bf16.mxu0 0
        %3202 = vmatpush2.bf16.msra.mxu0 0
        %3203 = vmatprep.subr.bf16.mxu0 0
        %3204 = vmatpush2.bf16.msra.mxu0 0
        %3205 = vmatprep.subr.bf16.mxu0 0
        %3206 = vmatpush2.bf16.msra.mxu0 0
        %3207 = vmatprep.mubr.bf16.mxu0 0
        %3208 = vmatmul.mubr.bf16.gmra.mxu0 %v3173
        %v3209 = vpop.f32.mrf.mxu0
        %v3210 = vadd.f32 %v3159, %v3209
        %v3211 = vpop.f32.mrf.mxu0
        %v3212 = vpop.f32.mrf.mxu0
        %v3213 = vpop.f32.mrf.mxu0
        %3214 = vdwg.mxu0
        %v3215 = vmax.f32 %v3210, 0.0
        %v3216 = vpack.c.bf16 %v3215, %v3215
        %v3217 = vld [vmem:[%s9] sm:$0xf]
        %v3218 = vld [vmem:[%s9 + $0x4] sm:$0xf]
        %v3219 = vld [vmem:[%s9 + $0x8] sm:$0xf]
        %v3220 = vld [vmem:[%s9 + $0xc] sm:$0xf]
        %v3221 = vld [vmem:[%s9 + $0x10] sm:$0xf]
        %v3222 = vld [vmem:[%s9 + $0x14] sm:$0xf]
        %v3223 = vld [vmem:[%s9 + $0x18] sm:$0xf]
        %v3224 = vld [vmem:[%s9 + $0x1c] sm:$0xf]
        %v3225 = vld [vmem:[%s13 + $0x38] ss:$0 sm:$0xff]
        %v3234 = vunpack.c.l.b16 %v3217
        %v3235 = vunpack.c.l.b16 %v3218
        %v3236 = vunpack.c.l.b16 %v3219
        %v3237 = vunpack.c.l.b16 %v3220
        %v3238 = vunpack.c.l.b16 %v3221
        %v3239 = vunpack.c.l.b16 %v3222
        %v3240 = vunpack.c.l.b16 %v3223
        %v3241 = vunpack.c.l.b16 %v3224
        %v3242 = vpack.c.b16 %v3235, %v3234
        %v3243 = vpack.c.b16 %v3237, %v3236
        %v3244 = vpack.c.b16 %v3239, %v3238
        %v3245 = vpack.c.b16 %v3241, %v3240
        %v3251 = vsel %vm2992, %v3216, 0
        %3253 = vmatprep.subr.bf16.mxu0 0
        %3254 = vmatpush1.bf16.msra.mxu0 0
        %3255 = vmatprep.subr.bf16.mxu0 0
        %3256 = vmatpush1.bf16.msra.mxu0 0
        %3257 = vmatprep.subr.bf16.mxu0 0
        %3258 = vmatpush1.bf16.msra.mxu0 0
        %3259 = vmatprep.subr.bf16.mxu0 0
        %3260 = vmatpush1.bf16.msra.mxu0 0
        %3261 = vmatprep.subr.bf16.mxu0 0
        %3262 = vmatpush1.bf16.msra.mxu0 %v3245
        %3263 = vmatprep.subr.bf16.mxu0 0
        %3264 = vmatpush1.bf16.msra.mxu0 %v3244
        %3265 = vmatprep.subr.bf16.mxu0 0
        %3266 = vmatpush1.bf16.msra.mxu0 %v3243
        %3267 = vmatprep.subr.bf16.mxu0 0
        %3268 = vmatpush1.bf16.msra.mxu0 %v3242
        %3269 = vmatprep.subr.bf16.mxu0 0
        %3270 = vmatpush2.bf16.msra.mxu0 0
        %3271 = vmatprep.subr.bf16.mxu0 0
        %3272 = vmatpush2.bf16.msra.mxu0 0
        %3273 = vmatprep.subr.bf16.mxu0 0
        %3274 = vmatpush2.bf16.msra.mxu0 0
        %3275 = vmatprep.subr.bf16.mxu0 0
        %3276 = vmatpush2.bf16.msra.mxu0 0
        %3277 = vmatprep.subr.bf16.mxu0 0
        %3278 = vmatpush2.bf16.msra.mxu0 0
        %3279 = vmatprep.subr.bf16.mxu0 0
        %3280 = vmatpush2.bf16.msra.mxu0 0
        %3281 = vmatprep.subr.bf16.mxu0 0
        %3282 = vmatpush2.bf16.msra.mxu0 0
        %3283 = vmatprep.subr.bf16.mxu0 0
        %3284 = vmatpush2.bf16.msra.mxu0 0
        %3285 = vmatprep.mubr.bf16.mxu0 0
        %3286 = vmatmul.mubr.bf16.gmra.mxu0 %v3251
        %v3287 = vpop.f32.mrf.mxu0
        %v3288 = vadd.f32 %v3225, %v3287
        %v3289 = vpop.f32.mrf.mxu0
        %v3290 = vpop.f32.mrf.mxu0
        %v3291 = vpop.f32.mrf.mxu0
        %3292 = vdwg.mxu0
        %v3293 = vmax.f32 %v3288, 0.0
        %v3294 = vpack.c.bf16 %v3293, %v3293
        %v3295 = vld [vmem:[%s10] sm:$0xff]
        %v3296 = vld [vmem:[%s10 + $0x8] sm:$0xff]
        %v3297 = vld [vmem:[%s10 + $0x10] sm:$0xff]
        %v3298 = vld [vmem:[%s10 + $0x18] sm:$0xff]
        %v3299 = vld [vmem:[%s10 + $0x20] sm:$0xff]
        %v3300 = vld [vmem:[%s10 + $0x28] sm:$0xff]
        %v3301 = vld [vmem:[%s10 + $0x30] sm:$0xff]
        %v3302 = vld [vmem:[%s10 + $0x38] sm:$0xff]
        %v3303 = vld [vmem:[%s10 + $0x40] sm:$0xff]
        %v3304 = vld [vmem:[%s10 + $0x48] sm:$0xff]
        %v3305 = vld [vmem:[%s10 + $0x50] sm:$0xff]
        %v3306 = vld [vmem:[%s10 + $0x58] sm:$0xff]
        %v3307 = vld [vmem:[%s10 + $0x60] sm:$0xff]
        %v3308 = vld [vmem:[%s10 + $0x68] sm:$0xff]
        %v3309 = vld [vmem:[%s10 + $0x70] sm:$0xff]
        %v3310 = vld [vmem:[%s10 + $0x78] sm:$0xff]
        %s3311 = scalar_lea.vmem %s13, 57
        %v3312 = vld [vmem:[%s3311] ss:$8 sm:$0x3]
        %v3314 = vlaneseq
        %v3315 = vshrl.u32 %v3314, 7
        %v3316 = vsub.s32 0, %v3315
        %v3317 = vrot.slane %v3312, %v3316
        %v3318 = vlaneseq
        %v3319 = vshrl.u32 %v3318, 7
        %v3320 = vsub.s32 1, %v3319
        %v3321 = vrot.slane %v3312, %v3320
        %v3340 = vunpack.c.l.b16 %v3295
        %v3341 = vunpack.c.h.b16 %v3295
        %v3342 = vunpack.c.l.b16 %v3296
        %v3343 = vunpack.c.h.b16 %v3296
        %v3344 = vunpack.c.l.b16 %v3297
        %v3345 = vunpack.c.h.b16 %v3297
        %v3346 = vunpack.c.l.b16 %v3298
        %v3347 = vunpack.c.h.b16 %v3298
        %v3348 = vunpack.c.l.b16 %v3299
        %v3349 = vunpack.c.h.b16 %v3299
        %v3350 = vunpack.c.l.b16 %v3300
        %v3351 = vunpack.c.h.b16 %v3300
        %v3352 = vunpack.c.l.b16 %v3301
        %v3353 = vunpack.c.h.b16 %v3301
        %v3354 = vunpack.c.l.b16 %v3302
        %v3355 = vunpack.c.h.b16 %v3302
        %v3356 = vunpack.c.l.b16 %v3303
        %v3357 = vunpack.c.h.b16 %v3303
        %v3358 = vunpack.c.l.b16 %v3304
        %v3359 = vunpack.c.h.b16 %v3304
        %v3360 = vunpack.c.l.b16 %v3305
        %v3361 = vunpack.c.h.b16 %v3305
        %v3362 = vunpack.c.l.b16 %v3306
        %v3363 = vunpack.c.h.b16 %v3306
        %v3364 = vunpack.c.l.b16 %v3307
        %v3365 = vunpack.c.h.b16 %v3307
        %v3366 = vunpack.c.l.b16 %v3308
        %v3367 = vunpack.c.h.b16 %v3308
        %v3368 = vunpack.c.l.b16 %v3309
        %v3369 = vunpack.c.h.b16 %v3309
        %v3370 = vunpack.c.l.b16 %v3310
        %v3371 = vunpack.c.h.b16 %v3310
        %v3372 = vpack.c.b16 %v3342, %v3340
        %v3373 = vpack.c.b16 %v3343, %v3341
        %v3374 = vpack.c.b16 %v3346, %v3344
        %v3375 = vpack.c.b16 %v3347, %v3345
        %v3376 = vpack.c.b16 %v3350, %v3348
        %v3377 = vpack.c.b16 %v3351, %v3349
        %v3378 = vpack.c.b16 %v3354, %v3352
        %v3379 = vpack.c.b16 %v3355, %v3353
        %v3380 = vpack.c.b16 %v3358, %v3356
        %v3381 = vpack.c.b16 %v3359, %v3357
        %v3382 = vpack.c.b16 %v3362, %v3360
        %v3383 = vpack.c.b16 %v3363, %v3361
        %v3384 = vpack.c.b16 %v3366, %v3364
        %v3385 = vpack.c.b16 %v3367, %v3365
        %v3386 = vpack.c.b16 %v3370, %v3368
        %v3387 = vpack.c.b16 %v3371, %v3369
        %3404 = vmatprep.subr.bf16.mxu0 %v3387
        %3405 = vmatpush1.bf16.msra.mxu0 %v3386
        %3406 = vmatprep.subr.bf16.mxu0 %v3385
        %3407 = vmatpush1.bf16.msra.mxu0 %v3384
        %3408 = vmatprep.subr.bf16.mxu0 %v3383
        %3409 = vmatpush1.bf16.msra.mxu0 %v3382
        %3410 = vmatprep.subr.bf16.mxu0 %v3381
        %3411 = vmatpush1.bf16.msra.mxu0 %v3380
        %3412 = vmatprep.subr.bf16.mxu0 %v3379
        %3413 = vmatpush1.bf16.msra.mxu0 %v3378
        %3414 = vmatprep.subr.bf16.mxu0 %v3377
        %3415 = vmatpush1.bf16.msra.mxu0 %v3376
        %3416 = vmatprep.subr.bf16.mxu0 %v3375
        %3417 = vmatpush1.bf16.msra.mxu0 %v3374
        %3418 = vmatprep.subr.bf16.mxu0 %v3373
        %3419 = vmatpush1.bf16.msra.mxu0 %v3372
        %3420 = vmatprep.subr.bf16.mxu0 0
        %3421 = vmatpush2.bf16.msra.mxu0 0
        %3422 = vmatprep.subr.bf16.mxu0 0
        %3423 = vmatpush2.bf16.msra.mxu0 0
        %3424 = vmatprep.subr.bf16.mxu0 0
        %3425 = vmatpush2.bf16.msra.mxu0 0
        %3426 = vmatprep.subr.bf16.mxu0 0
        %3427 = vmatpush2.bf16.msra.mxu0 0
        %3428 = vmatprep.subr.bf16.mxu0 0
        %3429 = vmatpush2.bf16.msra.mxu0 0
        %3430 = vmatprep.subr.bf16.mxu0 0
        %3431 = vmatpush2.bf16.msra.mxu0 0
        %3432 = vmatprep.subr.bf16.mxu0 0
        %3433 = vmatpush2.bf16.msra.mxu0 0
        %3434 = vmatprep.subr.bf16.mxu0 0
        %3435 = vmatpush2.bf16.msra.mxu0 0
        %3436 = vmatprep.mubr.bf16.mxu0 0
        %3437 = vmatmul.mubr.bf16.gmra.mxu0 %v3294
        %v3438 = vpop.f32.mrf.mxu0
        %v3439 = vadd.f32 %v3317, %v3438
        %v3440 = vpop.f32.mrf.mxu0
        %v3441 = vadd.f32 %v3321, %v3440
        %v3442 = vpop.f32.mrf.mxu0
        %v3443 = vpop.f32.mrf.mxu0
        %3444 = vdwg.mxu0
        %v3445 = vmax.f32 %v3439, 0.0
        %v3446 = vmax.f32 %v3441, 0.0
        %v3447 = vpack.c.bf16 %v3445, %v3445
        %v3448 = vpack.c.bf16 %v3446, %v3446
        %v3449 = vld [vmem:[%s11] sm:$0xff]
        %v3450 = vld [vmem:[%s11 + $0x8] sm:$0xff]
        %v3451 = vld [vmem:[%s11 + $0x10] sm:$0xff]
        %v3452 = vld [vmem:[%s11 + $0x18] sm:$0xff]
        %v3453 = vld [vmem:[%s11 + $0x20] sm:$0xff]
        %v3454 = vld [vmem:[%s11 + $0x28] sm:$0xff]
        %v3455 = vld [vmem:[%s11 + $0x30] sm:$0xff]
        %v3456 = vld [vmem:[%s11 + $0x38] sm:$0xff]
        %v3457 = vld [vmem:[%s11 + $0x40] sm:$0xff]
        %v3458 = vld [vmem:[%s11 + $0x48] sm:$0xff]
        %v3459 = vld [vmem:[%s11 + $0x50] sm:$0xff]
        %v3460 = vld [vmem:[%s11 + $0x58] sm:$0xff]
        %v3461 = vld [vmem:[%s11 + $0x60] sm:$0xff]
        %v3462 = vld [vmem:[%s11 + $0x68] sm:$0xff]
        %v3463 = vld [vmem:[%s11 + $0x70] sm:$0xff]
        %v3464 = vld [vmem:[%s11 + $0x78] sm:$0xff]
        %v3465 = vld [vmem:[%s11 + $0x80] sm:$0xff]
        %v3466 = vld [vmem:[%s11 + $0x88] sm:$0xff]
        %v3467 = vld [vmem:[%s11 + $0x90] sm:$0xff]
        %v3468 = vld [vmem:[%s11 + $0x98] sm:$0xff]
        %v3469 = vld [vmem:[%s11 + $0xa0] sm:$0xff]
        %v3470 = vld [vmem:[%s11 + $0xa8] sm:$0xff]
        %v3471 = vld [vmem:[%s11 + $0xb0] sm:$0xff]
        %v3472 = vld [vmem:[%s11 + $0xb8] sm:$0xff]
        %v3473 = vld [vmem:[%s11 + $0xc0] sm:$0xff]
        %v3474 = vld [vmem:[%s11 + $0xc8] sm:$0xff]
        %v3475 = vld [vmem:[%s11 + $0xd0] sm:$0xff]
        %v3476 = vld [vmem:[%s11 + $0xd8] sm:$0xff]
        %v3477 = vld [vmem:[%s11 + $0xe0] sm:$0xff]
        %v3478 = vld [vmem:[%s11 + $0xe8] sm:$0xff]
        %v3479 = vld [vmem:[%s11 + $0xf0] sm:$0xff]
        %v3480 = vld [vmem:[%s11 + $0xf8] sm:$0xff]
        %v3481 = vld [vmem:[%s11 + $0x100] sm:$0xff]
        %v3482 = vld [vmem:[%s11 + $0x108] sm:$0xff]
        %v3483 = vld [vmem:[%s11 + $0x110] sm:$0xff]
        %v3484 = vld [vmem:[%s11 + $0x118] sm:$0xff]
        %v3485 = vld [vmem:[%s11 + $0x120] sm:$0xff]
        %v3486 = vld [vmem:[%s11 + $0x128] sm:$0xff]
        %v3487 = vld [vmem:[%s11 + $0x130] sm:$0xff]
        %v3488 = vld [vmem:[%s11 + $0x138] sm:$0xff]
        %v3489 = vld [vmem:[%s11 + $0x140] sm:$0xff]
        %v3490 = vld [vmem:[%s11 + $0x148] sm:$0xff]
        %v3491 = vld [vmem:[%s11 + $0x150] sm:$0xff]
        %v3492 = vld [vmem:[%s11 + $0x158] sm:$0xff]
        %v3493 = vld [vmem:[%s11 + $0x160] sm:$0xff]
        %v3494 = vld [vmem:[%s11 + $0x168] sm:$0xff]
        %v3495 = vld [vmem:[%s11 + $0x170] sm:$0xff]
        %v3496 = vld [vmem:[%s11 + $0x178] sm:$0xff]
        %v3497 = vld [vmem:[%s11 + $0x180] sm:$0xff]
        %v3498 = vld [vmem:[%s11 + $0x188] sm:$0xff]
        %v3499 = vld [vmem:[%s11 + $0x190] sm:$0xff]
        %v3500 = vld [vmem:[%s11 + $0x198] sm:$0xff]
        %v3501 = vld [vmem:[%s11 + $0x1a0] sm:$0xff]
        %v3502 = vld [vmem:[%s11 + $0x1a8] sm:$0xff]
        %v3503 = vld [vmem:[%s11 + $0x1b0] sm:$0xff]
        %v3504 = vld [vmem:[%s11 + $0x1b8] sm:$0xff]
        %v3505 = vld [vmem:[%s11 + $0x1c0] sm:$0xff]
        %v3506 = vld [vmem:[%s11 + $0x1c8] sm:$0xff]
        %v3507 = vld [vmem:[%s11 + $0x1d0] sm:$0xff]
        %v3508 = vld [vmem:[%s11 + $0x1d8] sm:$0xff]
        %v3509 = vld [vmem:[%s11 + $0x1e0] sm:$0xff]
        %v3510 = vld [vmem:[%s11 + $0x1e8] sm:$0xff]
        %v3511 = vld [vmem:[%s11 + $0x1f0] sm:$0xff]
        %v3512 = vld [vmem:[%s11 + $0x1f8] sm:$0xff]
        %s3513 = scalar_lea.vmem %s13, 58
        %v3514 = vld [vmem:[%s3513] ss:$8 sm:$0xf]
        %v3516 = vlaneseq
        %v3517 = vshrl.u32 %v3516, 7
        %v3518 = vsub.s32 0, %v3517
        %v3519 = vrot.slane %v3514, %v3518
        %v3520 = vlaneseq
        %v3521 = vshrl.u32 %v3520, 7
        %v3522 = vsub.s32 1, %v3521
        %v3523 = vrot.slane %v3514, %v3522
        %v3524 = vlaneseq
        %v3525 = vshrl.u32 %v3524, 7
        %v3526 = vsub.s32 2, %v3525
        %v3527 = vrot.slane %v3514, %v3526
        %v3528 = vlaneseq
        %v3529 = vshrl.u32 %v3528, 7
        %v3530 = vsub.s32 3, %v3529
        %v3531 = vrot.slane %v3514, %v3530
        %v3600 = vunpack.c.l.b16 %v3449
        %v3601 = vunpack.c.h.b16 %v3449
        %v3602 = vunpack.c.l.b16 %v3450
        %v3603 = vunpack.c.h.b16 %v3450
        %v3604 = vunpack.c.l.b16 %v3451
        %v3605 = vunpack.c.h.b16 %v3451
        %v3606 = vunpack.c.l.b16 %v3452
        %v3607 = vunpack.c.h.b16 %v3452
        %v3608 = vunpack.c.l.b16 %v3453
        %v3609 = vunpack.c.h.b16 %v3453
        %v3610 = vunpack.c.l.b16 %v3454
        %v3611 = vunpack.c.h.b16 %v3454
        %v3612 = vunpack.c.l.b16 %v3455
        %v3613 = vunpack.c.h.b16 %v3455
        %v3614 = vunpack.c.l.b16 %v3456
        %v3615 = vunpack.c.h.b16 %v3456
        %v3616 = vunpack.c.l.b16 %v3457
        %v3617 = vunpack.c.h.b16 %v3457
        %v3618 = vunpack.c.l.b16 %v3458
        %v3619 = vunpack.c.h.b16 %v3458
        %v3620 = vunpack.c.l.b16 %v3459
        %v3621 = vunpack.c.h.b16 %v3459
        %v3622 = vunpack.c.l.b16 %v3460
        %v3623 = vunpack.c.h.b16 %v3460
        %v3624 = vunpack.c.l.b16 %v3461
        %v3625 = vunpack.c.h.b16 %v3461
        %v3626 = vunpack.c.l.b16 %v3462
        %v3627 = vunpack.c.h.b16 %v3462
        %v3628 = vunpack.c.l.b16 %v3463
        %v3629 = vunpack.c.h.b16 %v3463
        %v3630 = vunpack.c.l.b16 %v3464
        %v3631 = vunpack.c.h.b16 %v3464
        %v3632 = vunpack.c.l.b16 %v3465
        %v3633 = vunpack.c.h.b16 %v3465
        %v3634 = vunpack.c.l.b16 %v3466
        %v3635 = vunpack.c.h.b16 %v3466
        %v3636 = vunpack.c.l.b16 %v3467
        %v3637 = vunpack.c.h.b16 %v3467
        %v3638 = vunpack.c.l.b16 %v3468
        %v3639 = vunpack.c.h.b16 %v3468
        %v3640 = vunpack.c.l.b16 %v3469
        %v3641 = vunpack.c.h.b16 %v3469
        %v3642 = vunpack.c.l.b16 %v3470
        %v3643 = vunpack.c.h.b16 %v3470
        %v3644 = vunpack.c.l.b16 %v3471
        %v3645 = vunpack.c.h.b16 %v3471
        %v3646 = vunpack.c.l.b16 %v3472
        %v3647 = vunpack.c.h.b16 %v3472
        %v3648 = vunpack.c.l.b16 %v3473
        %v3649 = vunpack.c.h.b16 %v3473
        %v3650 = vunpack.c.l.b16 %v3474
        %v3651 = vunpack.c.h.b16 %v3474
        %v3652 = vunpack.c.l.b16 %v3475
        %v3653 = vunpack.c.h.b16 %v3475
        %v3654 = vunpack.c.l.b16 %v3476
        %v3655 = vunpack.c.h.b16 %v3476
        %v3656 = vunpack.c.l.b16 %v3477
        %v3657 = vunpack.c.h.b16 %v3477
        %v3658 = vunpack.c.l.b16 %v3478
        %v3659 = vunpack.c.h.b16 %v3478
        %v3660 = vunpack.c.l.b16 %v3479
        %v3661 = vunpack.c.h.b16 %v3479
        %v3662 = vunpack.c.l.b16 %v3480
        %v3663 = vunpack.c.h.b16 %v3480
        %v3664 = vunpack.c.l.b16 %v3481
        %v3665 = vunpack.c.h.b16 %v3481
        %v3666 = vunpack.c.l.b16 %v3482
        %v3667 = vunpack.c.h.b16 %v3482
        %v3668 = vunpack.c.l.b16 %v3483
        %v3669 = vunpack.c.h.b16 %v3483
        %v3670 = vunpack.c.l.b16 %v3484
        %v3671 = vunpack.c.h.b16 %v3484
        %v3672 = vunpack.c.l.b16 %v3485
        %v3673 = vunpack.c.h.b16 %v3485
        %v3674 = vunpack.c.l.b16 %v3486
        %v3675 = vunpack.c.h.b16 %v3486
        %v3676 = vunpack.c.l.b16 %v3487
        %v3677 = vunpack.c.h.b16 %v3487
        %v3678 = vunpack.c.l.b16 %v3488
        %v3679 = vunpack.c.h.b16 %v3488
        %v3680 = vunpack.c.l.b16 %v3489
        %v3681 = vunpack.c.h.b16 %v3489
        %v3682 = vunpack.c.l.b16 %v3490
        %v3683 = vunpack.c.h.b16 %v3490
        %v3684 = vunpack.c.l.b16 %v3491
        %v3685 = vunpack.c.h.b16 %v3491
        %v3686 = vunpack.c.l.b16 %v3492
        %v3687 = vunpack.c.h.b16 %v3492
        %v3688 = vunpack.c.l.b16 %v3493
        %v3689 = vunpack.c.h.b16 %v3493
        %v3690 = vunpack.c.l.b16 %v3494
        %v3691 = vunpack.c.h.b16 %v3494
        %v3692 = vunpack.c.l.b16 %v3495
        %v3693 = vunpack.c.h.b16 %v3495
        %v3694 = vunpack.c.l.b16 %v3496
        %v3695 = vunpack.c.h.b16 %v3496
        %v3696 = vunpack.c.l.b16 %v3497
        %v3697 = vunpack.c.h.b16 %v3497
        %v3698 = vunpack.c.l.b16 %v3498
        %v3699 = vunpack.c.h.b16 %v3498
        %v3700 = vunpack.c.l.b16 %v3499
        %v3701 = vunpack.c.h.b16 %v3499
        %v3702 = vunpack.c.l.b16 %v3500
        %v3703 = vunpack.c.h.b16 %v3500
        %v3704 = vunpack.c.l.b16 %v3501
        %v3705 = vunpack.c.h.b16 %v3501
        %v3706 = vunpack.c.l.b16 %v3502
        %v3707 = vunpack.c.h.b16 %v3502
        %v3708 = vunpack.c.l.b16 %v3503
        %v3709 = vunpack.c.h.b16 %v3503
        %v3710 = vunpack.c.l.b16 %v3504
        %v3711 = vunpack.c.h.b16 %v3504
        %v3712 = vunpack.c.l.b16 %v3505
        %v3713 = vunpack.c.h.b16 %v3505
        %v3714 = vunpack.c.l.b16 %v3506
        %v3715 = vunpack.c.h.b16 %v3506
        %v3716 = vunpack.c.l.b16 %v3507
        %v3717 = vunpack.c.h.b16 %v3507
        %v3718 = vunpack.c.l.b16 %v3508
        %v3719 = vunpack.c.h.b16 %v3508
        %v3720 = vunpack.c.l.b16 %v3509
        %v3721 = vunpack.c.h.b16 %v3509
        %v3722 = vunpack.c.l.b16 %v3510
        %v3723 = vunpack.c.h.b16 %v3510
        %v3724 = vunpack.c.l.b16 %v3511
        %v3725 = vunpack.c.h.b16 %v3511
        %v3726 = vunpack.c.l.b16 %v3512
        %v3727 = vunpack.c.h.b16 %v3512
        %v3728 = vpack.c.b16 %v3604, %v3600
        %v3729 = vpack.c.b16 %v3605, %v3601
        %v3730 = vpack.c.b16 %v3606, %v3602
        %v3731 = vpack.c.b16 %v3607, %v3603
        %v3732 = vpack.c.b16 %v3612, %v3608
        %v3733 = vpack.c.b16 %v3613, %v3609
        %v3734 = vpack.c.b16 %v3614, %v3610
        %v3735 = vpack.c.b16 %v3615, %v3611
        %v3736 = vpack.c.b16 %v3620, %v3616
        %v3737 = vpack.c.b16 %v3621, %v3617
        %v3738 = vpack.c.b16 %v3622, %v3618
        %v3739 = vpack.c.b16 %v3623, %v3619
        %v3740 = vpack.c.b16 %v3628, %v3624
        %v3741 = vpack.c.b16 %v3629, %v3625
        %v3742 = vpack.c.b16 %v3630, %v3626
        %v3743 = vpack.c.b16 %v3631, %v3627
        %v3744 = vpack.c.b16 %v3636, %v3632
        %v3745 = vpack.c.b16 %v3637, %v3633
        %v3746 = vpack.c.b16 %v3638, %v3634
        %v3747 = vpack.c.b16 %v3639, %v3635
        %v3748 = vpack.c.b16 %v3644, %v3640
        %v3749 = vpack.c.b16 %v3645, %v3641
        %v3750 = vpack.c.b16 %v3646, %v3642
        %v3751 = vpack.c.b16 %v3647, %v3643
        %v3752 = vpack.c.b16 %v3652, %v3648
        %v3753 = vpack.c.b16 %v3653, %v3649
        %v3754 = vpack.c.b16 %v3654, %v3650
        %v3755 = vpack.c.b16 %v3655, %v3651
        %v3756 = vpack.c.b16 %v3660, %v3656
        %v3757 = vpack.c.b16 %v3661, %v3657
        %v3758 = vpack.c.b16 %v3662, %v3658
        %v3759 = vpack.c.b16 %v3663, %v3659
        %v3760 = vpack.c.b16 %v3668, %v3664
        %v3761 = vpack.c.b16 %v3669, %v3665
        %v3762 = vpack.c.b16 %v3670, %v3666
        %v3763 = vpack.c.b16 %v3671, %v3667
        %v3764 = vpack.c.b16 %v3676, %v3672
        %v3765 = vpack.c.b16 %v3677, %v3673
        %v3766 = vpack.c.b16 %v3678, %v3674
        %v3767 = vpack.c.b16 %v3679, %v3675
        %v3768 = vpack.c.b16 %v3684, %v3680
        %v3769 = vpack.c.b16 %v3685, %v3681
        %v3770 = vpack.c.b16 %v3686, %v3682
        %v3771 = vpack.c.b16 %v3687, %v3683
        %v3772 = vpack.c.b16 %v3692, %v3688
        %v3773 = vpack.c.b16 %v3693, %v3689
        %v3774 = vpack.c.b16 %v3694, %v3690
        %v3775 = vpack.c.b16 %v3695, %v3691
        %v3776 = vpack.c.b16 %v3700, %v3696
        %v3777 = vpack.c.b16 %v3701, %v3697
        %v3778 = vpack.c.b16 %v3702, %v3698
        %v3779 = vpack.c.b16 %v3703, %v3699
        %v3780 = vpack.c.b16 %v3708, %v3704
        %v3781 = vpack.c.b16 %v3709, %v3705
        %v3782 = vpack.c.b16 %v3710, %v3706
        %v3783 = vpack.c.b16 %v3711, %v3707
        %v3784 = vpack.c.b16 %v3716, %v3712
        %v3785 = vpack.c.b16 %v3717, %v3713
        %v3786 = vpack.c.b16 %v3718, %v3714
        %v3787 = vpack.c.b16 %v3719, %v3715
        %v3788 = vpack.c.b16 %v3724, %v3720
        %v3789 = vpack.c.b16 %v3725, %v3721
        %v3790 = vpack.c.b16 %v3726, %v3722
        %v3791 = vpack.c.b16 %v3727, %v3723
        %3856 = vmatprep.subr.bf16.mxu0 %v3757
        %3857 = vmatpush1.bf16.msra.mxu0 %v3756
        %3858 = vmatprep.subr.bf16.mxu0 %v3753
        %3859 = vmatpush1.bf16.msra.mxu0 %v3752
        %3860 = vmatprep.subr.bf16.mxu0 %v3749
        %3861 = vmatpush1.bf16.msra.mxu0 %v3748
        %3862 = vmatprep.subr.bf16.mxu0 %v3745
        %3863 = vmatpush1.bf16.msra.mxu0 %v3744
        %3864 = vmatprep.subr.bf16.mxu0 %v3741
        %3865 = vmatpush1.bf16.msra.mxu0 %v3740
        %3866 = vmatprep.subr.bf16.mxu0 %v3737
        %3867 = vmatpush1.bf16.msra.mxu0 %v3736
        %3868 = vmatprep.subr.bf16.mxu0 %v3733
        %3869 = vmatpush1.bf16.msra.mxu0 %v3732
        %3870 = vmatprep.subr.bf16.mxu0 %v3729
        %3871 = vmatpush1.bf16.msra.mxu0 %v3728
        %3872 = vmatprep.subr.bf16.mxu0 %v3789
        %3873 = vmatpush2.bf16.msra.mxu0 %v3788
        %3874 = vmatprep.subr.bf16.mxu0 %v3785
        %3875 = vmatpush2.bf16.msra.mxu0 %v3784
        %3876 = vmatprep.subr.bf16.mxu0 %v3781
        %3877 = vmatpush2.bf16.msra.mxu0 %v3780
        %3878 = vmatprep.subr.bf16.mxu0 %v3777
        %3879 = vmatpush2.bf16.msra.mxu0 %v3776
        %3880 = vmatprep.subr.bf16.mxu0 %v3773
        %3881 = vmatpush2.bf16.msra.mxu0 %v3772
        %3882 = vmatprep.subr.bf16.mxu0 %v3769
        %3883 = vmatpush2.bf16.msra.mxu0 %v3768
        %3884 = vmatprep.subr.bf16.mxu0 %v3765
        %3885 = vmatpush2.bf16.msra.mxu0 %v3764
        %3886 = vmatprep.subr.bf16.mxu0 %v3761
        %3887 = vmatpush2.bf16.msra.mxu0 %v3760
        %3888 = vmatprep.mubr.bf16.mxu0 %v3448
        %3889 = vmatmul.mubr.bf16.gmra.mxu0 %v3447
        %v3890 = vpop.f32.mrf.mxu0
        %v3891 = vadd.f32 %v3519, %v3890
        %v3892 = vpop.f32.mrf.mxu0
        %v3893 = vadd.f32 %v3523, %v3892
        %v3894 = vpop.f32.mrf.mxu0
        %v3895 = vpop.f32.mrf.mxu0
        %3896 = vdwg.mxu0
        %3897 = vmatprep.subr.bf16.mxu0 %v3759
        %3898 = vmatpush1.bf16.msra.mxu0 %v3758
        %3899 = vmatprep.subr.bf16.mxu0 %v3755
        %3900 = vmatpush1.bf16.msra.mxu0 %v3754
        %3901 = vmatprep.subr.bf16.mxu0 %v3751
        %3902 = vmatpush1.bf16.msra.mxu0 %v3750
        %3903 = vmatprep.subr.bf16.mxu0 %v3747
        %3904 = vmatpush1.bf16.msra.mxu0 %v3746
        %3905 = vmatprep.subr.bf16.mxu0 %v3743
        %3906 = vmatpush1.bf16.msra.mxu0 %v3742
        %3907 = vmatprep.subr.bf16.mxu0 %v3739
        %3908 = vmatpush1.bf16.msra.mxu0 %v3738
        %3909 = vmatprep.subr.bf16.mxu0 %v3735
        %3910 = vmatpush1.bf16.msra.mxu0 %v3734
        %3911 = vmatprep.subr.bf16.mxu0 %v3731
        %3912 = vmatpush1.bf16.msra.mxu0 %v3730
        %3913 = vmatprep.subr.bf16.mxu0 %v3791
        %3914 = vmatpush2.bf16.msra.mxu0 %v3790
        %3915 = vmatprep.subr.bf16.mxu0 %v3787
        %3916 = vmatpush2.bf16.msra.mxu0 %v3786
        %3917 = vmatprep.subr.bf16.mxu0 %v3783
        %3918 = vmatpush2.bf16.msra.mxu0 %v3782
        %3919 = vmatprep.subr.bf16.mxu0 %v3779
        %3920 = vmatpush2.bf16.msra.mxu0 %v3778
        %3921 = vmatprep.subr.bf16.mxu0 %v3775
        %3922 = vmatpush2.bf16.msra.mxu0 %v3774
        %3923 = vmatprep.subr.bf16.mxu0 %v3771
        %3924 = vmatpush2.bf16.msra.mxu0 %v3770
        %3925 = vmatprep.subr.bf16.mxu0 %v3767
        %3926 = vmatpush2.bf16.msra.mxu0 %v3766
        %3927 = vmatprep.subr.bf16.mxu0 %v3763
        %3928 = vmatpush2.bf16.msra.mxu0 %v3762
        %3929 = vmatprep.mubr.bf16.mxu0 %v3448
        %3930 = vmatmul.mubr.bf16.gmra.mxu0 %v3447
        %v3931 = vpop.f32.mrf.mxu0
        %v3932 = vadd.f32 %v3527, %v3931
        %v3933 = vpop.f32.mrf.mxu0
        %v3934 = vadd.f32 %v3531, %v3933
        %v3935 = vpop.f32.mrf.mxu0
        %v3936 = vpop.f32.mrf.mxu0
        %3937 = vdwg.mxu0
        %v3938 = vmax.f32 %v3891, 0.0
        %v3939 = vmax.f32 %v3893, 0.0
        %v3940 = vmax.f32 %v3932, 0.0
        %v3941 = vmax.f32 %v3934, 0.0
        %v3942 = vpack.c.bf16 %v3938, %v3938
        %v3943 = vpack.c.bf16 %v3939, %v3939
        %v3944 = vpack.c.bf16 %v3940, %v3940
        %v3945 = vpack.c.bf16 %v3941, %v3941
        %v3946 = vld [vmem:[%s12] sm:$0xff]
        %v3947 = vld [vmem:[%s12 + $0x8] sm:$0xff]
        %v3948 = vld [vmem:[%s12 + $0x10] sm:$0xff]
        %v3949 = vld [vmem:[%s12 + $0x18] sm:$0xf]
        %v3950 = vld [vmem:[%s12 + $0x1c] sm:$0xff]
        %v3951 = vld [vmem:[%s12 + $0x24] sm:$0xff]
        %v3952 = vld [vmem:[%s12 + $0x2c] sm:$0xff]
        %v3953 = vld [vmem:[%s12 + $0x34] sm:$0xf]
        %v3954 = vld [vmem:[%s12 + $0x38] sm:$0xff]
        %v3955 = vld [vmem:[%s12 + $0x40] sm:$0xff]
        %v3956 = vld [vmem:[%s12 + $0x48] sm:$0xff]
        %v3957 = vld [vmem:[%s12 + $0x50] sm:$0xf]
        %v3958 = vld [vmem:[%s12 + $0x54] sm:$0xff]
        %v3959 = vld [vmem:[%s12 + $0x5c] sm:$0xff]
        %v3960 = vld [vmem:[%s12 + $0x64] sm:$0xff]
        %v3961 = vld [vmem:[%s12 + $0x6c] sm:$0xf]
        %v3962 = vld [vmem:[%s12 + $0x70] sm:$0xff]
        %v3963 = vld [vmem:[%s12 + $0x78] sm:$0xff]
        %v3964 = vld [vmem:[%s12 + $0x80] sm:$0xff]
        %v3965 = vld [vmem:[%s12 + $0x88] sm:$0xf]
        %v3966 = vld [vmem:[%s12 + $0x8c] sm:$0xff]
        %v3967 = vld [vmem:[%s12 + $0x94] sm:$0xff]
        %v3968 = vld [vmem:[%s12 + $0x9c] sm:$0xff]
        %v3969 = vld [vmem:[%s12 + $0xa4] sm:$0xf]
        %v3970 = vld [vmem:[%s12 + $0xa8] sm:$0xff]
        %v3971 = vld [vmem:[%s12 + $0xb0] sm:$0xff]
        %v3972 = vld [vmem:[%s12 + $0xb8] sm:$0xff]
        %v3973 = vld [vmem:[%s12 + $0xc0] sm:$0xf]
        %v3974 = vld [vmem:[%s12 + $0xc4] sm:$0xff]
        %v3975 = vld [vmem:[%s12 + $0xcc] sm:$0xff]
        %v3976 = vld [vmem:[%s12 + $0xd4] sm:$0xff]
        %v3977 = vld [vmem:[%s12 + $0xdc] sm:$0xf]
        %v3978 = vld [vmem:[%s12 + $0xe0] sm:$0xff]
        %v3979 = vld [vmem:[%s12 + $0xe8] sm:$0xff]
        %v3980 = vld [vmem:[%s12 + $0xf0] sm:$0xff]
        %v3981 = vld [vmem:[%s12 + $0xf8] sm:$0xf]
        %v3982 = vld [vmem:[%s12 + $0xfc] sm:$0xff]
        %v3983 = vld [vmem:[%s12 + $0x104] sm:$0xff]
        %v3984 = vld [vmem:[%s12 + $0x10c] sm:$0xff]
        %v3985 = vld [vmem:[%s12 + $0x114] sm:$0xf]
        %v3986 = vld [vmem:[%s12 + $0x118] sm:$0xff]
        %v3987 = vld [vmem:[%s12 + $0x120] sm:$0xff]
        %v3988 = vld [vmem:[%s12 + $0x128] sm:$0xff]
        %v3989 = vld [vmem:[%s12 + $0x130] sm:$0xf]
        %v3990 = vld [vmem:[%s12 + $0x134] sm:$0xff]
        %v3991 = vld [vmem:[%s12 + $0x13c] sm:$0xff]
        %v3992 = vld [vmem:[%s12 + $0x144] sm:$0xff]
        %v3993 = vld [vmem:[%s12 + $0x14c] sm:$0xf]
        %v3994 = vld [vmem:[%s12 + $0x150] sm:$0xff]
        %v3995 = vld [vmem:[%s12 + $0x158] sm:$0xff]
        %v3996 = vld [vmem:[%s12 + $0x160] sm:$0xff]
        %v3997 = vld [vmem:[%s12 + $0x168] sm:$0xf]
        %v3998 = vld [vmem:[%s12 + $0x16c] sm:$0xff]
        %v3999 = vld [vmem:[%s12 + $0x174] sm:$0xff]
        %v4000 = vld [vmem:[%s12 + $0x17c] sm:$0xff]
        %v4001 = vld [vmem:[%s12 + $0x184] sm:$0xf]
        %v4002 = vld [vmem:[%s12 + $0x188] sm:$0xff]
        %v4003 = vld [vmem:[%s12 + $0x190] sm:$0xff]
        %v4004 = vld [vmem:[%s12 + $0x198] sm:$0xff]
        %v4005 = vld [vmem:[%s12 + $0x1a0] sm:$0xf]
        %v4006 = vld [vmem:[%s12 + $0x1a4] sm:$0xff]
        %v4007 = vld [vmem:[%s12 + $0x1ac] sm:$0xff]
        %v4008 = vld [vmem:[%s12 + $0x1b4] sm:$0xff]
        %v4009 = vld [vmem:[%s12 + $0x1bc] sm:$0xf]
        %v4010 = vld [vmem:[%s12 + $0x1c0] sm:$0xff]
        %v4011 = vld [vmem:[%s12 + $0x1c8] sm:$0xff]
        %v4012 = vld [vmem:[%s12 + $0x1d0] sm:$0xff]
        %v4013 = vld [vmem:[%s12 + $0x1d8] sm:$0xf]
        %v4014 = vld [vmem:[%s12 + $0x1dc] sm:$0xff]
        %v4015 = vld [vmem:[%s12 + $0x1e4] sm:$0xff]
        %v4016 = vld [vmem:[%s12 + $0x1ec] sm:$0xff]
        %v4017 = vld [vmem:[%s12 + $0x1f4] sm:$0xf]
        %v4018 = vld [vmem:[%s12 + $0x1f8] sm:$0xff]
        %v4019 = vld [vmem:[%s12 + $0x200] sm:$0xff]
        %v4020 = vld [vmem:[%s12 + $0x208] sm:$0xff]
        %v4021 = vld [vmem:[%s12 + $0x210] sm:$0xf]
        %v4022 = vld [vmem:[%s12 + $0x214] sm:$0xff]
        %v4023 = vld [vmem:[%s12 + $0x21c] sm:$0xff]
        %v4024 = vld [vmem:[%s12 + $0x224] sm:$0xff]
        %v4025 = vld [vmem:[%s12 + $0x22c] sm:$0xf]
        %v4026 = vld [vmem:[%s12 + $0x230] sm:$0xff]
        %v4027 = vld [vmem:[%s12 + $0x238] sm:$0xff]
        %v4028 = vld [vmem:[%s12 + $0x240] sm:$0xff]
        %v4029 = vld [vmem:[%s12 + $0x248] sm:$0xf]
        %v4030 = vld [vmem:[%s12 + $0x24c] sm:$0xff]
        %v4031 = vld [vmem:[%s12 + $0x254] sm:$0xff]
        %v4032 = vld [vmem:[%s12 + $0x25c] sm:$0xff]
        %v4033 = vld [vmem:[%s12 + $0x264] sm:$0xf]
        %v4034 = vld [vmem:[%s12 + $0x268] sm:$0xff]
        %v4035 = vld [vmem:[%s12 + $0x270] sm:$0xff]
        %v4036 = vld [vmem:[%s12 + $0x278] sm:$0xff]
        %v4037 = vld [vmem:[%s12 + $0x280] sm:$0xf]
        %v4038 = vld [vmem:[%s12 + $0x284] sm:$0xff]
        %v4039 = vld [vmem:[%s12 + $0x28c] sm:$0xff]
        %v4040 = vld [vmem:[%s12 + $0x294] sm:$0xff]
        %v4041 = vld [vmem:[%s12 + $0x29c] sm:$0xf]
        %v4042 = vld [vmem:[%s12 + $0x2a0] sm:$0xff]
        %v4043 = vld [vmem:[%s12 + $0x2a8] sm:$0xff]
        %v4044 = vld [vmem:[%s12 + $0x2b0] sm:$0xff]
        %v4045 = vld [vmem:[%s12 + $0x2b8] sm:$0xf]
        %v4046 = vld [vmem:[%s12 + $0x2bc] sm:$0xff]
        %v4047 = vld [vmem:[%s12 + $0x2c4] sm:$0xff]
        %v4048 = vld [vmem:[%s12 + $0x2cc] sm:$0xff]
        %v4049 = vld [vmem:[%s12 + $0x2d4] sm:$0xf]
        %v4050 = vld [vmem:[%s12 + $0x2d8] sm:$0xff]
        %v4051 = vld [vmem:[%s12 + $0x2e0] sm:$0xff]
        %v4052 = vld [vmem:[%s12 + $0x2e8] sm:$0xff]
        %v4053 = vld [vmem:[%s12 + $0x2f0] sm:$0xf]
        %v4054 = vld [vmem:[%s12 + $0x2f4] sm:$0xff]
        %v4055 = vld [vmem:[%s12 + $0x2fc] sm:$0xff]
        %v4056 = vld [vmem:[%s12 + $0x304] sm:$0xff]
        %v4057 = vld [vmem:[%s12 + $0x30c] sm:$0xf]
        %v4058 = vld [vmem:[%s12 + $0x310] sm:$0xff]
        %v4059 = vld [vmem:[%s12 + $0x318] sm:$0xff]
        %v4060 = vld [vmem:[%s12 + $0x320] sm:$0xff]
        %v4061 = vld [vmem:[%s12 + $0x328] sm:$0xf]
        %v4062 = vld [vmem:[%s12 + $0x32c] sm:$0xff]
        %v4063 = vld [vmem:[%s12 + $0x334] sm:$0xff]
        %v4064 = vld [vmem:[%s12 + $0x33c] sm:$0xff]
        %v4065 = vld [vmem:[%s12 + $0x344] sm:$0xf]
        %v4066 = vld [vmem:[%s12 + $0x348] sm:$0xff]
        %v4067 = vld [vmem:[%s12 + $0x350] sm:$0xff]
        %v4068 = vld [vmem:[%s12 + $0x358] sm:$0xff]
        %v4069 = vld [vmem:[%s12 + $0x360] sm:$0xf]
        %v4070 = vld [vmem:[%s12 + $0x364] sm:$0xff]
        %v4071 = vld [vmem:[%s12 + $0x36c] sm:$0xff]
        %v4072 = vld [vmem:[%s12 + $0x374] sm:$0xff]
        %v4073 = vld [vmem:[%s12 + $0x37c] sm:$0xf]
        %v4074 = vld [vmem:[%s12 + $0x380] sm:$0xff]
        %v4075 = vld [vmem:[%s12 + $0x388] sm:$0xff]
        %v4076 = vld [vmem:[%s12 + $0x390] sm:$0xff]
        %v4077 = vld [vmem:[%s12 + $0x398] sm:$0xf]
        %v4078 = vld [vmem:[%s12 + $0x39c] sm:$0xff]
        %v4079 = vld [vmem:[%s12 + $0x3a4] sm:$0xff]
        %v4080 = vld [vmem:[%s12 + $0x3ac] sm:$0xff]
        %v4081 = vld [vmem:[%s12 + $0x3b4] sm:$0xf]
        %v4082 = vld [vmem:[%s12 + $0x3b8] sm:$0xff]
        %v4083 = vld [vmem:[%s12 + $0x3c0] sm:$0xff]
        %v4084 = vld [vmem:[%s12 + $0x3c8] sm:$0xff]
        %v4085 = vld [vmem:[%s12 + $0x3d0] sm:$0xf]
        %v4086 = vld [vmem:[%s12 + $0x3d4] sm:$0xff]
        %v4087 = vld [vmem:[%s12 + $0x3dc] sm:$0xff]
        %v4088 = vld [vmem:[%s12 + $0x3e4] sm:$0xff]
        %v4089 = vld [vmem:[%s12 + $0x3ec] sm:$0xf]
        %v4090 = vld [vmem:[%s12 + $0x3f0] sm:$0xff]
        %v4091 = vld [vmem:[%s12 + $0x3f8] sm:$0xff]
        %v4092 = vld [vmem:[%s12 + $0x400] sm:$0xff]
        %v4093 = vld [vmem:[%s12 + $0x408] sm:$0xf]
        %v4094 = vld [vmem:[%s12 + $0x40c] sm:$0xff]
        %v4095 = vld [vmem:[%s12 + $0x414] sm:$0xff]
        %v4096 = vld [vmem:[%s12 + $0x41c] sm:$0xff]
        %v4097 = vld [vmem:[%s12 + $0x424] sm:$0xf]
        %v4098 = vld [vmem:[%s12 + $0x428] sm:$0xff]
        %v4099 = vld [vmem:[%s12 + $0x430] sm:$0xff]
        %v4100 = vld [vmem:[%s12 + $0x438] sm:$0xff]
        %v4101 = vld [vmem:[%s12 + $0x440] sm:$0xf]
        %v4102 = vld [vmem:[%s12 + $0x444] sm:$0xff]
        %v4103 = vld [vmem:[%s12 + $0x44c] sm:$0xff]
        %v4104 = vld [vmem:[%s12 + $0x454] sm:$0xff]
        %v4105 = vld [vmem:[%s12 + $0x45c] sm:$0xf]
        %v4106 = vld [vmem:[%s12 + $0x460] sm:$0xff]
        %v4107 = vld [vmem:[%s12 + $0x468] sm:$0xff]
        %v4108 = vld [vmem:[%s12 + $0x470] sm:$0xff]
        %v4109 = vld [vmem:[%s12 + $0x478] sm:$0xf]
        %v4110 = vld [vmem:[%s12 + $0x47c] sm:$0xff]
        %v4111 = vld [vmem:[%s12 + $0x484] sm:$0xff]
        %v4112 = vld [vmem:[%s12 + $0x48c] sm:$0xff]
        %v4113 = vld [vmem:[%s12 + $0x494] sm:$0xf]
        %v4114 = vld [vmem:[%s12 + $0x498] sm:$0xff]
        %v4115 = vld [vmem:[%s12 + $0x4a0] sm:$0xff]
        %v4116 = vld [vmem:[%s12 + $0x4a8] sm:$0xff]
        %v4117 = vld [vmem:[%s12 + $0x4b0] sm:$0xf]
        %v4118 = vld [vmem:[%s12 + $0x4b4] sm:$0xff]
        %v4119 = vld [vmem:[%s12 + $0x4bc] sm:$0xff]
        %v4120 = vld [vmem:[%s12 + $0x4c4] sm:$0xff]
        %v4121 = vld [vmem:[%s12 + $0x4cc] sm:$0xf]
        %v4122 = vld [vmem:[%s12 + $0x4d0] sm:$0xff]
        %v4123 = vld [vmem:[%s12 + $0x4d8] sm:$0xff]
        %v4124 = vld [vmem:[%s12 + $0x4e0] sm:$0xff]
        %v4125 = vld [vmem:[%s12 + $0x4e8] sm:$0xf]
        %v4126 = vld [vmem:[%s12 + $0x4ec] sm:$0xff]
        %v4127 = vld [vmem:[%s12 + $0x4f4] sm:$0xff]
        %v4128 = vld [vmem:[%s12 + $0x4fc] sm:$0xff]
        %v4129 = vld [vmem:[%s12 + $0x504] sm:$0xf]
        %v4130 = vld [vmem:[%s12 + $0x508] sm:$0xff]
        %v4131 = vld [vmem:[%s12 + $0x510] sm:$0xff]
        %v4132 = vld [vmem:[%s12 + $0x518] sm:$0xff]
        %v4133 = vld [vmem:[%s12 + $0x520] sm:$0xf]
        %v4134 = vld [vmem:[%s12 + $0x524] sm:$0xff]
        %v4135 = vld [vmem:[%s12 + $0x52c] sm:$0xff]
        %v4136 = vld [vmem:[%s12 + $0x534] sm:$0xff]
        %v4137 = vld [vmem:[%s12 + $0x53c] sm:$0xf]
        %v4138 = vld [vmem:[%s12 + $0x540] sm:$0xff]
        %v4139 = vld [vmem:[%s12 + $0x548] sm:$0xff]
        %v4140 = vld [vmem:[%s12 + $0x550] sm:$0xff]
        %v4141 = vld [vmem:[%s12 + $0x558] sm:$0xf]
        %v4142 = vld [vmem:[%s12 + $0x55c] sm:$0xff]
        %v4143 = vld [vmem:[%s12 + $0x564] sm:$0xff]
        %v4144 = vld [vmem:[%s12 + $0x56c] sm:$0xff]
        %v4145 = vld [vmem:[%s12 + $0x574] sm:$0xf]
        %v4146 = vld [vmem:[%s12 + $0x578] sm:$0xff]
        %v4147 = vld [vmem:[%s12 + $0x580] sm:$0xff]
        %v4148 = vld [vmem:[%s12 + $0x588] sm:$0xff]
        %v4149 = vld [vmem:[%s12 + $0x590] sm:$0xf]
        %v4150 = vld [vmem:[%s12 + $0x594] sm:$0xff]
        %v4151 = vld [vmem:[%s12 + $0x59c] sm:$0xff]
        %v4152 = vld [vmem:[%s12 + $0x5a4] sm:$0xff]
        %v4153 = vld [vmem:[%s12 + $0x5ac] sm:$0xf]
        %v4154 = vld [vmem:[%s12 + $0x5b0] sm:$0xff]
        %v4155 = vld [vmem:[%s12 + $0x5b8] sm:$0xff]
        %v4156 = vld [vmem:[%s12 + $0x5c0] sm:$0xff]
        %v4157 = vld [vmem:[%s12 + $0x5c8] sm:$0xf]
        %v4158 = vld [vmem:[%s12 + $0x5cc] sm:$0xff]
        %v4159 = vld [vmem:[%s12 + $0x5d4] sm:$0xff]
        %v4160 = vld [vmem:[%s12 + $0x5dc] sm:$0xff]
        %v4161 = vld [vmem:[%s12 + $0x5e4] sm:$0xf]
        %v4162 = vld [vmem:[%s12 + $0x5e8] sm:$0xff]
        %v4163 = vld [vmem:[%s12 + $0x5f0] sm:$0xff]
        %v4164 = vld [vmem:[%s12 + $0x5f8] sm:$0xff]
        %v4165 = vld [vmem:[%s12 + $0x600] sm:$0xf]
        %v4166 = vld [vmem:[%s12 + $0x604] sm:$0xff]
        %v4167 = vld [vmem:[%s12 + $0x60c] sm:$0xff]
        %v4168 = vld [vmem:[%s12 + $0x614] sm:$0xff]
        %v4169 = vld [vmem:[%s12 + $0x61c] sm:$0xf]
        %v4170 = vld [vmem:[%s12 + $0x620] sm:$0xff]
        %v4171 = vld [vmem:[%s12 + $0x628] sm:$0xff]
        %v4172 = vld [vmem:[%s12 + $0x630] sm:$0xff]
        %v4173 = vld [vmem:[%s12 + $0x638] sm:$0xf]
        %v4174 = vld [vmem:[%s12 + $0x63c] sm:$0xff]
        %v4175 = vld [vmem:[%s12 + $0x644] sm:$0xff]
        %v4176 = vld [vmem:[%s12 + $0x64c] sm:$0xff]
        %v4177 = vld [vmem:[%s12 + $0x654] sm:$0xf]
        %v4178 = vld [vmem:[%s12 + $0x658] sm:$0xff]
        %v4179 = vld [vmem:[%s12 + $0x660] sm:$0xff]
        %v4180 = vld [vmem:[%s12 + $0x668] sm:$0xff]
        %v4181 = vld [vmem:[%s12 + $0x670] sm:$0xf]
        %v4182 = vld [vmem:[%s12 + $0x674] sm:$0xff]
        %v4183 = vld [vmem:[%s12 + $0x67c] sm:$0xff]
        %v4184 = vld [vmem:[%s12 + $0x684] sm:$0xff]
        %v4185 = vld [vmem:[%s12 + $0x68c] sm:$0xf]
        %v4186 = vld [vmem:[%s12 + $0x690] sm:$0xff]
        %v4187 = vld [vmem:[%s12 + $0x698] sm:$0xff]
        %v4188 = vld [vmem:[%s12 + $0x6a0] sm:$0xff]
        %v4189 = vld [vmem:[%s12 + $0x6a8] sm:$0xf]
        %v4190 = vld [vmem:[%s12 + $0x6ac] sm:$0xff]
        %v4191 = vld [vmem:[%s12 + $0x6b4] sm:$0xff]
        %v4192 = vld [vmem:[%s12 + $0x6bc] sm:$0xff]
        %v4193 = vld [vmem:[%s12 + $0x6c4] sm:$0xf]
        %v4194 = vld [vmem:[%s12 + $0x6c8] sm:$0xff]
        %v4195 = vld [vmem:[%s12 + $0x6d0] sm:$0xff]
        %v4196 = vld [vmem:[%s12 + $0x6d8] sm:$0xff]
        %v4197 = vld [vmem:[%s12 + $0x6e0] sm:$0xf]
        %v4198 = vld [vmem:[%s12 + $0x6e4] sm:$0xff]
        %v4199 = vld [vmem:[%s12 + $0x6ec] sm:$0xff]
        %v4200 = vld [vmem:[%s12 + $0x6f4] sm:$0xff]
        %v4201 = vld [vmem:[%s12 + $0x6fc] sm:$0xf]
        %s4202 = scalar_lea.vmem %s13, 59
        %v4203 = vld [vmem:[%s4202] ss:$8 sm:$0xf]
        %v4204 = vld [vmem:[%s4202] ss:$8 sm:$0xf0]
        %v4205 = vor.u32 %v4203, %v4204
        %v4207 = vlaneseq
        %v4208 = vshrl.u32 %v4207, 7
        %v4209 = vsub.s32 0, %v4208
        %v4210 = vrot.slane %v4205, %v4209
        %v4211 = vlaneseq
        %v4212 = vshrl.u32 %v4211, 7
        %v4213 = vsub.s32 1, %v4212
        %v4214 = vrot.slane %v4205, %v4213
        %v4215 = vlaneseq
        %v4216 = vshrl.u32 %v4215, 7
        %v4217 = vsub.s32 2, %v4216
        %v4218 = vrot.slane %v4205, %v4217
        %v4219 = vlaneseq
        %v4220 = vshrl.u32 %v4219, 7
        %v4221 = vsub.s32 3, %v4220
        %v4222 = vrot.slane %v4205, %v4221
        %v4223 = vlaneseq
        %v4224 = vshrl.u32 %v4223, 7
        %v4225 = vsub.s32 4, %v4224
        %v4226 = vrot.slane %v4205, %v4225
        %v4227 = vlaneseq
        %v4228 = vshrl.u32 %v4227, 7
        %v4229 = vsub.s32 5, %v4228
        %v4230 = vrot.slane %v4205, %v4229
        %v4231 = vlaneseq
        %v4232 = vshrl.u32 %v4231, 7
        %v4233 = vsub.s32 6, %v4232
        %v4234 = vrot.slane %v4205, %v4233
        %v4498 = vunpack.c.l.b16 %v3946
        %v4499 = vunpack.c.h.b16 %v3946
        %v4500 = vunpack.c.l.b16 %v3947
        %v4501 = vunpack.c.h.b16 %v3947
        %v4502 = vunpack.c.l.b16 %v3948
        %v4503 = vunpack.c.h.b16 %v3948
        %v4504 = vunpack.c.l.b16 %v3949
        %v4505 = vunpack.c.l.b16 %v3950
        %v4506 = vunpack.c.h.b16 %v3950
        %v4507 = vunpack.c.l.b16 %v3951
        %v4508 = vunpack.c.h.b16 %v3951
        %v4509 = vunpack.c.l.b16 %v3952
        %v4510 = vunpack.c.h.b16 %v3952
        %v4511 = vunpack.c.l.b16 %v3953
        %v4512 = vunpack.c.l.b16 %v3954
        %v4513 = vunpack.c.h.b16 %v3954
        %v4514 = vunpack.c.l.b16 %v3955
        %v4515 = vunpack.c.h.b16 %v3955
        %v4516 = vunpack.c.l.b16 %v3956
        %v4517 = vunpack.c.h.b16 %v3956
        %v4518 = vunpack.c.l.b16 %v3957
        %v4519 = vunpack.c.l.b16 %v3958
        %v4520 = vunpack.c.h.b16 %v3958
        %v4521 = vunpack.c.l.b16 %v3959
        %v4522 = vunpack.c.h.b16 %v3959
        %v4523 = vunpack.c.l.b16 %v3960
        %v4524 = vunpack.c.h.b16 %v3960
        %v4525 = vunpack.c.l.b16 %v3961
        %v4526 = vunpack.c.l.b16 %v3962
        %v4527 = vunpack.c.h.b16 %v3962
        %v4528 = vunpack.c.l.b16 %v3963
        %v4529 = vunpack.c.h.b16 %v3963
        %v4530 = vunpack.c.l.b16 %v3964
        %v4531 = vunpack.c.h.b16 %v3964
        %v4532 = vunpack.c.l.b16 %v3965
        %v4533 = vunpack.c.l.b16 %v3966
        %v4534 = vunpack.c.h.b16 %v3966
        %v4535 = vunpack.c.l.b16 %v3967
        %v4536 = vunpack.c.h.b16 %v3967
        %v4537 = vunpack.c.l.b16 %v3968
        %v4538 = vunpack.c.h.b16 %v3968
        %v4539 = vunpack.c.l.b16 %v3969
        %v4540 = vunpack.c.l.b16 %v3970
        %v4541 = vunpack.c.h.b16 %v3970
        %v4542 = vunpack.c.l.b16 %v3971
        %v4543 = vunpack.c.h.b16 %v3971
        %v4544 = vunpack.c.l.b16 %v3972
        %v4545 = vunpack.c.h.b16 %v3972
        %v4546 = vunpack.c.l.b16 %v3973
        %v4547 = vunpack.c.l.b16 %v3974
        %v4548 = vunpack.c.h.b16 %v3974
        %v4549 = vunpack.c.l.b16 %v3975
        %v4550 = vunpack.c.h.b16 %v3975
        %v4551 = vunpack.c.l.b16 %v3976
        %v4552 = vunpack.c.h.b16 %v3976
        %v4553 = vunpack.c.l.b16 %v3977
        %v4554 = vunpack.c.l.b16 %v3978
        %v4555 = vunpack.c.h.b16 %v3978
        %v4556 = vunpack.c.l.b16 %v3979
        %v4557 = vunpack.c.h.b16 %v3979
        %v4558 = vunpack.c.l.b16 %v3980
        %v4559 = vunpack.c.h.b16 %v3980
        %v4560 = vunpack.c.l.b16 %v3981
        %v4561 = vunpack.c.l.b16 %v3982
        %v4562 = vunpack.c.h.b16 %v3982
        %v4563 = vunpack.c.l.b16 %v3983
        %v4564 = vunpack.c.h.b16 %v3983
        %v4565 = vunpack.c.l.b16 %v3984
        %v4566 = vunpack.c.h.b16 %v3984
        %v4567 = vunpack.c.l.b16 %v3985
        %v4568 = vunpack.c.l.b16 %v3986
        %v4569 = vunpack.c.h.b16 %v3986
        %v4570 = vunpack.c.l.b16 %v3987
        %v4571 = vunpack.c.h.b16 %v3987
        %v4572 = vunpack.c.l.b16 %v3988
        %v4573 = vunpack.c.h.b16 %v3988
        %v4574 = vunpack.c.l.b16 %v3989
        %v4575 = vunpack.c.l.b16 %v3990
        %v4576 = vunpack.c.h.b16 %v3990
        %v4577 = vunpack.c.l.b16 %v3991
        %v4578 = vunpack.c.h.b16 %v3991
        %v4579 = vunpack.c.l.b16 %v3992
        %v4580 = vunpack.c.h.b16 %v3992
        %v4581 = vunpack.c.l.b16 %v3993
        %v4582 = vunpack.c.l.b16 %v3994
        %v4583 = vunpack.c.h.b16 %v3994
        %v4584 = vunpack.c.l.b16 %v3995
        %v4585 = vunpack.c.h.b16 %v3995
        %v4586 = vunpack.c.l.b16 %v3996
        %v4587 = vunpack.c.h.b16 %v3996
        %v4588 = vunpack.c.l.b16 %v3997
        %v4589 = vunpack.c.l.b16 %v3998
        %v4590 = vunpack.c.h.b16 %v3998
        %v4591 = vunpack.c.l.b16 %v3999
        %v4592 = vunpack.c.h.b16 %v3999
        %v4593 = vunpack.c.l.b16 %v4000
        %v4594 = vunpack.c.h.b16 %v4000
        %v4595 = vunpack.c.l.b16 %v4001
        %v4596 = vunpack.c.l.b16 %v4002
        %v4597 = vunpack.c.h.b16 %v4002
        %v4598 = vunpack.c.l.b16 %v4003
        %v4599 = vunpack.c.h.b16 %v4003
        %v4600 = vunpack.c.l.b16 %v4004
        %v4601 = vunpack.c.h.b16 %v4004
        %v4602 = vunpack.c.l.b16 %v4005
        %v4603 = vunpack.c.l.b16 %v4006
        %v4604 = vunpack.c.h.b16 %v4006
        %v4605 = vunpack.c.l.b16 %v4007
        %v4606 = vunpack.c.h.b16 %v4007
        %v4607 = vunpack.c.l.b16 %v4008
        %v4608 = vunpack.c.h.b16 %v4008
        %v4609 = vunpack.c.l.b16 %v4009
        %v4610 = vunpack.c.l.b16 %v4010
        %v4611 = vunpack.c.h.b16 %v4010
        %v4612 = vunpack.c.l.b16 %v4011
        %v4613 = vunpack.c.h.b16 %v4011
        %v4614 = vunpack.c.l.b16 %v4012
        %v4615 = vunpack.c.h.b16 %v4012
        %v4616 = vunpack.c.l.b16 %v4013
        %v4617 = vunpack.c.l.b16 %v4014
        %v4618 = vunpack.c.h.b16 %v4014
        %v4619 = vunpack.c.l.b16 %v4015
        %v4620 = vunpack.c.h.b16 %v4015
        %v4621 = vunpack.c.l.b16 %v4016
        %v4622 = vunpack.c.h.b16 %v4016
        %v4623 = vunpack.c.l.b16 %v4017
        %v4624 = vunpack.c.l.b16 %v4018
        %v4625 = vunpack.c.h.b16 %v4018
        %v4626 = vunpack.c.l.b16 %v4019
        %v4627 = vunpack.c.h.b16 %v4019
        %v4628 = vunpack.c.l.b16 %v4020
        %v4629 = vunpack.c.h.b16 %v4020
        %v4630 = vunpack.c.l.b16 %v4021
        %v4631 = vunpack.c.l.b16 %v4022
        %v4632 = vunpack.c.h.b16 %v4022
        %v4633 = vunpack.c.l.b16 %v4023
        %v4634 = vunpack.c.h.b16 %v4023
        %v4635 = vunpack.c.l.b16 %v4024
        %v4636 = vunpack.c.h.b16 %v4024
        %v4637 = vunpack.c.l.b16 %v4025
        %v4638 = vunpack.c.l.b16 %v4026
        %v4639 = vunpack.c.h.b16 %v4026
        %v4640 = vunpack.c.l.b16 %v4027
        %v4641 = vunpack.c.h.b16 %v4027
        %v4642 = vunpack.c.l.b16 %v4028
        %v4643 = vunpack.c.h.b16 %v4028
        %v4644 = vunpack.c.l.b16 %v4029
        %v4645 = vunpack.c.l.b16 %v4030
        %v4646 = vunpack.c.h.b16 %v4030
        %v4647 = vunpack.c.l.b16 %v4031
        %v4648 = vunpack.c.h.b16 %v4031
        %v4649 = vunpack.c.l.b16 %v4032
        %v4650 = vunpack.c.h.b16 %v4032
        %v4651 = vunpack.c.l.b16 %v4033
        %v4652 = vunpack.c.l.b16 %v4034
        %v4653 = vunpack.c.h.b16 %v4034
        %v4654 = vunpack.c.l.b16 %v4035
        %v4655 = vunpack.c.h.b16 %v4035
        %v4656 = vunpack.c.l.b16 %v4036
        %v4657 = vunpack.c.h.b16 %v4036
        %v4658 = vunpack.c.l.b16 %v4037
        %v4659 = vunpack.c.l.b16 %v4038
        %v4660 = vunpack.c.h.b16 %v4038
        %v4661 = vunpack.c.l.b16 %v4039
        %v4662 = vunpack.c.h.b16 %v4039
        %v4663 = vunpack.c.l.b16 %v4040
        %v4664 = vunpack.c.h.b16 %v4040
        %v4665 = vunpack.c.l.b16 %v4041
        %v4666 = vunpack.c.l.b16 %v4042
        %v4667 = vunpack.c.h.b16 %v4042
        %v4668 = vunpack.c.l.b16 %v4043
        %v4669 = vunpack.c.h.b16 %v4043
        %v4670 = vunpack.c.l.b16 %v4044
        %v4671 = vunpack.c.h.b16 %v4044
        %v4672 = vunpack.c.l.b16 %v4045
        %v4673 = vunpack.c.l.b16 %v4046
        %v4674 = vunpack.c.h.b16 %v4046
        %v4675 = vunpack.c.l.b16 %v4047
        %v4676 = vunpack.c.h.b16 %v4047
        %v4677 = vunpack.c.l.b16 %v4048
        %v4678 = vunpack.c.h.b16 %v4048
        %v4679 = vunpack.c.l.b16 %v4049
        %v4680 = vunpack.c.l.b16 %v4050
        %v4681 = vunpack.c.h.b16 %v4050
        %v4682 = vunpack.c.l.b16 %v4051
        %v4683 = vunpack.c.h.b16 %v4051
        %v4684 = vunpack.c.l.b16 %v4052
        %v4685 = vunpack.c.h.b16 %v4052
        %v4686 = vunpack.c.l.b16 %v4053
        %v4687 = vunpack.c.l.b16 %v4054
        %v4688 = vunpack.c.h.b16 %v4054
        %v4689 = vunpack.c.l.b16 %v4055
        %v4690 = vunpack.c.h.b16 %v4055
        %v4691 = vunpack.c.l.b16 %v4056
        %v4692 = vunpack.c.h.b16 %v4056
        %v4693 = vunpack.c.l.b16 %v4057
        %v4694 = vunpack.c.l.b16 %v4058
        %v4695 = vunpack.c.h.b16 %v4058
        %v4696 = vunpack.c.l.b16 %v4059
        %v4697 = vunpack.c.h.b16 %v4059
        %v4698 = vunpack.c.l.b16 %v4060
        %v4699 = vunpack.c.h.b16 %v4060
        %v4700 = vunpack.c.l.b16 %v4061
        %v4701 = vunpack.c.l.b16 %v4062
        %v4702 = vunpack.c.h.b16 %v4062
        %v4703 = vunpack.c.l.b16 %v4063
        %v4704 = vunpack.c.h.b16 %v4063
        %v4705 = vunpack.c.l.b16 %v4064
        %v4706 = vunpack.c.h.b16 %v4064
        %v4707 = vunpack.c.l.b16 %v4065
        %v4708 = vunpack.c.l.b16 %v4066
        %v4709 = vunpack.c.h.b16 %v4066
        %v4710 = vunpack.c.l.b16 %v4067
        %v4711 = vunpack.c.h.b16 %v4067
        %v4712 = vunpack.c.l.b16 %v4068
        %v4713 = vunpack.c.h.b16 %v4068
        %v4714 = vunpack.c.l.b16 %v4069
        %v4715 = vunpack.c.l.b16 %v4070
        %v4716 = vunpack.c.h.b16 %v4070
        %v4717 = vunpack.c.l.b16 %v4071
        %v4718 = vunpack.c.h.b16 %v4071
        %v4719 = vunpack.c.l.b16 %v4072
        %v4720 = vunpack.c.h.b16 %v4072
        %v4721 = vunpack.c.l.b16 %v4073
        %v4722 = vunpack.c.l.b16 %v4074
        %v4723 = vunpack.c.h.b16 %v4074
        %v4724 = vunpack.c.l.b16 %v4075
        %v4725 = vunpack.c.h.b16 %v4075
        %v4726 = vunpack.c.l.b16 %v4076
        %v4727 = vunpack.c.h.b16 %v4076
        %v4728 = vunpack.c.l.b16 %v4077
        %v4729 = vunpack.c.l.b16 %v4078
        %v4730 = vunpack.c.h.b16 %v4078
        %v4731 = vunpack.c.l.b16 %v4079
        %v4732 = vunpack.c.h.b16 %v4079
        %v4733 = vunpack.c.l.b16 %v4080
        %v4734 = vunpack.c.h.b16 %v4080
        %v4735 = vunpack.c.l.b16 %v4081
        %v4736 = vunpack.c.l.b16 %v4082
        %v4737 = vunpack.c.h.b16 %v4082
        %v4738 = vunpack.c.l.b16 %v4083
        %v4739 = vunpack.c.h.b16 %v4083
        %v4740 = vunpack.c.l.b16 %v4084
        %v4741 = vunpack.c.h.b16 %v4084
        %v4742 = vunpack.c.l.b16 %v4085
        %v4743 = vunpack.c.l.b16 %v4086
        %v4744 = vunpack.c.h.b16 %v4086
        %v4745 = vunpack.c.l.b16 %v4087
        %v4746 = vunpack.c.h.b16 %v4087
        %v4747 = vunpack.c.l.b16 %v4088
        %v4748 = vunpack.c.h.b16 %v4088
        %v4749 = vunpack.c.l.b16 %v4089
        %v4750 = vunpack.c.l.b16 %v4090
        %v4751 = vunpack.c.h.b16 %v4090
        %v4752 = vunpack.c.l.b16 %v4091
        %v4753 = vunpack.c.h.b16 %v4091
        %v4754 = vunpack.c.l.b16 %v4092
        %v4755 = vunpack.c.h.b16 %v4092
        %v4756 = vunpack.c.l.b16 %v4093
        %v4757 = vunpack.c.l.b16 %v4094
        %v4758 = vunpack.c.h.b16 %v4094
        %v4759 = vunpack.c.l.b16 %v4095
        %v4760 = vunpack.c.h.b16 %v4095
        %v4761 = vunpack.c.l.b16 %v4096
        %v4762 = vunpack.c.h.b16 %v4096
        %v4763 = vunpack.c.l.b16 %v4097
        %v4764 = vunpack.c.l.b16 %v4098
        %v4765 = vunpack.c.h.b16 %v4098
        %v4766 = vunpack.c.l.b16 %v4099
        %v4767 = vunpack.c.h.b16 %v4099
        %v4768 = vunpack.c.l.b16 %v4100
        %v4769 = vunpack.c.h.b16 %v4100
        %v4770 = vunpack.c.l.b16 %v4101
        %v4771 = vunpack.c.l.b16 %v4102
        %v4772 = vunpack.c.h.b16 %v4102
        %v4773 = vunpack.c.l.b16 %v4103
        %v4774 = vunpack.c.h.b16 %v4103
        %v4775 = vunpack.c.l.b16 %v4104
        %v4776 = vunpack.c.h.b16 %v4104
        %v4777 = vunpack.c.l.b16 %v4105
        %v4778 = vunpack.c.l.b16 %v4106
        %v4779 = vunpack.c.h.b16 %v4106
        %v4780 = vunpack.c.l.b16 %v4107
        %v4781 = vunpack.c.h.b16 %v4107
        %v4782 = vunpack.c.l.b16 %v4108
        %v4783 = vunpack.c.h.b16 %v4108
        %v4784 = vunpack.c.l.b16 %v4109
        %v4785 = vunpack.c.l.b16 %v4110
        %v4786 = vunpack.c.h.b16 %v4110
        %v4787 = vunpack.c.l.b16 %v4111
        %v4788 = vunpack.c.h.b16 %v4111
        %v4789 = vunpack.c.l.b16 %v4112
        %v4790 = vunpack.c.h.b16 %v4112
        %v4791 = vunpack.c.l.b16 %v4113
        %v4792 = vunpack.c.l.b16 %v4114
        %v4793 = vunpack.c.h.b16 %v4114
        %v4794 = vunpack.c.l.b16 %v4115
        %v4795 = vunpack.c.h.b16 %v4115
        %v4796 = vunpack.c.l.b16 %v4116
        %v4797 = vunpack.c.h.b16 %v4116
        %v4798 = vunpack.c.l.b16 %v4117
        %v4799 = vunpack.c.l.b16 %v4118
        %v4800 = vunpack.c.h.b16 %v4118
        %v4801 = vunpack.c.l.b16 %v4119
        %v4802 = vunpack.c.h.b16 %v4119
        %v4803 = vunpack.c.l.b16 %v4120
        %v4804 = vunpack.c.h.b16 %v4120
        %v4805 = vunpack.c.l.b16 %v4121
        %v4806 = vunpack.c.l.b16 %v4122
        %v4807 = vunpack.c.h.b16 %v4122
        %v4808 = vunpack.c.l.b16 %v4123
        %v4809 = vunpack.c.h.b16 %v4123
        %v4810 = vunpack.c.l.b16 %v4124
        %v4811 = vunpack.c.h.b16 %v4124
        %v4812 = vunpack.c.l.b16 %v4125
        %v4813 = vunpack.c.l.b16 %v4126
        %v4814 = vunpack.c.h.b16 %v4126
        %v4815 = vunpack.c.l.b16 %v4127
        %v4816 = vunpack.c.h.b16 %v4127
        %v4817 = vunpack.c.l.b16 %v4128
        %v4818 = vunpack.c.h.b16 %v4128
        %v4819 = vunpack.c.l.b16 %v4129
        %v4820 = vunpack.c.l.b16 %v4130
        %v4821 = vunpack.c.h.b16 %v4130
        %v4822 = vunpack.c.l.b16 %v4131
        %v4823 = vunpack.c.h.b16 %v4131
        %v4824 = vunpack.c.l.b16 %v4132
        %v4825 = vunpack.c.h.b16 %v4132
        %v4826 = vunpack.c.l.b16 %v4133
        %v4827 = vunpack.c.l.b16 %v4134
        %v4828 = vunpack.c.h.b16 %v4134
        %v4829 = vunpack.c.l.b16 %v4135
        %v4830 = vunpack.c.h.b16 %v4135
        %v4831 = vunpack.c.l.b16 %v4136
        %v4832 = vunpack.c.h.b16 %v4136
        %v4833 = vunpack.c.l.b16 %v4137
        %v4834 = vunpack.c.l.b16 %v4138
        %v4835 = vunpack.c.h.b16 %v4138
        %v4836 = vunpack.c.l.b16 %v4139
        %v4837 = vunpack.c.h.b16 %v4139
        %v4838 = vunpack.c.l.b16 %v4140
        %v4839 = vunpack.c.h.b16 %v4140
        %v4840 = vunpack.c.l.b16 %v4141
        %v4841 = vunpack.c.l.b16 %v4142
        %v4842 = vunpack.c.h.b16 %v4142
        %v4843 = vunpack.c.l.b16 %v4143
        %v4844 = vunpack.c.h.b16 %v4143
        %v4845 = vunpack.c.l.b16 %v4144
        %v4846 = vunpack.c.h.b16 %v4144
        %v4847 = vunpack.c.l.b16 %v4145
        %v4848 = vunpack.c.l.b16 %v4146
        %v4849 = vunpack.c.h.b16 %v4146
        %v4850 = vunpack.c.l.b16 %v4147
        %v4851 = vunpack.c.h.b16 %v4147
        %v4852 = vunpack.c.l.b16 %v4148
        %v4853 = vunpack.c.h.b16 %v4148
        %v4854 = vunpack.c.l.b16 %v4149
        %v4855 = vunpack.c.l.b16 %v4150
        %v4856 = vunpack.c.h.b16 %v4150
        %v4857 = vunpack.c.l.b16 %v4151
        %v4858 = vunpack.c.h.b16 %v4151
        %v4859 = vunpack.c.l.b16 %v4152
        %v4860 = vunpack.c.h.b16 %v4152
        %v4861 = vunpack.c.l.b16 %v4153
        %v4862 = vunpack.c.l.b16 %v4154
        %v4863 = vunpack.c.h.b16 %v4154
        %v4864 = vunpack.c.l.b16 %v4155
        %v4865 = vunpack.c.h.b16 %v4155
        %v4866 = vunpack.c.l.b16 %v4156
        %v4867 = vunpack.c.h.b16 %v4156
        %v4868 = vunpack.c.l.b16 %v4157
        %v4869 = vunpack.c.l.b16 %v4158
        %v4870 = vunpack.c.h.b16 %v4158
        %v4871 = vunpack.c.l.b16 %v4159
        %v4872 = vunpack.c.h.b16 %v4159
        %v4873 = vunpack.c.l.b16 %v4160
        %v4874 = vunpack.c.h.b16 %v4160
        %v4875 = vunpack.c.l.b16 %v4161
        %v4876 = vunpack.c.l.b16 %v4162
        %v4877 = vunpack.c.h.b16 %v4162
        %v4878 = vunpack.c.l.b16 %v4163
        %v4879 = vunpack.c.h.b16 %v4163
        %v4880 = vunpack.c.l.b16 %v4164
        %v4881 = vunpack.c.h.b16 %v4164
        %v4882 = vunpack.c.l.b16 %v4165
        %v4883 = vunpack.c.l.b16 %v4166
        %v4884 = vunpack.c.h.b16 %v4166
        %v4885 = vunpack.c.l.b16 %v4167
        %v4886 = vunpack.c.h.b16 %v4167
        %v4887 = vunpack.c.l.b16 %v4168
        %v4888 = vunpack.c.h.b16 %v4168
        %v4889 = vunpack.c.l.b16 %v4169
        %v4890 = vunpack.c.l.b16 %v4170
        %v4891 = vunpack.c.h.b16 %v4170
        %v4892 = vunpack.c.l.b16 %v4171
        %v4893 = vunpack.c.h.b16 %v4171
        %v4894 = vunpack.c.l.b16 %v4172
        %v4895 = vunpack.c.h.b16 %v4172
        %v4896 = vunpack.c.l.b16 %v4173
        %v4897 = vunpack.c.l.b16 %v4174
        %v4898 = vunpack.c.h.b16 %v4174
        %v4899 = vunpack.c.l.b16 %v4175
        %v4900 = vunpack.c.h.b16 %v4175
        %v4901 = vunpack.c.l.b16 %v4176
        %v4902 = vunpack.c.h.b16 %v4176
        %v4903 = vunpack.c.l.b16 %v4177
        %v4904 = vunpack.c.l.b16 %v4178
        %v4905 = vunpack.c.h.b16 %v4178
        %v4906 = vunpack.c.l.b16 %v4179
        %v4907 = vunpack.c.h.b16 %v4179
        %v4908 = vunpack.c.l.b16 %v4180
        %v4909 = vunpack.c.h.b16 %v4180
        %v4910 = vunpack.c.l.b16 %v4181
        %v4911 = vunpack.c.l.b16 %v4182
        %v4912 = vunpack.c.h.b16 %v4182
        %v4913 = vunpack.c.l.b16 %v4183
        %v4914 = vunpack.c.h.b16 %v4183
        %v4915 = vunpack.c.l.b16 %v4184
        %v4916 = vunpack.c.h.b16 %v4184
        %v4917 = vunpack.c.l.b16 %v4185
        %v4918 = vunpack.c.l.b16 %v4186
        %v4919 = vunpack.c.h.b16 %v4186
        %v4920 = vunpack.c.l.b16 %v4187
        %v4921 = vunpack.c.h.b16 %v4187
        %v4922 = vunpack.c.l.b16 %v4188
        %v4923 = vunpack.c.h.b16 %v4188
        %v4924 = vunpack.c.l.b16 %v4189
        %v4925 = vunpack.c.l.b16 %v4190
        %v4926 = vunpack.c.h.b16 %v4190
        %v4927 = vunpack.c.l.b16 %v4191
        %v4928 = vunpack.c.h.b16 %v4191
        %v4929 = vunpack.c.l.b16 %v4192
        %v4930 = vunpack.c.h.b16 %v4192
        %v4931 = vunpack.c.l.b16 %v4193
        %v4932 = vunpack.c.l.b16 %v4194
        %v4933 = vunpack.c.h.b16 %v4194
        %v4934 = vunpack.c.l.b16 %v4195
        %v4935 = vunpack.c.h.b16 %v4195
        %v4936 = vunpack.c.l.b16 %v4196
        %v4937 = vunpack.c.h.b16 %v4196
        %v4938 = vunpack.c.l.b16 %v4197
        %v4939 = vunpack.c.l.b16 %v4198
        %v4940 = vunpack.c.h.b16 %v4198
        %v4941 = vunpack.c.l.b16 %v4199
        %v4942 = vunpack.c.h.b16 %v4199
        %v4943 = vunpack.c.l.b16 %v4200
        %v4944 = vunpack.c.h.b16 %v4200
        %v4945 = vunpack.c.l.b16 %v4201
        %v4946 = vpack.c.b16 %v4505, %v4498
        %v4947 = vpack.c.b16 %v4506, %v4499
        %v4948 = vpack.c.b16 %v4507, %v4500
        %v4949 = vpack.c.b16 %v4508, %v4501
        %v4950 = vpack.c.b16 %v4509, %v4502
        %v4951 = vpack.c.b16 %v4510, %v4503
        %v4952 = vpack.c.b16 %v4511, %v4504
        %v4953 = vpack.c.b16 %v4519, %v4512
        %v4954 = vpack.c.b16 %v4520, %v4513
        %v4955 = vpack.c.b16 %v4521, %v4514
        %v4956 = vpack.c.b16 %v4522, %v4515
        %v4957 = vpack.c.b16 %v4523, %v4516
        %v4958 = vpack.c.b16 %v4524, %v4517
        %v4959 = vpack.c.b16 %v4525, %v4518
        %v4960 = vpack.c.b16 %v4533, %v4526
        %v4961 = vpack.c.b16 %v4534, %v4527
        %v4962 = vpack.c.b16 %v4535, %v4528
        %v4963 = vpack.c.b16 %v4536, %v4529
        %v4964 = vpack.c.b16 %v4537, %v4530
        %v4965 = vpack.c.b16 %v4538, %v4531
        %v4966 = vpack.c.b16 %v4539, %v4532
        %v4967 = vpack.c.b16 %v4547, %v4540
        %v4968 = vpack.c.b16 %v4548, %v4541
        %v4969 = vpack.c.b16 %v4549, %v4542
        %v4970 = vpack.c.b16 %v4550, %v4543
        %v4971 = vpack.c.b16 %v4551, %v4544
        %v4972 = vpack.c.b16 %v4552, %v4545
        %v4973 = vpack.c.b16 %v4553, %v4546
        %v4974 = vpack.c.b16 %v4561, %v4554
        %v4975 = vpack.c.b16 %v4562, %v4555
        %v4976 = vpack.c.b16 %v4563, %v4556
        %v4977 = vpack.c.b16 %v4564, %v4557
        %v4978 = vpack.c.b16 %v4565, %v4558
        %v4979 = vpack.c.b16 %v4566, %v4559
        %v4980 = vpack.c.b16 %v4567, %v4560
        %v4981 = vpack.c.b16 %v4575, %v4568
        %v4982 = vpack.c.b16 %v4576, %v4569
        %v4983 = vpack.c.b16 %v4577, %v4570
        %v4984 = vpack.c.b16 %v4578, %v4571
        %v4985 = vpack.c.b16 %v4579, %v4572
        %v4986 = vpack.c.b16 %v4580, %v4573
        %v4987 = vpack.c.b16 %v4581, %v4574
        %v4988 = vpack.c.b16 %v4589, %v4582
        %v4989 = vpack.c.b16 %v4590, %v4583
        %v4990 = vpack.c.b16 %v4591, %v4584
        %v4991 = vpack.c.b16 %v4592, %v4585
        %v4992 = vpack.c.b16 %v4593, %v4586
        %v4993 = vpack.c.b16 %v4594, %v4587
        %v4994 = vpack.c.b16 %v4595, %v4588
        %v4995 = vpack.c.b16 %v4603, %v4596
        %v4996 = vpack.c.b16 %v4604, %v4597
        %v4997 = vpack.c.b16 %v4605, %v4598
        %v4998 = vpack.c.b16 %v4606, %v4599
        %v4999 = vpack.c.b16 %v4607, %v4600
        %v5000 = vpack.c.b16 %v4608, %v4601
        %v5001 = vpack.c.b16 %v4609, %v4602
        %v5002 = vpack.c.b16 %v4617, %v4610
        %v5003 = vpack.c.b16 %v4618, %v4611
        %v5004 = vpack.c.b16 %v4619, %v4612
        %v5005 = vpack.c.b16 %v4620, %v4613
        %v5006 = vpack.c.b16 %v4621, %v4614
        %v5007 = vpack.c.b16 %v4622, %v4615
        %v5008 = vpack.c.b16 %v4623, %v4616
        %v5009 = vpack.c.b16 %v4631, %v4624
        %v5010 = vpack.c.b16 %v4632, %v4625
        %v5011 = vpack.c.b16 %v4633, %v4626
        %v5012 = vpack.c.b16 %v4634, %v4627
        %v5013 = vpack.c.b16 %v4635, %v4628
        %v5014 = vpack.c.b16 %v4636, %v4629
        %v5015 = vpack.c.b16 %v4637, %v4630
        %v5016 = vpack.c.b16 %v4645, %v4638
        %v5017 = vpack.c.b16 %v4646, %v4639
        %v5018 = vpack.c.b16 %v4647, %v4640
        %v5019 = vpack.c.b16 %v4648, %v4641
        %v5020 = vpack.c.b16 %v4649, %v4642
        %v5021 = vpack.c.b16 %v4650, %v4643
        %v5022 = vpack.c.b16 %v4651, %v4644
        %v5023 = vpack.c.b16 %v4659, %v4652
        %v5024 = vpack.c.b16 %v4660, %v4653
        %v5025 = vpack.c.b16 %v4661, %v4654
        %v5026 = vpack.c.b16 %v4662, %v4655
        %v5027 = vpack.c.b16 %v4663, %v4656
        %v5028 = vpack.c.b16 %v4664, %v4657
        %v5029 = vpack.c.b16 %v4665, %v4658
        %v5030 = vpack.c.b16 %v4673, %v4666
        %v5031 = vpack.c.b16 %v4674, %v4667
        %v5032 = vpack.c.b16 %v4675, %v4668
        %v5033 = vpack.c.b16 %v4676, %v4669
        %v5034 = vpack.c.b16 %v4677, %v4670
        %v5035 = vpack.c.b16 %v4678, %v4671
        %v5036 = vpack.c.b16 %v4679, %v4672
        %v5037 = vpack.c.b16 %v4687, %v4680
        %v5038 = vpack.c.b16 %v4688, %v4681
        %v5039 = vpack.c.b16 %v4689, %v4682
        %v5040 = vpack.c.b16 %v4690, %v4683
        %v5041 = vpack.c.b16 %v4691, %v4684
        %v5042 = vpack.c.b16 %v4692, %v4685
        %v5043 = vpack.c.b16 %v4693, %v4686
        %v5044 = vpack.c.b16 %v4701, %v4694
        %v5045 = vpack.c.b16 %v4702, %v4695
        %v5046 = vpack.c.b16 %v4703, %v4696
        %v5047 = vpack.c.b16 %v4704, %v4697
        %v5048 = vpack.c.b16 %v4705, %v4698
        %v5049 = vpack.c.b16 %v4706, %v4699
        %v5050 = vpack.c.b16 %v4707, %v4700
        %v5051 = vpack.c.b16 %v4715, %v4708
        %v5052 = vpack.c.b16 %v4716, %v4709
        %v5053 = vpack.c.b16 %v4717, %v4710
        %v5054 = vpack.c.b16 %v4718, %v4711
        %v5055 = vpack.c.b16 %v4719, %v4712
        %v5056 = vpack.c.b16 %v4720, %v4713
        %v5057 = vpack.c.b16 %v4721, %v4714
        %v5058 = vpack.c.b16 %v4729, %v4722
        %v5059 = vpack.c.b16 %v4730, %v4723
        %v5060 = vpack.c.b16 %v4731, %v4724
        %v5061 = vpack.c.b16 %v4732, %v4725
        %v5062 = vpack.c.b16 %v4733, %v4726
        %v5063 = vpack.c.b16 %v4734, %v4727
        %v5064 = vpack.c.b16 %v4735, %v4728
        %v5065 = vpack.c.b16 %v4743, %v4736
        %v5066 = vpack.c.b16 %v4744, %v4737
        %v5067 = vpack.c.b16 %v4745, %v4738
        %v5068 = vpack.c.b16 %v4746, %v4739
        %v5069 = vpack.c.b16 %v4747, %v4740
        %v5070 = vpack.c.b16 %v4748, %v4741
        %v5071 = vpack.c.b16 %v4749, %v4742
        %v5072 = vpack.c.b16 %v4757, %v4750
        %v5073 = vpack.c.b16 %v4758, %v4751
        %v5074 = vpack.c.b16 %v4759, %v4752
        %v5075 = vpack.c.b16 %v4760, %v4753
        %v5076 = vpack.c.b16 %v4761, %v4754
        %v5077 = vpack.c.b16 %v4762, %v4755
        %v5078 = vpack.c.b16 %v4763, %v4756
        %v5079 = vpack.c.b16 %v4771, %v4764
        %v5080 = vpack.c.b16 %v4772, %v4765
        %v5081 = vpack.c.b16 %v4773, %v4766
        %v5082 = vpack.c.b16 %v4774, %v4767
        %v5083 = vpack.c.b16 %v4775, %v4768
        %v5084 = vpack.c.b16 %v4776, %v4769
        %v5085 = vpack.c.b16 %v4777, %v4770
        %v5086 = vpack.c.b16 %v4785, %v4778
        %v5087 = vpack.c.b16 %v4786, %v4779
        %v5088 = vpack.c.b16 %v4787, %v4780
        %v5089 = vpack.c.b16 %v4788, %v4781
        %v5090 = vpack.c.b16 %v4789, %v4782
        %v5091 = vpack.c.b16 %v4790, %v4783
        %v5092 = vpack.c.b16 %v4791, %v4784
        %v5093 = vpack.c.b16 %v4799, %v4792
        %v5094 = vpack.c.b16 %v4800, %v4793
        %v5095 = vpack.c.b16 %v4801, %v4794
        %v5096 = vpack.c.b16 %v4802, %v4795
        %v5097 = vpack.c.b16 %v4803, %v4796
        %v5098 = vpack.c.b16 %v4804, %v4797
        %v5099 = vpack.c.b16 %v4805, %v4798
        %v5100 = vpack.c.b16 %v4813, %v4806
        %v5101 = vpack.c.b16 %v4814, %v4807
        %v5102 = vpack.c.b16 %v4815, %v4808
        %v5103 = vpack.c.b16 %v4816, %v4809
        %v5104 = vpack.c.b16 %v4817, %v4810
        %v5105 = vpack.c.b16 %v4818, %v4811
        %v5106 = vpack.c.b16 %v4819, %v4812
        %v5107 = vpack.c.b16 %v4827, %v4820
        %v5108 = vpack.c.b16 %v4828, %v4821
        %v5109 = vpack.c.b16 %v4829, %v4822
        %v5110 = vpack.c.b16 %v4830, %v4823
        %v5111 = vpack.c.b16 %v4831, %v4824
        %v5112 = vpack.c.b16 %v4832, %v4825
        %v5113 = vpack.c.b16 %v4833, %v4826
        %v5114 = vpack.c.b16 %v4841, %v4834
        %v5115 = vpack.c.b16 %v4842, %v4835
        %v5116 = vpack.c.b16 %v4843, %v4836
        %v5117 = vpack.c.b16 %v4844, %v4837
        %v5118 = vpack.c.b16 %v4845, %v4838
        %v5119 = vpack.c.b16 %v4846, %v4839
        %v5120 = vpack.c.b16 %v4847, %v4840
        %v5121 = vpack.c.b16 %v4855, %v4848
        %v5122 = vpack.c.b16 %v4856, %v4849
        %v5123 = vpack.c.b16 %v4857, %v4850
        %v5124 = vpack.c.b16 %v4858, %v4851
        %v5125 = vpack.c.b16 %v4859, %v4852
        %v5126 = vpack.c.b16 %v4860, %v4853
        %v5127 = vpack.c.b16 %v4861, %v4854
        %v5128 = vpack.c.b16 %v4869, %v4862
        %v5129 = vpack.c.b16 %v4870, %v4863
        %v5130 = vpack.c.b16 %v4871, %v4864
        %v5131 = vpack.c.b16 %v4872, %v4865
        %v5132 = vpack.c.b16 %v4873, %v4866
        %v5133 = vpack.c.b16 %v4874, %v4867
        %v5134 = vpack.c.b16 %v4875, %v4868
        %v5135 = vpack.c.b16 %v4883, %v4876
        %v5136 = vpack.c.b16 %v4884, %v4877
        %v5137 = vpack.c.b16 %v4885, %v4878
        %v5138 = vpack.c.b16 %v4886, %v4879
        %v5139 = vpack.c.b16 %v4887, %v4880
        %v5140 = vpack.c.b16 %v4888, %v4881
        %v5141 = vpack.c.b16 %v4889, %v4882
        %v5142 = vpack.c.b16 %v4897, %v4890
        %v5143 = vpack.c.b16 %v4898, %v4891
        %v5144 = vpack.c.b16 %v4899, %v4892
        %v5145 = vpack.c.b16 %v4900, %v4893
        %v5146 = vpack.c.b16 %v4901, %v4894
        %v5147 = vpack.c.b16 %v4902, %v4895
        %v5148 = vpack.c.b16 %v4903, %v4896
        %v5149 = vpack.c.b16 %v4911, %v4904
        %v5150 = vpack.c.b16 %v4912, %v4905
        %v5151 = vpack.c.b16 %v4913, %v4906
        %v5152 = vpack.c.b16 %v4914, %v4907
        %v5153 = vpack.c.b16 %v4915, %v4908
        %v5154 = vpack.c.b16 %v4916, %v4909
        %v5155 = vpack.c.b16 %v4917, %v4910
        %v5156 = vpack.c.b16 %v4925, %v4918
        %v5157 = vpack.c.b16 %v4926, %v4919
        %v5158 = vpack.c.b16 %v4927, %v4920
        %v5159 = vpack.c.b16 %v4928, %v4921
        %v5160 = vpack.c.b16 %v4929, %v4922
        %v5161 = vpack.c.b16 %v4930, %v4923
        %v5162 = vpack.c.b16 %v4931, %v4924
        %v5163 = vpack.c.b16 %v4939, %v4932
        %v5164 = vpack.c.b16 %v4940, %v4933
        %v5165 = vpack.c.b16 %v4941, %v4934
        %v5166 = vpack.c.b16 %v4942, %v4935
        %v5167 = vpack.c.b16 %v4943, %v4936
        %v5168 = vpack.c.b16 %v4944, %v4937
        %v5169 = vpack.c.b16 %v4945, %v4938
        %5394 = vmatprep.subr.bf16.mxu0 %v4996
        %5395 = vmatpush1.bf16.msra.mxu0 %v4995
        %5396 = vmatprep.subr.bf16.mxu0 %v4989
        %5397 = vmatpush1.bf16.msra.mxu0 %v4988
        %5398 = vmatprep.subr.bf16.mxu0 %v4982
        %5399 = vmatpush1.bf16.msra.mxu0 %v4981
        %5400 = vmatprep.subr.bf16.mxu0 %v4975
        %5401 = vmatpush1.bf16.msra.mxu0 %v4974
        %5402 = vmatprep.subr.bf16.mxu0 %v4968
        %5403 = vmatpush1.bf16.msra.mxu0 %v4967
        %5404 = vmatprep.subr.bf16.mxu0 %v4961
        %5405 = vmatpush1.bf16.msra.mxu0 %v4960
        %5406 = vmatprep.subr.bf16.mxu0 %v4954
        %5407 = vmatpush1.bf16.msra.mxu0 %v4953
        %5408 = vmatprep.subr.bf16.mxu0 %v4947
        %5409 = vmatpush1.bf16.msra.mxu0 %v4946
        %5410 = vmatprep.subr.bf16.mxu0 %v5052
        %5411 = vmatpush2.bf16.msra.mxu0 %v5051
        %5412 = vmatprep.subr.bf16.mxu0 %v5045
        %5413 = vmatpush2.bf16.msra.mxu0 %v5044
        %5414 = vmatprep.subr.bf16.mxu0 %v5038
        %5415 = vmatpush2.bf16.msra.mxu0 %v5037
        %5416 = vmatprep.subr.bf16.mxu0 %v5031
        %5417 = vmatpush2.bf16.msra.mxu0 %v5030
        %5418 = vmatprep.subr.bf16.mxu0 %v5024
        %5419 = vmatpush2.bf16.msra.mxu0 %v5023
        %5420 = vmatprep.subr.bf16.mxu0 %v5017
        %5421 = vmatpush2.bf16.msra.mxu0 %v5016
        %5422 = vmatprep.subr.bf16.mxu0 %v5010
        %5423 = vmatpush2.bf16.msra.mxu0 %v5009
        %5424 = vmatprep.subr.bf16.mxu0 %v5003
        %5425 = vmatpush2.bf16.msra.mxu0 %v5002
        %5426 = vmatprep.mubr.bf16.mxu0 %v3943
        %5427 = vmatmul.mubr.bf16.gmra.mxu0 %v3942
        %v5428 = vpop.f32.mrf.mxu0
        %v5429 = vadd.f32 %v4210, %v5428
        %v5430 = vpop.f32.mrf.mxu0
        %v5431 = vadd.f32 %v4214, %v5430
        %v5432 = vpop.f32.mrf.mxu0
        %v5433 = vpop.f32.mrf.mxu0
        %5434 = vdwg.mxu0
        %5435 = vmatprep.subr.bf16.mxu0 %v5108
        %5436 = vmatpush1.bf16.msra.mxu0 %v5107
        %5437 = vmatprep.subr.bf16.mxu0 %v5101
        %5438 = vmatpush1.bf16.msra.mxu0 %v5100
        %5439 = vmatprep.subr.bf16.mxu0 %v5094
        %5440 = vmatpush1.bf16.msra.mxu0 %v5093
        %5441 = vmatprep.subr.bf16.mxu0 %v5087
        %5442 = vmatpush1.bf16.msra.mxu0 %v5086
        %5443 = vmatprep.subr.bf16.mxu0 %v5080
        %5444 = vmatpush1.bf16.msra.mxu0 %v5079
        %5445 = vmatprep.subr.bf16.mxu0 %v5073
        %5446 = vmatpush1.bf16.msra.mxu0 %v5072
        %5447 = vmatprep.subr.bf16.mxu0 %v5066
        %5448 = vmatpush1.bf16.msra.mxu0 %v5065
        %5449 = vmatprep.subr.bf16.mxu0 %v5059
        %5450 = vmatpush1.bf16.msra.mxu0 %v5058
        %5451 = vmatprep.subr.bf16.mxu0 %v5164
        %5452 = vmatpush2.bf16.msra.mxu0 %v5163
        %5453 = vmatprep.subr.bf16.mxu0 %v5157
        %5454 = vmatpush2.bf16.msra.mxu0 %v5156
        %5455 = vmatprep.subr.bf16.mxu0 %v5150
        %5456 = vmatpush2.bf16.msra.mxu0 %v5149
        %5457 = vmatprep.subr.bf16.mxu0 %v5143
        %5458 = vmatpush2.bf16.msra.mxu0 %v5142
        %5459 = vmatprep.subr.bf16.mxu0 %v5136
        %5460 = vmatpush2.bf16.msra.mxu0 %v5135
        %5461 = vmatprep.subr.bf16.mxu0 %v5129
        %5462 = vmatpush2.bf16.msra.mxu0 %v5128
        %5463 = vmatprep.subr.bf16.mxu0 %v5122
        %5464 = vmatpush2.bf16.msra.mxu0 %v5121
        %5465 = vmatprep.subr.bf16.mxu0 %v5115
        %5466 = vmatpush2.bf16.msra.mxu0 %v5114
        %5467 = vmatprep.mubr.bf16.mxu0 %v3945
        %5468 = vmatmul.mubr.bf16.gmra.mxu0 %v3944
        %v5469 = vpop.f32.mrf.mxu0
        %v5470 = vadd.f32 %v5429, %v5469
        %v5471 = vpop.f32.mrf.mxu0
        %v5472 = vadd.f32 %v5431, %v5471
        %v5473 = vpop.f32.mrf.mxu0
        %v5474 = vpop.f32.mrf.mxu0
        %5475 = vdwg.mxu0
        %5476 = vmatprep.subr.bf16.mxu0 %v4998
        %5477 = vmatpush1.bf16.msra.mxu0 %v4997
        %5478 = vmatprep.subr.bf16.mxu0 %v4991
        %5479 = vmatpush1.bf16.msra.mxu0 %v4990
        %5480 = vmatprep.subr.bf16.mxu0 %v4984
        %5481 = vmatpush1.bf16.msra.mxu0 %v4983
        %5482 = vmatprep.subr.bf16.mxu0 %v4977
        %5483 = vmatpush1.bf16.msra.mxu0 %v4976
        %5484 = vmatprep.subr.bf16.mxu0 %v4970
        %5485 = vmatpush1.bf16.msra.mxu0 %v4969
        %5486 = vmatprep.subr.bf16.mxu0 %v4963
        %5487 = vmatpush1.bf16.msra.mxu0 %v4962
        %5488 = vmatprep.subr.bf16.mxu0 %v4956
        %5489 = vmatpush1.bf16.msra.mxu0 %v4955
        %5490 = vmatprep.subr.bf16.mxu0 %v4949
        %5491 = vmatpush1.bf16.msra.mxu0 %v4948
        %5492 = vmatprep.subr.bf16.mxu0 %v5054
        %5493 = vmatpush2.bf16.msra.mxu0 %v5053
        %5494 = vmatprep.subr.bf16.mxu0 %v5047
        %5495 = vmatpush2.bf16.msra.mxu0 %v5046
        %5496 = vmatprep.subr.bf16.mxu0 %v5040
        %5497 = vmatpush2.bf16.msra.mxu0 %v5039
        %5498 = vmatprep.subr.bf16.mxu0 %v5033
        %5499 = vmatpush2.bf16.msra.mxu0 %v5032
        %5500 = vmatprep.subr.bf16.mxu0 %v5026
        %5501 = vmatpush2.bf16.msra.mxu0 %v5025
        %5502 = vmatprep.subr.bf16.mxu0 %v5019
        %5503 = vmatpush2.bf16.msra.mxu0 %v5018
        %5504 = vmatprep.subr.bf16.mxu0 %v5012
        %5505 = vmatpush2.bf16.msra.mxu0 %v5011
        %5506 = vmatprep.subr.bf16.mxu0 %v5005
        %5507 = vmatpush2.bf16.msra.mxu0 %v5004
        %5508 = vmatprep.mubr.bf16.mxu0 %v3943
        %5509 = vmatmul.mubr.bf16.gmra.mxu0 %v3942
        %v5510 = vpop.f32.mrf.mxu0
        %v5511 = vadd.f32 %v4218, %v5510
        %v5512 = vpop.f32.mrf.mxu0
        %v5513 = vadd.f32 %v4222, %v5512
        %v5514 = vpop.f32.mrf.mxu0
        %v5515 = vpop.f32.mrf.mxu0
        %5516 = vdwg.mxu0
        %5517 = vmatprep.subr.bf16.mxu0 %v5110
        %5518 = vmatpush1.bf16.msra.mxu0 %v5109
        %5519 = vmatprep.subr.bf16.mxu0 %v5103
        %5520 = vmatpush1.bf16.msra.mxu0 %v5102
        %5521 = vmatprep.subr.bf16.mxu0 %v5096
        %5522 = vmatpush1.bf16.msra.mxu0 %v5095
        %5523 = vmatprep.subr.bf16.mxu0 %v5089
        %5524 = vmatpush1.bf16.msra.mxu0 %v5088
        %5525 = vmatprep.subr.bf16.mxu0 %v5082
        %5526 = vmatpush1.bf16.msra.mxu0 %v5081
        %5527 = vmatprep.subr.bf16.mxu0 %v5075
        %5528 = vmatpush1.bf16.msra.mxu0 %v5074
        %5529 = vmatprep.subr.bf16.mxu0 %v5068
        %5530 = vmatpush1.bf16.msra.mxu0 %v5067
        %5531 = vmatprep.subr.bf16.mxu0 %v5061
        %5532 = vmatpush1.bf16.msra.mxu0 %v5060
        %5533 = vmatprep.subr.bf16.mxu0 %v5166
        %5534 = vmatpush2.bf16.msra.mxu0 %v5165
        %5535 = vmatprep.subr.bf16.mxu0 %v5159
        %5536 = vmatpush2.bf16.msra.mxu0 %v5158
        %5537 = vmatprep.subr.bf16.mxu0 %v5152
        %5538 = vmatpush2.bf16.msra.mxu0 %v5151
        %5539 = vmatprep.subr.bf16.mxu0 %v5145
        %5540 = vmatpush2.bf16.msra.mxu0 %v5144
        %5541 = vmatprep.subr.bf16.mxu0 %v5138
        %5542 = vmatpush2.bf16.msra.mxu0 %v5137
        %5543 = vmatprep.subr.bf16.mxu0 %v5131
        %5544 = vmatpush2.bf16.msra.mxu0 %v5130
        %5545 = vmatprep.subr.bf16.mxu0 %v5124
        %5546 = vmatpush2.bf16.msra.mxu0 %v5123
        %5547 = vmatprep.subr.bf16.mxu0 %v5117
        %5548 = vmatpush2.bf16.msra.mxu0 %v5116
        %5549 = vmatprep.mubr.bf16.mxu0 %v3945
        %5550 = vmatmul.mubr.bf16.gmra.mxu0 %v3944
        %v5551 = vpop.f32.mrf.mxu0
        %v5552 = vadd.f32 %v5511, %v5551
        %v5553 = vpop.f32.mrf.mxu0
        %v5554 = vadd.f32 %v5513, %v5553
        %v5555 = vpop.f32.mrf.mxu0
        %v5556 = vpop.f32.mrf.mxu0
        %5557 = vdwg.mxu0
        %5558 = vmatprep.subr.bf16.mxu0 %v5000
        %5559 = vmatpush1.bf16.msra.mxu0 %v4999
        %5560 = vmatprep.subr.bf16.mxu0 %v4993
        %5561 = vmatpush1.bf16.msra.mxu0 %v4992
        %5562 = vmatprep.subr.bf16.mxu0 %v4986
        %5563 = vmatpush1.bf16.msra.mxu0 %v4985
        %5564 = vmatprep.subr.bf16.mxu0 %v4979
        %5565 = vmatpush1.bf16.msra.mxu0 %v4978
        %5566 = vmatprep.subr.bf16.mxu0 %v4972
        %5567 = vmatpush1.bf16.msra.mxu0 %v4971
        %5568 = vmatprep.subr.bf16.mxu0 %v4965
        %5569 = vmatpush1.bf16.msra.mxu0 %v4964
        %5570 = vmatprep.subr.bf16.mxu0 %v4958
        %5571 = vmatpush1.bf16.msra.mxu0 %v4957
        %5572 = vmatprep.subr.bf16.mxu0 %v4951
        %5573 = vmatpush1.bf16.msra.mxu0 %v4950
        %5574 = vmatprep.subr.bf16.mxu0 %v5056
        %5575 = vmatpush2.bf16.msra.mxu0 %v5055
        %5576 = vmatprep.subr.bf16.mxu0 %v5049
        %5577 = vmatpush2.bf16.msra.mxu0 %v5048
        %5578 = vmatprep.subr.bf16.mxu0 %v5042
        %5579 = vmatpush2.bf16.msra.mxu0 %v5041
        %5580 = vmatprep.subr.bf16.mxu0 %v5035
        %5581 = vmatpush2.bf16.msra.mxu0 %v5034
        %5582 = vmatprep.subr.bf16.mxu0 %v5028
        %5583 = vmatpush2.bf16.msra.mxu0 %v5027
        %5584 = vmatprep.subr.bf16.mxu0 %v5021
        %5585 = vmatpush2.bf16.msra.mxu0 %v5020
        %5586 = vmatprep.subr.bf16.mxu0 %v5014
        %5587 = vmatpush2.bf16.msra.mxu0 %v5013
        %5588 = vmatprep.subr.bf16.mxu0 %v5007
        %5589 = vmatpush2.bf16.msra.mxu0 %v5006
        %5590 = vmatprep.mubr.bf16.mxu0 %v3943
        %5591 = vmatmul.mubr.bf16.gmra.mxu0 %v3942
        %v5592 = vpop.f32.mrf.mxu0
        %v5593 = vadd.f32 %v4226, %v5592
        %v5594 = vpop.f32.mrf.mxu0
        %v5595 = vadd.f32 %v4230, %v5594
        %v5596 = vpop.f32.mrf.mxu0
        %v5597 = vpop.f32.mrf.mxu0
        %5598 = vdwg.mxu0
        %5599 = vmatprep.subr.bf16.mxu0 %v5112
        %5600 = vmatpush1.bf16.msra.mxu0 %v5111
        %5601 = vmatprep.subr.bf16.mxu0 %v5105
        %5602 = vmatpush1.bf16.msra.mxu0 %v5104
        %5603 = vmatprep.subr.bf16.mxu0 %v5098
        %5604 = vmatpush1.bf16.msra.mxu0 %v5097
        %5605 = vmatprep.subr.bf16.mxu0 %v5091
        %5606 = vmatpush1.bf16.msra.mxu0 %v5090
        %5607 = vmatprep.subr.bf16.mxu0 %v5084
        %5608 = vmatpush1.bf16.msra.mxu0 %v5083
        %5609 = vmatprep.subr.bf16.mxu0 %v5077
        %5610 = vmatpush1.bf16.msra.mxu0 %v5076
        %5611 = vmatprep.subr.bf16.mxu0 %v5070
        %5612 = vmatpush1.bf16.msra.mxu0 %v5069
        %5613 = vmatprep.subr.bf16.mxu0 %v5063
        %5614 = vmatpush1.bf16.msra.mxu0 %v5062
        %5615 = vmatprep.subr.bf16.mxu0 %v5168
        %5616 = vmatpush2.bf16.msra.mxu0 %v5167
        %5617 = vmatprep.subr.bf16.mxu0 %v5161
        %5618 = vmatpush2.bf16.msra.mxu0 %v5160
        %5619 = vmatprep.subr.bf16.mxu0 %v5154
        %5620 = vmatpush2.bf16.msra.mxu0 %v5153
        %5621 = vmatprep.subr.bf16.mxu0 %v5147
        %5622 = vmatpush2.bf16.msra.mxu0 %v5146
        %5623 = vmatprep.subr.bf16.mxu0 %v5140
        %5624 = vmatpush2.bf16.msra.mxu0 %v5139
        %5625 = vmatprep.subr.bf16.mxu0 %v5133
        %5626 = vmatpush2.bf16.msra.mxu0 %v5132
        %5627 = vmatprep.subr.bf16.mxu0 %v5126
        %5628 = vmatpush2.bf16.msra.mxu0 %v5125
        %5629 = vmatprep.subr.bf16.mxu0 %v5119
        %5630 = vmatpush2.bf16.msra.mxu0 %v5118
        %5631 = vmatprep.mubr.bf16.mxu0 %v3945
        %5632 = vmatmul.mubr.bf16.gmra.mxu0 %v3944
        %v5633 = vpop.f32.mrf.mxu0
        %v5634 = vadd.f32 %v5593, %v5633
        %v5635 = vpop.f32.mrf.mxu0
        %v5636 = vadd.f32 %v5595, %v5635
        %v5637 = vpop.f32.mrf.mxu0
        %v5638 = vpop.f32.mrf.mxu0
        %5639 = vdwg.mxu0
        %5640 = vmatprep.subr.bf16.mxu0 0
        %5641 = vmatpush1.bf16.msra.mxu0 %v5001
        %5642 = vmatprep.subr.bf16.mxu0 0
        %5643 = vmatpush1.bf16.msra.mxu0 %v4994
        %5644 = vmatprep.subr.bf16.mxu0 0
        %5645 = vmatpush1.bf16.msra.mxu0 %v4987
        %5646 = vmatprep.subr.bf16.mxu0 0
        %5647 = vmatpush1.bf16.msra.mxu0 %v4980
        %5648 = vmatprep.subr.bf16.mxu0 0
        %5649 = vmatpush1.bf16.msra.mxu0 %v4973
        %5650 = vmatprep.subr.bf16.mxu0 0
        %5651 = vmatpush1.bf16.msra.mxu0 %v4966
        %5652 = vmatprep.subr.bf16.mxu0 0
        %5653 = vmatpush1.bf16.msra.mxu0 %v4959
        %5654 = vmatprep.subr.bf16.mxu0 0
        %5655 = vmatpush1.bf16.msra.mxu0 %v4952
        %5656 = vmatprep.subr.bf16.mxu0 0
        %5657 = vmatpush2.bf16.msra.mxu0 %v5057
        %5658 = vmatprep.subr.bf16.mxu0 0
        %5659 = vmatpush2.bf16.msra.mxu0 %v5050
        %5660 = vmatprep.subr.bf16.mxu0 0
        %5661 = vmatpush2.bf16.msra.mxu0 %v5043
        %5662 = vmatprep.subr.bf16.mxu0 0
        %5663 = vmatpush2.bf16.msra.mxu0 %v5036
        %5664 = vmatprep.subr.bf16.mxu0 0
        %5665 = vmatpush2.bf16.msra.mxu0 %v5029
        %5666 = vmatprep.subr.bf16.mxu0 0
        %5667 = vmatpush2.bf16.msra.mxu0 %v5022
        %5668 = vmatprep.subr.bf16.mxu0 0
        %5669 = vmatpush2.bf16.msra.mxu0 %v5015
        %5670 = vmatprep.subr.bf16.mxu0 0
        %5671 = vmatpush2.bf16.msra.mxu0 %v5008
        %5672 = vmatprep.mubr.bf16.mxu0 %v3943
        %5673 = vmatmul.mubr.bf16.gmra.mxu0 %v3942
        %v5674 = vpop.f32.mrf.mxu0
        %v5675 = vadd.f32 %v4234, %v5674
        %v5676 = vpop.f32.mrf.mxu0
        %v5677 = vpop.f32.mrf.mxu0
        %v5678 = vpop.f32.mrf.mxu0
        %5679 = vdwg.mxu0
        %5680 = vmatprep.subr.bf16.mxu0 0
        %5681 = vmatpush1.bf16.msra.mxu0 %v5113
        %5682 = vmatprep.subr.bf16.mxu0 0
        %5683 = vmatpush1.bf16.msra.mxu0 %v5106
        %5684 = vmatprep.subr.bf16.mxu0 0
        %5685 = vmatpush1.bf16.msra.mxu0 %v5099
        %5686 = vmatprep.subr.bf16.mxu0 0
        %5687 = vmatpush1.bf16.msra.mxu0 %v5092
        %5688 = vmatprep.subr.bf16.mxu0 0
        %5689 = vmatpush1.bf16.msra.mxu0 %v5085
        %5690 = vmatprep.subr.bf16.mxu0 0
        %5691 = vmatpush1.bf16.msra.mxu0 %v5078
        %5692 = vmatprep.subr.bf16.mxu0 0
        %5693 = vmatpush1.bf16.msra.mxu0 %v5071
        %5694 = vmatprep.subr.bf16.mxu0 0
        %5695 = vmatpush1.bf16.msra.mxu0 %v5064
        %5696 = vmatprep.subr.bf16.mxu0 0
        %5697 = vmatpush2.bf16.msra.mxu0 %v5169
        %5698 = vmatprep.subr.bf16.mxu0 0
        %5699 = vmatpush2.bf16.msra.mxu0 %v5162
        %5700 = vmatprep.subr.bf16.mxu0 0
        %5701 = vmatpush2.bf16.msra.mxu0 %v5155
        %5702 = vmatprep.subr.bf16.mxu0 0
        %5703 = vmatpush2.bf16.msra.mxu0 %v5148
        %5704 = vmatprep.subr.bf16.mxu0 0
        %5705 = vmatpush2.bf16.msra.mxu0 %v5141
        %5706 = vmatprep.subr.bf16.mxu0 0
        %5707 = vmatpush2.bf16.msra.mxu0 %v5134
        %5708 = vmatprep.subr.bf16.mxu0 0
        %5709 = vmatpush2.bf16.msra.mxu0 %v5127
        %5710 = vmatprep.subr.bf16.mxu0 0
        %5711 = vmatpush2.bf16.msra.mxu0 %v5120
        %5712 = vmatprep.mubr.bf16.mxu0 %v3945
        %5713 = vmatmul.mubr.bf16.gmra.mxu0 %v3944
        %v5714 = vpop.f32.mrf.mxu0
        %v5715 = vadd.f32 %v5675, %v5714
        %v5716 = vpop.f32.mrf.mxu0
        %v5717 = vpop.f32.mrf.mxu0
        %v5718 = vpop.f32.mrf.mxu0
        %5719 = vdwg.mxu0
        %5720 = vst [vmem:[%s460] sm:$0xff] %v5470
        %5721 = vst [vmem:[%s460 + $0x8] sm:$0xff] %v5472
        %5722 = vst [vmem:[%s460 + $0x10] sm:$0xff] %v5552
        %5723 = vst [vmem:[%s460 + $0x18] sm:$0xff] %v5554
        %5724 = vst [vmem:[%s460 + $0x20] sm:$0xff] %v5634
        %5725 = vst [vmem:[%s460 + $0x28] sm:$0xff] %v5636
        %5726 = vst [vmem:[%s460 + $0x30] sm:$0xff] %v5715
        %s5727 = sand.u32 %s335, 1
        %s5728 = scalar_lea.sflag [#allocation3], %s5727
        %s5729 = sand.u32 %s335, 1
        %s5730 = smul.addr %s5729, 56
        %s5731 = scalar_lea.vmem [#allocation2], %s5730
        // Predicated region
        $region77: #{autoencoder_forward.1} parent=75 // pred_check
          %p5732 = pneg %p345
        $region78: #{autoencoder_forward.1} parent=75 // pred_check_branch
          %5734 = sbr.rel (%p5732) target = $region80
        $region79: #{autoencoder_forward.1} parent=75 // pred_region
          %s5736 = ssub.s32 896, 896
          %5737 = vsyncadd %s5728, %s5736
          %s5738 = smul.addr %s28, 7
          %s5739 = smul.addr %s5738, 128
          %s5740 = scalar_lea.hbm %s14, %s5739
          %s5742 = sshll.u32 %s5731, 4
          %s5743 = int_to_ptr.vmem [resolvable:$true] %s5742
          %5745 = dma.vmem_to_hbm [thread:$0]  %s5743, 896, %s5740, %s5728
        $region80: #{autoencoder_forward.1} parent=75 // pred_fallthru
          _
      $region76: #{autoencoder_forward.1} parent=5 // pred_fallthru
        _
      %p5746 = scmp.le.s32.totalorder 2, %s23
      // Predicated region
      $region81: #{autoencoder_forward.1} parent=5 // pred_check
        %p5747 = pneg %p5746
      $region82: #{autoencoder_forward.1} parent=5 // pred_check_branch
        %5749 = sbr.rel (%p5747) target = $region84
      $region83: #{autoencoder_forward.1} parent=5 // pred_region
        %s5750 = ssub.s32 %s23, 2
        // Predicated region
        $region85: #{autoencoder_forward.1} parent=83 // pred_check
          %p5751 = pneg %p351
        $region86: #{autoencoder_forward.1} parent=83 // pred_check_branch
          %5753 = sbr.rel (%p5751) target = $region88
        $region87: #{autoencoder_forward.1} parent=83 // pred_region
          %s5754 = sand.u32 %s336, 1
          %s5755 = scalar_lea.sflag [#allocation3], %s5754
          %s5756 = sand.u32 %s336, 1
          %s5757 = smul.addr %s5756, 56
          %s5758 = scalar_lea.vmem [#allocation2], %s5757
          %5759 = dma.done %s5755, 896
        $region88: #{autoencoder_forward.1} parent=83 // pred_fallthru
          _
      $region84: #{autoencoder_forward.1} parent=5 // pred_fallthru
        _
    $region6: #{autoencoder_forward.1} parent=1 // loop_footer
      %s27 = sadd.s32 1, %s23
    $region7: #{autoencoder_forward.1} parent=1 // loop_footer_branch
      %22 = sbr.rel target = $region3
    $region8: #{autoencoder_forward.1} parent=1 // loop_exit
      _
    %5760 = vsyncpa [#allocation3], 1
    %s5761 = scalar_lea.sflag [#allocation3], 1
    %5762 = vsyncpa %s5761, 1

</llo_original>
